<compile_context>
chip_gen: v6e
topology: v6e:2x2x1
jax: 0.10.0
libtpu: 0.0.40
codegen_flags: <defaults>
</compile_context>

<pallas_src>
import math

import jax
import jax.numpy as jnp
from jax.experimental import pallas as pl
from jax.experimental.pallas import tpu as pltpu

# --- module-consistent dimensions (defaults are 512; shrunk for the demo) ---
D_STEP = 128            # diffusion_step_embed_dim
D_OBS = 128             # observation_embed_dim
D_SAMP = 128            # sample_embed_dim
SAMPLE_DIM = 9          # sample_dim (grasp sample dimension)
SAMPLE_PAD = 16         # sample padded only 9 -> 16 (block last dim == full array dim)
TOTAL = D_SAMP + D_STEP + D_OBS   # 384
H1 = TOTAL // 2                   # 192 (true)
H1_PAD = 256                      # padded to 128-multiple
H2 = TOTAL // 4                   # 96 (true)
H2_PAD = 128
OUT_PAD = 128                     # lane-dense bf16 output, sliced to 9 cols in the wrapper
BATCH_TILE = 512                  # tunable batch tile (amortizes per-grid-step overhead)
MIN_TILE = 16                     # bf16 sublane packing granularity


def _round_up(x, m):
    return (x + m - 1) // m * m


def _mish_exact(x):
    # Mish(x) = x * tanh(softplus(x)) -- used by the f32 reference / wrapper fast path.
    return x * jnp.tanh(jax.nn.softplus(x))


def _mish_cheap(x):
    # tanh(softplus(x)) = ((1+e^x)^2 - 1) / ((1+e^x)^2 + 1):
    # one EUP exp + one approx reciprocal instead of exp/log1p/tanh.
    # The clamp keeps e^x finite; for x >= 20, tanh(softplus(x)) == 1 to f32 precision.
    e = jnp.exp(jnp.minimum(x, 20.0))
    u = (1.0 + e) * (1.0 + e)
    return x * (u - 1.0) * pl.reciprocal(u + 1.0, approx=True)


# ---------------- kernels ----------------
def _noise_pred_kernel(t_ref, samp_ref, obs_ref, freqs_ref, phase_ref,
                       wt1, bt1, wt2, bt2,
                       ws1, bs1, ws2, bs2,
                       wh1_s, wh1_t, wh1_o, bh1,
                       wh2, bh2, wh3, bh3,
                       out_ref):
    """Per-row-timestep forward pass for one batch tile, fused in VMEM."""

    def mm(x, w_ref):
        # bf16 MXU inputs, f32 accumulation.
        return jnp.dot(x.astype(jnp.bfloat16), w_ref[...],
                       preferred_element_type=jnp.float32)

    tb = out_ref.shape[0]

    # ---- SinusoidalPosEmb: cos(x) = sin(x + pi/2) -> one sin over the whole tile ----
    ang = t_ref[...] * freqs_ref[...] + phase_ref[...]          # (TB, 128) f32
    pe = jnp.sin(ang).astype(jnp.bfloat16)

    # ---- diffusion_step_encoder: Linear(128->512) -> Mish -> Linear(512->128),
    #      chunked over the 512-wide hidden so only a (TB,128) slice is live at a time ----
    t_emb = jnp.zeros((tb, D_STEP), jnp.float32)
    for c in range(4):
        lo, hi = c * D_STEP, (c + 1) * D_STEP
        h = jnp.dot(pe, wt1[:, lo:hi],
                    preferred_element_type=jnp.float32) + bt1[:, lo:hi]
        h = _mish_cheap(h)
        t_emb = t_emb + jnp.dot(h.astype(jnp.bfloat16), wt2[lo:hi, :],
                                preferred_element_type=jnp.float32)
    t_emb = t_emb + bt2[...]

    # ---- sample_encoder: Linear(9(->16)->128) -> ReLU -> Linear(128->128) ----
    s = jnp.maximum(mm(samp_ref[...], ws1) + bs1[...], 0.0)
    s_emb = mm(s, ws2) + bs2[...]

    # ---- prediction_head: concat([s_emb, t_emb, obs]) @ wh1 as split-K chained sum ----
    x = mm(s_emb, wh1_s) + mm(t_emb, wh1_t) + mm(obs_ref[...], wh1_o) + bh1[...]
    x = jnp.maximum(x, 0.0)
    x = jnp.maximum(mm(x, wh2) + bh2[...], 0.0)
    out_ref[...] = (mm(x, wh3) + bh3[...]).astype(out_ref.dtype)   # real outputs in cols 0..8


def _noise_pred_scalar_t_kernel(samp_ref, obs_ref,
                                ws1, bs1, ws2, bs2,
                                wh1_s, wh1_o, bh1_eff,
                                wh2, bh2, wh3, bh3,
                                out_ref):
    """Scalar-timestep fast path: time-embedding contribution folded into bh1_eff."""

    def mm(x, w_ref):
        return jnp.dot(x.astype(jnp.bfloat16), w_ref[...],
                       preferred_element_type=jnp.float32)

    s = jnp.maximum(mm(samp_ref[...], ws1) + bs1[...], 0.0)
    s_emb = mm(s, ws2) + bs2[...]
    x = mm(s_emb, wh1_s) + mm(obs_ref[...], wh1_o) + bh1_eff[...]
    x = jnp.maximum(x, 0.0)
    x = jnp.maximum(mm(x, wh2) + bh2[...], 0.0)
    out_ref[...] = (mm(x, wh3) + bh3[...]).astype(out_ref.dtype)


# ---------------- parameter construction (deterministic, PyTorch-default-style) ----------------
def _linear(key, fin, fout):
    bound = 1.0 / math.sqrt(fin)
    kw, kb = jax.random.split(key)
    w = jax.random.uniform(kw, (fin, fout), jnp.float32, -bound, bound)   # [in, out]
    b = jax.random.uniform(kb, (fout,), jnp.float32, -bound, bound)
    return w, b


def _pad2(a, rows, cols):
    return jnp.pad(a, ((0, rows - a.shape[0]), (0, cols - a.shape[1])))


def init_params(key):
    keys = jax.random.split(key, 7)
    wt1, bt1 = _linear(keys[0], D_STEP, 4 * D_STEP)
    wt2, bt2 = _linear(keys[1], 4 * D_STEP, D_STEP)
    ws1, bs1 = _linear(keys[2], SAMPLE_DIM, D_SAMP)
    ws2, bs2 = _linear(keys[3], D_SAMP, D_SAMP)
    wh1, bh1 = _linear(keys[4], TOTAL, H1)
    wh2, bh2 = _linear(keys[5], H1, H2)
    wh3, bh3 = _linear(keys[6], H2, SAMPLE_DIM)

    def q(w):   # bf16 weight storage for the kernel
        return w.astype(jnp.bfloat16)

    def qf(w):  # same bf16-rounded values, f32, for the reference
        return w.astype(jnp.bfloat16).astype(jnp.float32)

    rparams = (qf(wt1), bt1, qf(wt2), bt2, qf(ws1), bs1, qf(ws2), bs2,
               qf(wh1), bh1, qf(wh2), bh2, qf(wh3), bh3)

    def bias(v, n):  # zero-pad a 1-D bias to n lanes, keep f32, shape (1, n)
        return jnp.pad(v, (0, n - v.shape[0])).reshape(1, n).astype(jnp.float32)

    kparams = dict(
        wt1=q(wt1),                               bt1=bias(bt1, 4 * D_STEP),
        wt2=q(wt2),                               bt2=bias(bt2, D_STEP),
        ws1=q(_pad2(ws1, SAMPLE_PAD, D_SAMP)),    bs1=bias(bs1, D_SAMP),
        ws2=q(ws2),                               bs2=bias(bs2, D_SAMP),
        wh1_s=q(_pad2(wh1[:D_SAMP], D_SAMP, H1_PAD)),                   # sample block of wh1
        wh1_t=q(_pad2(wh1[D_SAMP:D_SAMP + D_STEP], D_STEP, H1_PAD)),    # timestep block
        wh1_o=q(_pad2(wh1[D_SAMP + D_STEP:], D_OBS, H1_PAD)),           # observation block
        bh1=bias(bh1, H1_PAD),
        wh2=q(_pad2(wh2, H1_PAD, H2_PAD)),        bh2=bias(bh2, H2_PAD),
        wh3=q(_pad2(wh3, H2_PAD, OUT_PAD)),       bh3=bias(bh3, OUT_PAD),
    )
    return kparams, rparams


def _sinusoid_consts():
    half = D_STEP // 2
    scale = math.log(10000.0) / (half - 1)
    freqs = jnp.exp(-scale * jnp.arange(half, dtype=jnp.float32))
    freqs_full = jnp.concatenate([freqs, freqs]).reshape(1, D_STEP)
    phase = jnp.concatenate(
        [jnp.zeros(half, jnp.float32),
         jnp.full((half,), math.pi / 2, jnp.float32)]).reshape(1, D_STEP)
    return freqs, freqs_full, phase


# ---------------- wrapper ----------------
def diffusion_noise_prediction_net(observation_embedding, timesteps, sample, kparams,
                                   batch_tile=BATCH_TILE):
    B = observation_embedding.shape[0]
    timesteps = jnp.asarray(timesteps)
    scalar_t = timesteps.ndim == 0

    # Batch tile: amortize per-step overhead; guarantee >=2 grid steps when B allows so the
    # "parallel" grid axis can shard batch tiles across v7x's two TensorCores.
    b_al = _round_up(B, MIN_TILE)
    tile_b = min(batch_tile, b_al)
    if b_al >= 2 * MIN_TILE and _round_up(B, tile_b) // tile_b < 2:
        tile_b = _round_up((B + 1) // 2, MIN_TILE)
    B_pad = _round_up(B, tile_b)
    nb = B_pad // tile_b

    # bf16 MXU operands travel HBM->VMEM as bf16 (half the bytes); accumulation stays f32.
    obs = observation_embedding.astype(jnp.bfloat16)
    samp = jnp.pad(sample, ((0, 0), (0, SAMPLE_PAD - SAMPLE_DIM))).astype(jnp.bfloat16)
    if B_pad != B:
        pad = ((0, B_pad - B), (0, 0))
        obs, samp = jnp.pad(obs, pad), jnp.pad(samp, pad)

    def batch_spec(feat):
        return pl.BlockSpec((tile_b, feat), lambda i: (i, 0))

    def rep_spec(arr):
        return pl.BlockSpec(arr.shape, lambda i: (0, 0))

    out_shape = jax.ShapeDtypeStruct((B_pad, OUT_PAD), jnp.bfloat16)
    cparams = pltpu.CompilerParams(dimension_semantics=("parallel",))
    p = kparams
    freqs, freqs_full, phase = _sinusoid_consts()

    if scalar_t:
        # One timestep for every row (the common sampling case): run the whole
        # diffusion_step_encoder once here and fold its wh1 contribution into the bias.
        t = timesteps.astype(jnp.float32).reshape(1, 1)
        pe = jnp.concatenate([jnp.sin(t * freqs[None, :]),
                              jnp.cos(t * freqs[None, :])], axis=-1)      # (1, 128)
        h = _mish_exact(pe @ p["wt1"].astype(jnp.float32) + p["bt1"])
        t_emb = h @ p["wt2"].astype(jnp.float32) + p["bt2"]               # (1, 128)
        bh1_eff = p["bh1"] + (t_emb.astype(jnp.bfloat16).astype(jnp.float32)
                              @ p["wh1_t"].astype(jnp.float32))           # (1, 256)

        ops = [samp, obs, p["ws1"], p["bs1"], p["ws2"], p["bs2"],
               p["wh1_s"], p["wh1_o"], bh1_eff,
               p["wh2"], p["bh2"], p["wh3"], p["bh3"]]
        in_specs = ([batch_spec(SAMPLE_PAD), batch_spec(D_OBS)]
                    + [rep_spec(a) for a in ops[2:]])
        out = pl.pallas_call(
            _noise_pred_scalar_t_kernel,
            out_shape=out_shape, grid=(nb,),
            in_specs=in_specs, out_specs=batch_spec(OUT_PAD),
            compiler_params=cparams,
        )(*ops)
    else:
        t = timesteps.astype(jnp.float32).reshape(B, 1)
        if B_pad != B:
            t = jnp.pad(t, ((0, B_pad - B), (0, 0)))
        ops = [t, samp, obs, freqs_full, phase,
               p["wt1"], p["bt1"], p["wt2"], p["bt2"],
               p["ws1"], p["bs1"], p["ws2"], p["bs2"],
               p["wh1_s"], p["wh1_t"], p["wh1_o"], p["bh1"],
               p["wh2"], p["bh2"], p["wh3"], p["bh3"]]
        in_specs = ([batch_spec(1), batch_spec(SAMPLE_PAD), batch_spec(D_OBS)]
                    + [rep_spec(a) for a in ops[3:]])
        out = pl.pallas_call(
            _noise_pred_kernel,
            out_shape=out_shape, grid=(nb,),
            in_specs=in_specs, out_specs=batch_spec(OUT_PAD),
            compiler_params=cparams,
        )(*ops)

    return out[:B, :SAMPLE_DIM].astype(jnp.float32)


# ---------------- pure-JAX reference (for correctness check) ----------------
def reference_forward(observation_embedding, timesteps, sample, rparams):
    (wt1, bt1, wt2, bt2, ws1, bs1, ws2, bs2,
     wh1, bh1, wh2, bh2, wh3, bh3) = rparams
    B = observation_embedding.shape[0]
    timesteps = jnp.asarray(timesteps)
    if timesteps.ndim == 0:
        timesteps = jnp.broadcast_to(timesteps[None], (B,))
    t = timesteps.astype(jnp.float32)
    half = D_STEP // 2
    scale = math.log(10000.0) / (half - 1)
    freqs = jnp.exp(-scale * jnp.arange(half, dtype=jnp.float32))
    ang = t[:, None] * freqs[None, :]
    pe = jnp.concatenate([jnp.sin(ang), jnp.cos(ang)], axis=-1)
    h = _mish_exact(pe @ wt1 + bt1)
    t_emb = h @ wt2 + bt2
    s = jnp.maximum(sample @ ws1 + bs1, 0.0)
    s_emb = s @ ws2 + bs2
    embed = jnp.concatenate([s_emb, t_emb, observation_embedding], axis=-1)
    x = jnp.maximum(embed @ wh1 + bh1, 0.0)
    x = jnp.maximum(x @ wh2 + bh2, 0.0)
    return x @ wh3 + bh3


if __name__ == "__main__":
    key = jax.random.PRNGKey(0)
    k_obs, k_t, k_s, k_p = jax.random.split(key, 4)

    B = 40  # not a tile multiple -> exercises batch padding and the >=2-grid-step path
    observation_embedding = jax.random.normal(k_obs, (B, D_OBS), jnp.float32)
    timesteps = jax.random.randint(k_t, (B,), 0, 1000).astype(jnp.int32)
    sample = jax.random.normal(k_s, (B, SAMPLE_DIM), jnp.float32)
    kparams, rparams = init_params(k_p)

    # --- per-row timesteps path ---
    out = diffusion_noise_prediction_net(observation_embedding, timesteps, sample, kparams)
    out = jax.block_until_ready(out)
    ref = reference_forward(observation_embedding, timesteps, sample, rparams)
    assert out.shape == (B, SAMPLE_DIM)
    err = float(jnp.max(jnp.abs(out - ref)))
    # bf16 MXU inputs + bf16 output store (f32 accumulation) vs f32 reference.
    assert jnp.allclose(out, ref, atol=3e-2, rtol=3e-2), \
        f"per-row path mismatch vs reference (max abs err {err})"

    # --- scalar timestep path (the broadcast branch of the PyTorch forward) ---
    t_scalar = jnp.asarray(37, jnp.int32)
    out_s = diffusion_noise_prediction_net(observation_embedding, t_scalar, sample, kparams)
    out_s = jax.block_until_ready(out_s)
    ref_s = reference_forward(observation_embedding, t_scalar, sample, rparams)
    err_s = float(jnp.max(jnp.abs(out_s - ref_s)))
    assert jnp.allclose(out_s, ref_s, atol=3e-2, rtol=3e-2), \
        f"scalar-t path mismatch vs reference (max abs err {err_s})"

    print("KERNEL_OK")
</pallas_src>

<mosaic_0001>
module attributes {stable_mosaic.version = 11 : i64} {
  func.func @_noise_pred_kernel(%arg0: i32, %arg1: memref<32x1xf32, #tpu.memory_space<vmem>>, %arg2: memref<32x16xbf16, #tpu.memory_space<vmem>>, %arg3: memref<32x128xbf16, #tpu.memory_space<vmem>>, %arg4: memref<1x128xf32, #tpu.memory_space<vmem>>, %arg5: memref<1x128xf32, #tpu.memory_space<vmem>>, %arg6: memref<128x512xbf16, #tpu.memory_space<vmem>>, %arg7: memref<1x512xf32, #tpu.memory_space<vmem>>, %arg8: memref<512x128xbf16, #tpu.memory_space<vmem>>, %arg9: memref<1x128xf32, #tpu.memory_space<vmem>>, %arg10: memref<16x128xbf16, #tpu.memory_space<vmem>>, %arg11: memref<1x128xf32, #tpu.memory_space<vmem>>, %arg12: memref<128x128xbf16, #tpu.memory_space<vmem>>, %arg13: memref<1x128xf32, #tpu.memory_space<vmem>>, %arg14: memref<128x256xbf16, #tpu.memory_space<vmem>>, %arg15: memref<128x256xbf16, #tpu.memory_space<vmem>>, %arg16: memref<128x256xbf16, #tpu.memory_space<vmem>>, %arg17: memref<1x256xf32, #tpu.memory_space<vmem>>, %arg18: memref<256x128xbf16, #tpu.memory_space<vmem>>, %arg19: memref<1x128xf32, #tpu.memory_space<vmem>>, %arg20: memref<128x128xbf16, #tpu.memory_space<vmem>>, %arg21: memref<1x128xf32, #tpu.memory_space<vmem>>, %arg22: memref<32x128xbf16, #tpu.memory_space<vmem>>) attributes {dimension_semantics = [#tpu.dimension_semantics<parallel>], iteration_bounds = array<i64: 2>, scalar_prefetch = 0 : i64, scratch_operands = 0 : i64, tpu.core_type = #tpu.core_type<tc>, window_params = [{transform_indices = @transform_0, window_bounds = array<i64: 32, 1>}, {transform_indices = @transform_1, window_bounds = array<i64: 32, 16>}, {transform_indices = @transform_2, window_bounds = array<i64: 32, 128>}, {pipeline_mode = #tpu.pipeline_mode<synchronous>, transform_indices = @transform_3, window_bounds = array<i64: 1, 128>}, {pipeline_mode = #tpu.pipeline_mode<synchronous>, transform_indices = @transform_4, window_bounds = array<i64: 1, 128>}, {pipeline_mode = #tpu.pipeline_mode<synchronous>, transform_indices = @transform_5, window_bounds = array<i64: 128, 512>}, {pipeline_mode = #tpu.pipeline_mode<synchronous>, transform_indices = @transform_6, window_bounds = array<i64: 1, 512>}, {pipeline_mode = #tpu.pipeline_mode<synchronous>, transform_indices = @transform_7, window_bounds = array<i64: 512, 128>}, {pipeline_mode = #tpu.pipeline_mode<synchronous>, transform_indices = @transform_8, window_bounds = array<i64: 1, 128>}, {pipeline_mode = #tpu.pipeline_mode<synchronous>, transform_indices = @transform_9, window_bounds = array<i64: 16, 128>}, {pipeline_mode = #tpu.pipeline_mode<synchronous>, transform_indices = @transform_10, window_bounds = array<i64: 1, 128>}, {pipeline_mode = #tpu.pipeline_mode<synchronous>, transform_indices = @transform_11, window_bounds = array<i64: 128, 128>}, {pipeline_mode = #tpu.pipeline_mode<synchronous>, transform_indices = @transform_12, window_bounds = array<i64: 1, 128>}, {pipeline_mode = #tpu.pipeline_mode<synchronous>, transform_indices = @transform_13, window_bounds = array<i64: 128, 256>}, {pipeline_mode = #tpu.pipeline_mode<synchronous>, transform_indices = @transform_14, window_bounds = array<i64: 128, 256>}, {pipeline_mode = #tpu.pipeline_mode<synchronous>, transform_indices = @transform_15, window_bounds = array<i64: 128, 256>}, {pipeline_mode = #tpu.pipeline_mode<synchronous>, transform_indices = @transform_16, window_bounds = array<i64: 1, 256>}, {pipeline_mode = #tpu.pipeline_mode<synchronous>, transform_indices = @transform_17, window_bounds = array<i64: 256, 128>}, {pipeline_mode = #tpu.pipeline_mode<synchronous>, transform_indices = @transform_18, window_bounds = array<i64: 1, 128>}, {pipeline_mode = #tpu.pipeline_mode<synchronous>, transform_indices = @transform_19, window_bounds = array<i64: 128, 128>}, {pipeline_mode = #tpu.pipeline_mode<synchronous>, transform_indices = @transform_20, window_bounds = array<i64: 1, 128>}, {transform_indices = @transform_21, window_bounds = array<i64: 32, 128>}]} {
    %c0 = arith.constant 0 : index
    %c0_0 = arith.constant 0 : index
    %0 = vector.load %arg1[%c0, %c0_0] : memref<32x1xf32, #tpu.memory_space<vmem>>, vector<32x1xf32>
    %c0_1 = arith.constant 0 : index
    %c0_2 = arith.constant 0 : index
    %1 = vector.load %arg4[%c0_1, %c0_2] : memref<1x128xf32, #tpu.memory_space<vmem>>, vector<1x128xf32>
    %2 = vector.broadcast %0 : vector<32x1xf32> to vector<32x128xf32>
    %3 = vector.broadcast %1 : vector<1x128xf32> to vector<32x128xf32>
    %4 = arith.mulf %2, %3 : vector<32x128xf32>
    %c0_3 = arith.constant 0 : index
    %c0_4 = arith.constant 0 : index
    %5 = vector.load %arg5[%c0_3, %c0_4] : memref<1x128xf32, #tpu.memory_space<vmem>>, vector<1x128xf32>
    %6 = vector.broadcast %5 : vector<1x128xf32> to vector<32x128xf32>
    %7 = arith.addf %4, %6 : vector<32x128xf32>
    %8 = math.sin %7 : vector<32x128xf32>
    %9 = arith.truncf %8 : vector<32x128xf32> to vector<32x128xbf16>
    %cst = arith.constant 0.000000e+00 : f32
    %10 = vector.broadcast %cst : f32 to vector<32x128xf32>
    %c0_5 = arith.constant 0 : index
    %c0_6 = arith.constant 0 : index
    %11 = vector.load %arg6[%c0_5, %c0_6] : memref<128x512xbf16, #tpu.memory_space<vmem>>, vector<128x128xbf16>
    %cst_7 = arith.constant dense<0.000000e+00> : vector<32x128xf32>
    %12 = tpu.matmul %9, %11, %cst_7 {dimension_numbers = #tpu.dot_dimension_numbers<[1], [0], [0], [1], [0, 0, 1, 1], [], []>} : vector<32x128xbf16>, vector<128x128xbf16>, vector<32x128xf32> -> vector<32x128xf32>
    %c0_8 = arith.constant 0 : index
    %c0_9 = arith.constant 0 : index
    %13 = vector.load %arg7[%c0_8, %c0_9] : memref<1x512xf32, #tpu.memory_space<vmem>>, vector<1x128xf32>
    %14 = vector.broadcast %13 : vector<1x128xf32> to vector<32x128xf32>
    %15 = arith.addf %12, %14 : vector<32x128xf32>
    %cst_10 = arith.constant 2.000000e+01 : f32
    %16 = vector.broadcast %cst_10 : f32 to vector<32x128xf32>
    %17 = arith.minimumf %15, %16 : vector<32x128xf32>
    %18 = math.exp %17 : vector<32x128xf32>
    %cst_11 = arith.constant 1.000000e+00 : f32
    %19 = vector.broadcast %cst_11 : f32 to vector<32x128xf32>
    %20 = arith.addf %19, %18 : vector<32x128xf32>
    %cst_12 = arith.constant 1.000000e+00 : f32
    %21 = vector.broadcast %cst_12 : f32 to vector<32x128xf32>
    %22 = arith.addf %21, %18 : vector<32x128xf32>
    %23 = arith.mulf %20, %22 : vector<32x128xf32>
    %cst_13 = arith.constant 1.000000e+00 : f32
    %24 = vector.broadcast %cst_13 : f32 to vector<32x128xf32>
    %25 = arith.subf %23, %24 : vector<32x128xf32>
    %26 = arith.mulf %15, %25 : vector<32x128xf32>
    %cst_14 = arith.constant 1.000000e+00 : f32
    %27 = vector.broadcast %cst_14 : f32 to vector<32x128xf32>
    %28 = arith.addf %23, %27 : vector<32x128xf32>
    %29 = tpu.reciprocal %28 {approx = true} : vector<32x128xf32> -> vector<32x128xf32>
    %30 = arith.mulf %26, %29 : vector<32x128xf32>
    %31 = arith.truncf %30 : vector<32x128xf32> to vector<32x128xbf16>
    %c0_15 = arith.constant 0 : index
    %c0_16 = arith.constant 0 : index
    %32 = vector.load %arg8[%c0_15, %c0_16] : memref<512x128xbf16, #tpu.memory_space<vmem>>, vector<128x128xbf16>
    %cst_17 = arith.constant dense<0.000000e+00> : vector<32x128xf32>
    %33 = tpu.matmul %31, %32, %cst_17 {dimension_numbers = #tpu.dot_dimension_numbers<[1], [0], [0], [1], [0, 0, 1, 1], [], []>} : vector<32x128xbf16>, vector<128x128xbf16>, vector<32x128xf32> -> vector<32x128xf32>
    %34 = arith.addf %10, %33 : vector<32x128xf32>
    %c0_18 = arith.constant 0 : index
    %c128 = arith.constant 128 : index
    %35 = vector.load %arg6[%c0_18, %c128] : memref<128x512xbf16, #tpu.memory_space<vmem>>, vector<128x128xbf16>
    %cst_19 = arith.constant dense<0.000000e+00> : vector<32x128xf32>
    %36 = tpu.matmul %9, %35, %cst_19 {dimension_numbers = #tpu.dot_dimension_numbers<[1], [0], [0], [1], [0, 0, 1, 1], [], []>} : vector<32x128xbf16>, vector<128x128xbf16>, vector<32x128xf32> -> vector<32x128xf32>
    %c0_20 = arith.constant 0 : index
    %c128_21 = arith.constant 128 : index
    %37 = vector.load %arg7[%c0_20, %c128_21] : memref<1x512xf32, #tpu.memory_space<vmem>>, vector<1x128xf32>
    %38 = vector.broadcast %37 : vector<1x128xf32> to vector<32x128xf32>
    %39 = arith.addf %36, %38 : vector<32x128xf32>
    %cst_22 = arith.constant 2.000000e+01 : f32
    %40 = vector.broadcast %cst_22 : f32 to vector<32x128xf32>
    %41 = arith.minimumf %39, %40 : vector<32x128xf32>
    %42 = math.exp %41 : vector<32x128xf32>
    %cst_23 = arith.constant 1.000000e+00 : f32
    %43 = vector.broadcast %cst_23 : f32 to vector<32x128xf32>
    %44 = arith.addf %43, %42 : vector<32x128xf32>
    %cst_24 = arith.constant 1.000000e+00 : f32
    %45 = vector.broadcast %cst_24 : f32 to vector<32x128xf32>
    %46 = arith.addf %45, %42 : vector<32x128xf32>
    %47 = arith.mulf %44, %46 : vector<32x128xf32>
    %cst_25 = arith.constant 1.000000e+00 : f32
    %48 = vector.broadcast %cst_25 : f32 to vector<32x128xf32>
    %49 = arith.subf %47, %48 : vector<32x128xf32>
    %50 = arith.mulf %39, %49 : vector<32x128xf32>
    %cst_26 = arith.constant 1.000000e+00 : f32
    %51 = vector.broadcast %cst_26 : f32 to vector<32x128xf32>
    %52 = arith.addf %47, %51 : vector<32x128xf32>
    %53 = tpu.reciprocal %52 {approx = true} : vector<32x128xf32> -> vector<32x128xf32>
    %54 = arith.mulf %50, %53 : vector<32x128xf32>
    %55 = arith.truncf %54 : vector<32x128xf32> to vector<32x128xbf16>
    %c128_27 = arith.constant 128 : index
    %c0_28 = arith.constant 0 : index
    %56 = vector.load %arg8[%c128_27, %c0_28] : memref<512x128xbf16, #tpu.memory_space<vmem>>, vector<128x128xbf16>
    %cst_29 = arith.constant dense<0.000000e+00> : vector<32x128xf32>
    %57 = tpu.matmul %55, %56, %cst_29 {dimension_numbers = #tpu.dot_dimension_numbers<[1], [0], [0], [1], [0, 0, 1, 1], [], []>} : vector<32x128xbf16>, vector<128x128xbf16>, vector<32x128xf32> -> vector<32x128xf32>
    %58 = arith.addf %34, %57 : vector<32x128xf32>
    %c0_30 = arith.constant 0 : index
    %c256 = arith.constant 256 : index
    %59 = vector.load %arg6[%c0_30, %c256] : memref<128x512xbf16, #tpu.memory_space<vmem>>, vector<128x128xbf16>
    %cst_31 = arith.constant dense<0.000000e+00> : vector<32x128xf32>
    %60 = tpu.matmul %9, %59, %cst_31 {dimension_numbers = #tpu.dot_dimension_numbers<[1], [0], [0], [1], [0, 0, 1, 1], [], []>} : vector<32x128xbf16>, vector<128x128xbf16>, vector<32x128xf32> -> vector<32x128xf32>
    %c0_32 = arith.constant 0 : index
    %c256_33 = arith.constant 256 : index
    %61 = vector.load %arg7[%c0_32, %c256_33] : memref<1x512xf32, #tpu.memory_space<vmem>>, vector<1x128xf32>
    %62 = vector.broadcast %61 : vector<1x128xf32> to vector<32x128xf32>
    %63 = arith.addf %60, %62 : vector<32x128xf32>
    %cst_34 = arith.constant 2.000000e+01 : f32
    %64 = vector.broadcast %cst_34 : f32 to vector<32x128xf32>
    %65 = arith.minimumf %63, %64 : vector<32x128xf32>
    %66 = math.exp %65 : vector<32x128xf32>
    %cst_35 = arith.constant 1.000000e+00 : f32
    %67 = vector.broadcast %cst_35 : f32 to vector<32x128xf32>
    %68 = arith.addf %67, %66 : vector<32x128xf32>
    %cst_36 = arith.constant 1.000000e+00 : f32
    %69 = vector.broadcast %cst_36 : f32 to vector<32x128xf32>
    %70 = arith.addf %69, %66 : vector<32x128xf32>
    %71 = arith.mulf %68, %70 : vector<32x128xf32>
    %cst_37 = arith.constant 1.000000e+00 : f32
    %72 = vector.broadcast %cst_37 : f32 to vector<32x128xf32>
    %73 = arith.subf %71, %72 : vector<32x128xf32>
    %74 = arith.mulf %63, %73 : vector<32x128xf32>
    %cst_38 = arith.constant 1.000000e+00 : f32
    %75 = vector.broadcast %cst_38 : f32 to vector<32x128xf32>
    %76 = arith.addf %71, %75 : vector<32x128xf32>
    %77 = tpu.reciprocal %76 {approx = true} : vector<32x128xf32> -> vector<32x128xf32>
    %78 = arith.mulf %74, %77 : vector<32x128xf32>
    %79 = arith.truncf %78 : vector<32x128xf32> to vector<32x128xbf16>
    %c256_39 = arith.constant 256 : index
    %c0_40 = arith.constant 0 : index
    %80 = vector.load %arg8[%c256_39, %c0_40] : memref<512x128xbf16, #tpu.memory_space<vmem>>, vector<128x128xbf16>
    %cst_41 = arith.constant dense<0.000000e+00> : vector<32x128xf32>
    %81 = tpu.matmul %79, %80, %cst_41 {dimension_numbers = #tpu.dot_dimension_numbers<[1], [0], [0], [1], [0, 0, 1, 1], [], []>} : vector<32x128xbf16>, vector<128x128xbf16>, vector<32x128xf32> -> vector<32x128xf32>
    %82 = arith.addf %58, %81 : vector<32x128xf32>
    %c0_42 = arith.constant 0 : index
    %c384 = arith.constant 384 : index
    %83 = vector.load %arg6[%c0_42, %c384] : memref<128x512xbf16, #tpu.memory_space<vmem>>, vector<128x128xbf16>
    %cst_43 = arith.constant dense<0.000000e+00> : vector<32x128xf32>
    %84 = tpu.matmul %9, %83, %cst_43 {dimension_numbers = #tpu.dot_dimension_numbers<[1], [0], [0], [1], [0, 0, 1, 1], [], []>} : vector<32x128xbf16>, vector<128x128xbf16>, vector<32x128xf32> -> vector<32x128xf32>
    %c0_44 = arith.constant 0 : index
    %c384_45 = arith.constant 384 : index
    %85 = vector.load %arg7[%c0_44, %c384_45] : memref<1x512xf32, #tpu.memory_space<vmem>>, vector<1x128xf32>
    %86 = vector.broadcast %85 : vector<1x128xf32> to vector<32x128xf32>
    %87 = arith.addf %84, %86 : vector<32x128xf32>
    %cst_46 = arith.constant 2.000000e+01 : f32
    %88 = vector.broadcast %cst_46 : f32 to vector<32x128xf32>
    %89 = arith.minimumf %87, %88 : vector<32x128xf32>
    %90 = math.exp %89 : vector<32x128xf32>
    %cst_47 = arith.constant 1.000000e+00 : f32
    %91 = vector.broadcast %cst_47 : f32 to vector<32x128xf32>
    %92 = arith.addf %91, %90 : vector<32x128xf32>
    %cst_48 = arith.constant 1.000000e+00 : f32
    %93 = vector.broadcast %cst_48 : f32 to vector<32x128xf32>
    %94 = arith.addf %93, %90 : vector<32x128xf32>
    %95 = arith.mulf %92, %94 : vector<32x128xf32>
    %cst_49 = arith.constant 1.000000e+00 : f32
    %96 = vector.broadcast %cst_49 : f32 to vector<32x128xf32>
    %97 = arith.subf %95, %96 : vector<32x128xf32>
    %98 = arith.mulf %87, %97 : vector<32x128xf32>
    %cst_50 = arith.constant 1.000000e+00 : f32
    %99 = vector.broadcast %cst_50 : f32 to vector<32x128xf32>
    %100 = arith.addf %95, %99 : vector<32x128xf32>
    %101 = tpu.reciprocal %100 {approx = true} : vector<32x128xf32> -> vector<32x128xf32>
    %102 = arith.mulf %98, %101 : vector<32x128xf32>
    %103 = arith.truncf %102 : vector<32x128xf32> to vector<32x128xbf16>
    %c384_51 = arith.constant 384 : index
    %c0_52 = arith.constant 0 : index
    %104 = vector.load %arg8[%c384_51, %c0_52] : memref<512x128xbf16, #tpu.memory_space<vmem>>, vector<128x128xbf16>
    %cst_53 = arith.constant dense<0.000000e+00> : vector<32x128xf32>
    %105 = tpu.matmul %103, %104, %cst_53 {dimension_numbers = #tpu.dot_dimension_numbers<[1], [0], [0], [1], [0, 0, 1, 1], [], []>} : vector<32x128xbf16>, vector<128x128xbf16>, vector<32x128xf32> -> vector<32x128xf32>
    %106 = arith.addf %82, %105 : vector<32x128xf32>
    %c0_54 = arith.constant 0 : index
    %c0_55 = arith.constant 0 : index
    %107 = vector.load %arg9[%c0_54, %c0_55] : memref<1x128xf32, #tpu.memory_space<vmem>>, vector<1x128xf32>
    %108 = vector.broadcast %107 : vector<1x128xf32> to vector<32x128xf32>
    %109 = arith.addf %106, %108 : vector<32x128xf32>
    %c0_56 = arith.constant 0 : index
    %c0_57 = arith.constant 0 : index
    %110 = vector.load %arg2[%c0_56, %c0_57] : memref<32x16xbf16, #tpu.memory_space<vmem>>, vector<32x16xbf16>
    %c0_58 = arith.constant 0 : index
    %c0_59 = arith.constant 0 : index
    %111 = vector.load %arg10[%c0_58, %c0_59] : memref<16x128xbf16, #tpu.memory_space<vmem>>, vector<16x128xbf16>
    %cst_60 = arith.constant dense<0.000000e+00> : vector<32x128xf32>
    %112 = tpu.matmul %110, %111, %cst_60 {dimension_numbers = #tpu.dot_dimension_numbers<[1], [0], [0], [1], [0, 0, 1, 1], [], []>} : vector<32x16xbf16>, vector<16x128xbf16>, vector<32x128xf32> -> vector<32x128xf32>
    %c0_61 = arith.constant 0 : index
    %c0_62 = arith.constant 0 : index
    %113 = vector.load %arg11[%c0_61, %c0_62] : memref<1x128xf32, #tpu.memory_space<vmem>>, vector<1x128xf32>
    %114 = vector.broadcast %113 : vector<1x128xf32> to vector<32x128xf32>
    %115 = arith.addf %112, %114 : vector<32x128xf32>
    %cst_63 = arith.constant 0.000000e+00 : f32
    %116 = vector.broadcast %cst_63 : f32 to vector<32x128xf32>
    %117 = arith.maximumf %115, %116 : vector<32x128xf32>
    %118 = arith.truncf %117 : vector<32x128xf32> to vector<32x128xbf16>
    %c0_64 = arith.constant 0 : index
    %c0_65 = arith.constant 0 : index
    %119 = vector.load %arg12[%c0_64, %c0_65] : memref<128x128xbf16, #tpu.memory_space<vmem>>, vector<128x128xbf16>
    %cst_66 = arith.constant dense<0.000000e+00> : vector<32x128xf32>
    %120 = tpu.matmul %118, %119, %cst_66 {dimension_numbers = #tpu.dot_dimension_numbers<[1], [0], [0], [1], [0, 0, 1, 1], [], []>} : vector<32x128xbf16>, vector<128x128xbf16>, vector<32x128xf32> -> vector<32x128xf32>
    %c0_67 = arith.constant 0 : index
    %c0_68 = arith.constant 0 : index
    %121 = vector.load %arg13[%c0_67, %c0_68] : memref<1x128xf32, #tpu.memory_space<vmem>>, vector<1x128xf32>
    %122 = vector.broadcast %121 : vector<1x128xf32> to vector<32x128xf32>
    %123 = arith.addf %120, %122 : vector<32x128xf32>
    %124 = arith.truncf %123 : vector<32x128xf32> to vector<32x128xbf16>
    %c0_69 = arith.constant 0 : index
    %c0_70 = arith.constant 0 : index
    %125 = vector.load %arg14[%c0_69, %c0_70] : memref<128x256xbf16, #tpu.memory_space<vmem>>, vector<128x256xbf16>
    %cst_71 = arith.constant dense<0.000000e+00> : vector<32x256xf32>
    %126 = tpu.matmul %124, %125, %cst_71 {dimension_numbers = #tpu.dot_dimension_numbers<[1], [0], [0], [1], [0, 0, 1, 1], [], []>} : vector<32x128xbf16>, vector<128x256xbf16>, vector<32x256xf32> -> vector<32x256xf32>
    %127 = arith.truncf %109 : vector<32x128xf32> to vector<32x128xbf16>
    %c0_72 = arith.constant 0 : index
    %c0_73 = arith.constant 0 : index
    %128 = vector.load %arg15[%c0_72, %c0_73] : memref<128x256xbf16, #tpu.memory_space<vmem>>, vector<128x256xbf16>
    %cst_74 = arith.constant dense<0.000000e+00> : vector<32x256xf32>
    %129 = tpu.matmul %127, %128, %cst_74 {dimension_numbers = #tpu.dot_dimension_numbers<[1], [0], [0], [1], [0, 0, 1, 1], [], []>} : vector<32x128xbf16>, vector<128x256xbf16>, vector<32x256xf32> -> vector<32x256xf32>
    %130 = arith.addf %126, %129 : vector<32x256xf32>
    %c0_75 = arith.constant 0 : index
    %c0_76 = arith.constant 0 : index
    %131 = vector.load %arg3[%c0_75, %c0_76] : memref<32x128xbf16, #tpu.memory_space<vmem>>, vector<32x128xbf16>
    %c0_77 = arith.constant 0 : index
    %c0_78 = arith.constant 0 : index
    %132 = vector.load %arg16[%c0_77, %c0_78] : memref<128x256xbf16, #tpu.memory_space<vmem>>, vector<128x256xbf16>
    %cst_79 = arith.constant dense<0.000000e+00> : vector<32x256xf32>
    %133 = tpu.matmul %131, %132, %cst_79 {dimension_numbers = #tpu.dot_dimension_numbers<[1], [0], [0], [1], [0, 0, 1, 1], [], []>} : vector<32x128xbf16>, vector<128x256xbf16>, vector<32x256xf32> -> vector<32x256xf32>
    %134 = arith.addf %130, %133 : vector<32x256xf32>
    %c0_80 = arith.constant 0 : index
    %c0_81 = arith.constant 0 : index
    %135 = vector.load %arg17[%c0_80, %c0_81] : memref<1x256xf32, #tpu.memory_space<vmem>>, vector<1x256xf32>
    %136 = vector.broadcast %135 : vector<1x256xf32> to vector<32x256xf32>
    %137 = arith.addf %134, %136 : vector<32x256xf32>
    %cst_82 = arith.constant 0.000000e+00 : f32
    %138 = vector.broadcast %cst_82 : f32 to vector<32x256xf32>
    %139 = arith.maximumf %137, %138 : vector<32x256xf32>
    %140 = arith.truncf %139 : vector<32x256xf32> to vector<32x256xbf16>
    %c0_83 = arith.constant 0 : index
    %c0_84 = arith.constant 0 : index
    %141 = vector.load %arg18[%c0_83, %c0_84] : memref<256x128xbf16, #tpu.memory_space<vmem>>, vector<256x128xbf16>
    %cst_85 = arith.constant dense<0.000000e+00> : vector<32x128xf32>
    %142 = tpu.matmul %140, %141, %cst_85 {dimension_numbers = #tpu.dot_dimension_numbers<[1], [0], [0], [1], [0, 0, 1, 1], [], []>} : vector<32x256xbf16>, vector<256x128xbf16>, vector<32x128xf32> -> vector<32x128xf32>
    %c0_86 = arith.constant 0 : index
    %c0_87 = arith.constant 0 : index
    %143 = vector.load %arg19[%c0_86, %c0_87] : memref<1x128xf32, #tpu.memory_space<vmem>>, vector<1x128xf32>
    %144 = vector.broadcast %143 : vector<1x128xf32> to vector<32x128xf32>
    %145 = arith.addf %142, %144 : vector<32x128xf32>
    %cst_88 = arith.constant 0.000000e+00 : f32
    %146 = vector.broadcast %cst_88 : f32 to vector<32x128xf32>
    %147 = arith.maximumf %145, %146 : vector<32x128xf32>
    %148 = arith.truncf %147 : vector<32x128xf32> to vector<32x128xbf16>
    %c0_89 = arith.constant 0 : index
    %c0_90 = arith.constant 0 : index
    %149 = vector.load %arg20[%c0_89, %c0_90] : memref<128x128xbf16, #tpu.memory_space<vmem>>, vector<128x128xbf16>
    %cst_91 = arith.constant dense<0.000000e+00> : vector<32x128xf32>
    %150 = tpu.matmul %148, %149, %cst_91 {dimension_numbers = #tpu.dot_dimension_numbers<[1], [0], [0], [1], [0, 0, 1, 1], [], []>} : vector<32x128xbf16>, vector<128x128xbf16>, vector<32x128xf32> -> vector<32x128xf32>
    %c0_92 = arith.constant 0 : index
    %c0_93 = arith.constant 0 : index
    %151 = vector.load %arg21[%c0_92, %c0_93] : memref<1x128xf32, #tpu.memory_space<vmem>>, vector<1x128xf32>
    %152 = vector.broadcast %151 : vector<1x128xf32> to vector<32x128xf32>
    %153 = arith.addf %150, %152 : vector<32x128xf32>
    %154 = arith.truncf %153 : vector<32x128xf32> to vector<32x128xbf16>
    %c0_94 = arith.constant 0 : index
    %c0_95 = arith.constant 0 : index
    %155 = vector.load %arg22[%c0_94, %c0_95] : memref<32x128xbf16, #tpu.memory_space<vmem>>, vector<32x128xbf16>
    tpu.vector_store %arg22[%c0_94, %c0_95], %154 {strides = array<i32>} : memref<32x128xbf16, #tpu.memory_space<vmem>>, vector<32x128xbf16>,
    return
  }
  func.func @transform_0(%arg0: i32) -> (i32, i32) {
    %c0_i32 = arith.constant 0 : i32
    %c0_i32_0 = arith.constant 0 : i32
    return %arg0, %c0_i32 : i32, i32
  }
  func.func @transform_1(%arg0: i32) -> (i32, i32) {
    %c0_i32 = arith.constant 0 : i32
    %c0_i32_0 = arith.constant 0 : i32
    return %arg0, %c0_i32 : i32, i32
  }
  func.func @transform_2(%arg0: i32) -> (i32, i32) {
    %c0_i32 = arith.constant 0 : i32
    %c0_i32_0 = arith.constant 0 : i32
    return %arg0, %c0_i32 : i32, i32
  }
  func.func @transform_3(%arg0: i32) -> (i32, i32) {
    %c0_i32 = arith.constant 0 : i32
    %c0_i32_0 = arith.constant 0 : i32
    %c0_i32_1 = arith.constant 0 : i32
    return %c0_i32, %c0_i32_0 : i32, i32
  }
  func.func @transform_4(%arg0: i32) -> (i32, i32) {
    %c0_i32 = arith.constant 0 : i32
    %c0_i32_0 = arith.constant 0 : i32
    %c0_i32_1 = arith.constant 0 : i32
    return %c0_i32, %c0_i32_0 : i32, i32
  }
  func.func @transform_5(%arg0: i32) -> (i32, i32) {
    %c0_i32 = arith.constant 0 : i32
    %c0_i32_0 = arith.constant 0 : i32
    %c0_i32_1 = arith.constant 0 : i32
    return %c0_i32, %c0_i32_0 : i32, i32
  }
  func.func @transform_6(%arg0: i32) -> (i32, i32) {
    %c0_i32 = arith.constant 0 : i32
    %c0_i32_0 = arith.constant 0 : i32
    %c0_i32_1 = arith.constant 0 : i32
    return %c0_i32, %c0_i32_0 : i32, i32
  }
  func.func @transform_7(%arg0: i32) -> (i32, i32) {
    %c0_i32 = arith.constant 0 : i32
    %c0_i32_0 = arith.constant 0 : i32
    %c0_i32_1 = arith.constant 0 : i32
    return %c0_i32, %c0_i32_0 : i32, i32
  }
  func.func @transform_8(%arg0: i32) -> (i32, i32) {
    %c0_i32 = arith.constant 0 : i32
    %c0_i32_0 = arith.constant 0 : i32
    %c0_i32_1 = arith.constant 0 : i32
    return %c0_i32, %c0_i32_0 : i32, i32
  }
  func.func @transform_9(%arg0: i32) -> (i32, i32) {
    %c0_i32 = arith.constant 0 : i32
    %c0_i32_0 = arith.constant 0 : i32
    %c0_i32_1 = arith.constant 0 : i32
    return %c0_i32, %c0_i32_0 : i32, i32
  }
  func.func @transform_10(%arg0: i32) -> (i32, i32) {
    %c0_i32 = arith.constant 0 : i32
    %c0_i32_0 = arith.constant 0 : i32
    %c0_i32_1 = arith.constant 0 : i32
    return %c0_i32, %c0_i32_0 : i32, i32
  }
  func.func @transform_11(%arg0: i32) -> (i32, i32) {
    %c0_i32 = arith.constant 0 : i32
    %c0_i32_0 = arith.constant 0 : i32
    %c0_i32_1 = arith.constant 0 : i32
    return %c0_i32, %c0_i32_0 : i32, i32
  }
  func.func @transform_12(%arg0: i32) -> (i32, i32) {
    %c0_i32 = arith.constant 0 : i32
    %c0_i32_0 = arith.constant 0 : i32
    %c0_i32_1 = arith.constant 0 : i32
    return %c0_i32, %c0_i32_0 : i32, i32
  }
  func.func @transform_13(%arg0: i32) -> (i32, i32) {
    %c0_i32 = arith.constant 0 : i32
    %c0_i32_0 = arith.constant 0 : i32
    %c0_i32_1 = arith.constant 0 : i32
    return %c0_i32, %c0_i32_0 : i32, i32
  }
  func.func @transform_14(%arg0: i32) -> (i32, i32) {
    %c0_i32 = arith.constant 0 : i32
    %c0_i32_0 = arith.constant 0 : i32
    %c0_i32_1 = arith.constant 0 : i32
    return %c0_i32, %c0_i32_0 : i32, i32
  }
  func.func @transform_15(%arg0: i32) -> (i32, i32) {
    %c0_i32 = arith.constant 0 : i32
    %c0_i32_0 = arith.constant 0 : i32
    %c0_i32_1 = arith.constant 0 : i32
    return %c0_i32, %c0_i32_0 : i32, i32
  }
  func.func @transform_16(%arg0: i32) -> (i32, i32) {
    %c0_i32 = arith.constant 0 : i32
    %c0_i32_0 = arith.constant 0 : i32
    %c0_i32_1 = arith.constant 0 : i32
    return %c0_i32, %c0_i32_0 : i32, i32
  }
  func.func @transform_17(%arg0: i32) -> (i32, i32) {
    %c0_i32 = arith.constant 0 : i32
    %c0_i32_0 = arith.constant 0 : i32
    %c0_i32_1 = arith.constant 0 : i32
    return %c0_i32, %c0_i32_0 : i32, i32
  }
  func.func @transform_18(%arg0: i32) -> (i32, i32) {
    %c0_i32 = arith.constant 0 : i32
    %c0_i32_0 = arith.constant 0 : i32
    %c0_i32_1 = arith.constant 0 : i32
    return %c0_i32, %c0_i32_0 : i32, i32
  }
  func.func @transform_19(%arg0: i32) -> (i32, i32) {
    %c0_i32 = arith.constant 0 : i32
    %c0_i32_0 = arith.constant 0 : i32
    %c0_i32_1 = arith.constant 0 : i32
    return %c0_i32, %c0_i32_0 : i32, i32
  }
  func.func @transform_20(%arg0: i32) -> (i32, i32) {
    %c0_i32 = arith.constant 0 : i32
    %c0_i32_0 = arith.constant 0 : i32
    %c0_i32_1 = arith.constant 0 : i32
    return %c0_i32, %c0_i32_0 : i32, i32
  }
  func.func @transform_21(%arg0: i32) -> (i32, i32) {
    %c0_i32 = arith.constant 0 : i32
    %c0_i32_0 = arith.constant 0 : i32
    return %arg0, %c0_i32 : i32, i32
  }
}

</mosaic_0001>

<llo_original>
// kernel: tpu_custom_call.1
$region0: #{tpu_custom_call.1}
  #allocation0 [shape = 'u32[]', space=smem, size = 0x4, offset = 0x4, fixed_abs, tag = 'smem constant byte address 0x4 - core index']
  #allocation1 [shape = 'u32[144,128]{1,0:T(1,128)}', space=vmem, size = 0x12000, scoped, tag = 'internal scratch']
  %s0 = inlined_call_operand.vmem [shape: f32[64,1], index: 0, kind: input, shape index: {}]
  %s1 = inlined_call_operand.vmem [shape: bf16[64,16], index: 1, kind: input, shape index: {}]
  %s2 = inlined_call_operand.hbm [shape: bf16[64,128], index: 2, kind: input, shape index: {}]
  %s3 = inlined_call_operand.hbm [shape: f32[1,128], index: 3, kind: input, shape index: {}]
  %s4 = inlined_call_operand.hbm [shape: f32[1,128], index: 4, kind: input, shape index: {}]
  %s5 = inlined_call_operand.hbm [shape: bf16[128,512], index: 5, kind: input, shape index: {}]
  %s6 = inlined_call_operand.hbm [shape: f32[1,512], index: 6, kind: input, shape index: {}]
  %s7 = inlined_call_operand.hbm [shape: bf16[512,128], index: 7, kind: input, shape index: {}]
  %s8 = inlined_call_operand.hbm [shape: f32[1,128], index: 8, kind: input, shape index: {}]
  %s9 = inlined_call_operand.hbm [shape: bf16[16,128], index: 9, kind: input, shape index: {}]
  %s10 = inlined_call_operand.hbm [shape: f32[1,128], index: 10, kind: input, shape index: {}]
  %s11 = inlined_call_operand.hbm [shape: bf16[128,128], index: 11, kind: input, shape index: {}]
  %s12 = inlined_call_operand.hbm [shape: f32[1,128], index: 12, kind: input, shape index: {}]
  %s13 = inlined_call_operand.vmem [shape: bf16[128,256], index: 13, kind: input, shape index: {}]
  %s14 = inlined_call_operand.hbm [shape: bf16[128,256], index: 14, kind: input, shape index: {}]
  %s15 = inlined_call_operand.hbm [shape: bf16[128,256], index: 15, kind: input, shape index: {}]
  %s16 = inlined_call_operand.vmem [shape: f32[1,256], index: 16, kind: input, shape index: {}]
  %s17 = inlined_call_operand.hbm [shape: bf16[256,128], index: 17, kind: input, shape index: {}]
  %s18 = inlined_call_operand.vmem [shape: f32[1,128], index: 18, kind: input, shape index: {}]
  %s19 = inlined_call_operand.hbm [shape: bf16[128,128], index: 19, kind: input, shape index: {}]
  %s20 = inlined_call_operand.vmem [shape: f32[1,128], index: 20, kind: input, shape index: {}]
  %s21 = inlined_call_operand.hbm [shape: bf16[64,128], index: 21, kind: output, shape index: {}]
  %s22 = sld [smem:[#allocation0]]
  $region177: #{tpu_custom_call.1} parent=0
    _
  %s24 = ssub.s32 1, %s22
  %s25 = scalar_select 0, %s24, %s22
  $region1: #{tpu_custom_call.1} parent=0
    #allocation2 [shape = 'u8[16384]{0}', space=vmem, size = 0x4000, scoped, tag = 'input window, operand 2']
    #allocation3 [shape = 's32[2]{0}', space=sflag, size = 0x8, scoped, tag = 'scoped memory for tpu_custom_call.1']
    #allocation4 [shape = 's32[2]{0}', space=sflag, size = 0x8, scoped, tag = 'scoped memory for tpu_custom_call.1']
    #allocation5 [shape = 'u8[512]{0}', space=vmem, size = 0x400, scoped, tag = 'input window, operand 3, single buffered']
    #allocation6 [shape = 's32[1]{0}', space=sflag, size = 0x4, scoped, tag = 'scoped memory for tpu_custom_call.1']
    #allocation7 [shape = 'u8[512]{0}', space=vmem, size = 0x400, scoped, tag = 'input window, operand 4, single buffered']
    #allocation8 [shape = 'u8[131072]{0}', space=vmem, size = 0x20000, scoped, tag = 'input window, operand 5, single buffered']
    #allocation9 [shape = 's32[1]{0}', space=sflag, size = 0x4, scoped, tag = 'scoped memory for tpu_custom_call.1']
    #allocation10 [shape = 'u8[2048]{0}', space=vmem, size = 0x800, scoped, tag = 'input window, operand 6, single buffered']
    #allocation11 [shape = 'u8[131072]{0}', space=vmem, size = 0x20000, scoped, tag = 'input window, operand 7, single buffered']
    #allocation12 [shape = 's32[1]{0}', space=sflag, size = 0x4, scoped, tag = 'scoped memory for tpu_custom_call.1']
    #allocation13 [shape = 'u8[512]{0}', space=vmem, size = 0x400, scoped, tag = 'input window, operand 8, single buffered']
    #allocation14 [shape = 'u8[4096]{0}', space=vmem, size = 0x1000, scoped, tag = 'input window, operand 9, single buffered']
    #allocation15 [shape = 's32[1]{0}', space=sflag, size = 0x4, scoped, tag = 'scoped memory for tpu_custom_call.1']
    #allocation16 [shape = 'u8[512]{0}', space=vmem, size = 0x400, scoped, tag = 'input window, operand 10, single buffered']
    #allocation17 [shape = 'u8[32768]{0}', space=vmem, size = 0x8000, scoped, tag = 'input window, operand 11, single buffered']
    #allocation18 [shape = 's32[1]{0}', space=sflag, size = 0x4, scoped, tag = 'scoped memory for tpu_custom_call.1']
    #allocation19 [shape = 'u8[512]{0}', space=vmem, size = 0x400, scoped, tag = 'input window, operand 12, single buffered']
    #allocation20 [shape = 'u8[65536]{0}', space=vmem, size = 0x10000, scoped, tag = 'input window, operand 14, single buffered']
    #allocation21 [shape = 's32[1]{0}', space=sflag, size = 0x4, scoped, tag = 'scoped memory for tpu_custom_call.1']
    #allocation22 [shape = 'u8[65536]{0}', space=vmem, size = 0x10000, scoped, tag = 'input window, operand 15, single buffered']
    #allocation23 [shape = 'u8[65536]{0}', space=vmem, size = 0x10000, scoped, tag = 'input window, operand 17, single buffered']
    #allocation24 [shape = 's32[1]{0}', space=sflag, size = 0x4, scoped, tag = 'scoped memory for tpu_custom_call.1']
    #allocation25 [shape = 'u8[32768]{0}', space=vmem, size = 0x8000, scoped, tag = 'input window, operand 19, single buffered']
    #allocation26 [shape = 'u8[16384]{0}', space=vmem, size = 0x4000, scoped, tag = 'output window, operand 0']
    %26 = vsyncpa [#allocation3], 0
    %s27 = scalar_lea.sflag [#allocation3], 1
    %28 = vsyncpa %s27, 0
    %29 = vsyncpa [#allocation6], 0
    %30 = vsyncpa [#allocation9], 0
    %31 = vsyncpa [#allocation12], 0
    %32 = vsyncpa [#allocation15], 0
    %33 = vsyncpa [#allocation18], 0
    %34 = vsyncpa [#allocation21], 0
    %35 = vsyncpa [#allocation24], 0
    %36 = vsyncpa [#allocation4], 0
    %s37 = scalar_lea.sflag [#allocation4], 1
    %38 = vsyncpa %s37, 0
    loop: start=0, step=1, limit=4
    $region2: #{tpu_custom_call.1} parent=1 // loop_pre_header
      _
    $region3: #{tpu_custom_call.1} parent=1 // loop_header
      %s40 = sphi 0, %s44
      %p41 = scmp.ge.s32.totalorder %s40, 4
      %s50 = sphi 0, %s52
      %s53 = sphi 0, %s50
      %s54 = sphi 0, %s53
      %s70 = sphi 0, %s54
      %s76 = sphi 0, %s78
      %s79 = sphi 0, %s76
      %s80 = sphi 0, %s79
      %s96 = sphi 0, %s80
      %s102 = sphi 0, %s104
      %s105 = sphi 0, %s102
      %s106 = sphi 0, %s105
      %s122 = sphi 0, %s106
      %s126 = sphi 0, %s126
      %s128 = sphi 0, %s126
      %s129 = sphi 0, %s128
      %s143 = sphi 0, %s129
      %s147 = sphi 0, %s147
      %s149 = sphi 0, %s147
      %s150 = sphi 0, %s149
      %s164 = sphi 0, %s150
      %s168 = sphi 0, %s168
      %s170 = sphi 0, %s168
      %s171 = sphi 0, %s170
      %s185 = sphi 0, %s171
      %s189 = sphi 0, %s189
      %s191 = sphi 0, %s189
      %s192 = sphi 0, %s191
      %s206 = sphi 0, %s192
      %s210 = sphi 0, %s210
      %s212 = sphi 0, %s210
      %s213 = sphi 0, %s212
      %s227 = sphi 0, %s213
      %s231 = sphi 0, %s231
      %s233 = sphi 0, %s231
      %s234 = sphi 0, %s233
      %s248 = sphi 0, %s234
      %s252 = sphi 0, %s252
      %s254 = sphi 0, %s252
      %s255 = sphi 0, %s254
      %s269 = sphi 0, %s255
      %s273 = sphi 0, %s273
      %s275 = sphi 0, %s273
      %s276 = sphi 0, %s275
      %s290 = sphi 0, %s276
      %s294 = sphi 0, %s294
      %s296 = sphi 0, %s294
      %s297 = sphi 0, %s296
      %s311 = sphi 0, %s297
      %s315 = sphi 0, %s315
      %s317 = sphi 0, %s315
      %s318 = sphi 0, %s317
      %s332 = sphi 0, %s318
      %s336 = sphi 0, %s336
      %s338 = sphi 0, %s336
      %s339 = sphi 0, %s338
      %s353 = sphi 0, %s339
      %s357 = sphi 0, %s357
      %s359 = sphi 0, %s357
      %s360 = sphi 0, %s359
      %s374 = sphi 0, %s360
      %s378 = sphi 0, %s378
      %s380 = sphi 0, %s378
      %s381 = sphi 0, %s380
      %s395 = sphi 0, %s381
      %s399 = sphi 0, %s399
      %s401 = sphi 0, %s399
      %s402 = sphi 0, %s401
      %s416 = sphi 0, %s402
      %s420 = sphi 0, %s420
      %s422 = sphi 0, %s420
      %s423 = sphi 0, %s422
      %s437 = sphi 0, %s423
      %s441 = sphi 0, %s441
      %s443 = sphi 0, %s441
      %s444 = sphi 0, %s443
      %s458 = sphi 0, %s444
      %s462 = sphi 0, %s462
      %s464 = sphi 0, %s462
      %s465 = sphi 0, %s464
      %s479 = sphi 0, %s465
      %s483 = sphi 0, %s483
      %s485 = sphi 0, %s483
      %s486 = sphi 0, %s485
      %s500 = sphi 0, %s486
      %s506 = sphi 0, %s508
      %s509 = sphi 0, %s506
      %s510 = sphi 0, %s509
      %s526 = sphi 0, %s510
    $region4: #{tpu_custom_call.1} parent=1 // loop_header_branch
      %43 = sbr.rel (%p41) target = $region8
    $region5: #{tpu_custom_call.1} parent=1 // loop_body
      %s45 = ssub.s32 %s40, 1
      %s46 = ssub.s32 %s40, 2
      %s47 = sadd.s32 %s40, 1
      %s48 = ssub.s32 %s40, %s47
      %p49 = scmp.eq.s32.totalorder %s48, 0
      %s51 = sadd.s32 %s50, 1
      %s52 = scalar_select %p49, %s50, %s51
      %p55 = pneg %p49
      %p56 = scmp.eq.s32.totalorder %s40, 1
      %p57 = por %p55, %p56
      %p58 = scmp.ne.s32.totalorder %s50, %s53
      %p59 = scmp.eq.s32.totalorder %s40, 0
      %p60 = por %p58, %p59
      %p61 = scmp.ne.s32.totalorder %s50, %s53
      %p62 = scmp.eq.s32.totalorder %s45, 1
      %p63 = por %p61, %p62
      %p64 = scmp.ne.s32.totalorder %s53, %s54
      %p65 = scmp.eq.s32.totalorder %s45, 0
      %p66 = por %p64, %p65
      %p67 = scmp.ne.s32.totalorder %s53, %s54
      %p68 = scmp.eq.s32.totalorder %s46, 1
      %p69 = por %p67, %p68
      %p71 = scmp.ne.s32.totalorder %s54, %s70
      %p72 = scmp.eq.s32.totalorder %s46, 0
      %p73 = por %p71, %p72
      %s74 = ssub.s32 %s40, %s47
      %p75 = scmp.eq.s32.totalorder %s74, 0
      %s77 = sadd.s32 %s76, 1
      %s78 = scalar_select %p75, %s76, %s77
      %p81 = pneg %p75
      %p82 = scmp.eq.s32.totalorder %s40, 1
      %p83 = por %p81, %p82
      %p84 = scmp.ne.s32.totalorder %s76, %s79
      %p85 = scmp.eq.s32.totalorder %s40, 0
      %p86 = por %p84, %p85
      %p87 = scmp.ne.s32.totalorder %s76, %s79
      %p88 = scmp.eq.s32.totalorder %s45, 1
      %p89 = por %p87, %p88
      %p90 = scmp.ne.s32.totalorder %s79, %s80
      %p91 = scmp.eq.s32.totalorder %s45, 0
      %p92 = por %p90, %p91
      %p93 = scmp.ne.s32.totalorder %s79, %s80
      %p94 = scmp.eq.s32.totalorder %s46, 1
      %p95 = por %p93, %p94
      %p97 = scmp.ne.s32.totalorder %s80, %s96
      %p98 = scmp.eq.s32.totalorder %s46, 0
      %p99 = por %p97, %p98
      %s100 = ssub.s32 %s40, %s47
      %p101 = scmp.eq.s32.totalorder %s100, 0
      %s103 = sadd.s32 %s102, 1
      %s104 = scalar_select %p101, %s102, %s103
      %p107 = pneg %p101
      %p108 = scmp.eq.s32.totalorder %s40, 1
      %p109 = por %p107, %p108
      %p110 = scmp.ne.s32.totalorder %s102, %s105
      %p111 = scmp.eq.s32.totalorder %s40, 0
      %p112 = por %p110, %p111
      %p113 = scmp.ne.s32.totalorder %s102, %s105
      %p114 = scmp.eq.s32.totalorder %s45, 1
      %p115 = por %p113, %p114
      %p116 = scmp.ne.s32.totalorder %s105, %s106
      %p117 = scmp.eq.s32.totalorder %s45, 0
      %p118 = por %p116, %p117
      %p119 = scmp.ne.s32.totalorder %s105, %s106
      %p120 = scmp.eq.s32.totalorder %s46, 1
      %p121 = por %p119, %p120
      %p123 = scmp.ne.s32.totalorder %s106, %s122
      %p124 = scmp.eq.s32.totalorder %s46, 0
      %p125 = por %p123, %p124
      %s127 = sadd.s32 %s126, 1
      %p130 = scmp.eq.s32.totalorder %s40, 1
      %p131 = scmp.ne.s32.totalorder %s126, %s128
      %p132 = scmp.eq.s32.totalorder %s40, 0
      %p133 = por %p131, %p132
      %p134 = scmp.ne.s32.totalorder %s126, %s128
      %p135 = scmp.eq.s32.totalorder %s45, 1
      %p136 = por %p134, %p135
      %p137 = scmp.ne.s32.totalorder %s128, %s129
      %p138 = scmp.eq.s32.totalorder %s45, 0
      %p139 = por %p137, %p138
      %p140 = scmp.ne.s32.totalorder %s128, %s129
      %p141 = scmp.eq.s32.totalorder %s46, 1
      %p142 = por %p140, %p141
      %p144 = scmp.ne.s32.totalorder %s129, %s143
      %p145 = scmp.eq.s32.totalorder %s46, 0
      %p146 = por %p144, %p145
      %s148 = sadd.s32 %s147, 1
      %p151 = scmp.eq.s32.totalorder %s40, 1
      %p152 = scmp.ne.s32.totalorder %s147, %s149
      %p153 = scmp.eq.s32.totalorder %s40, 0
      %p154 = por %p152, %p153
      %p155 = scmp.ne.s32.totalorder %s147, %s149
      %p156 = scmp.eq.s32.totalorder %s45, 1
      %p157 = por %p155, %p156
      %p158 = scmp.ne.s32.totalorder %s149, %s150
      %p159 = scmp.eq.s32.totalorder %s45, 0
      %p160 = por %p158, %p159
      %p161 = scmp.ne.s32.totalorder %s149, %s150
      %p162 = scmp.eq.s32.totalorder %s46, 1
      %p163 = por %p161, %p162
      %p165 = scmp.ne.s32.totalorder %s150, %s164
      %p166 = scmp.eq.s32.totalorder %s46, 0
      %p167 = por %p165, %p166
      %s169 = sadd.s32 %s168, 1
      %p172 = scmp.eq.s32.totalorder %s40, 1
      %p173 = scmp.ne.s32.totalorder %s168, %s170
      %p174 = scmp.eq.s32.totalorder %s40, 0
      %p175 = por %p173, %p174
      %p176 = scmp.ne.s32.totalorder %s168, %s170
      %p177 = scmp.eq.s32.totalorder %s45, 1
      %p178 = por %p176, %p177
      %p179 = scmp.ne.s32.totalorder %s170, %s171
      %p180 = scmp.eq.s32.totalorder %s45, 0
      %p181 = por %p179, %p180
      %p182 = scmp.ne.s32.totalorder %s170, %s171
      %p183 = scmp.eq.s32.totalorder %s46, 1
      %p184 = por %p182, %p183
      %p186 = scmp.ne.s32.totalorder %s171, %s185
      %p187 = scmp.eq.s32.totalorder %s46, 0
      %p188 = por %p186, %p187
      %s190 = sadd.s32 %s189, 1
      %p193 = scmp.eq.s32.totalorder %s40, 1
      %p194 = scmp.ne.s32.totalorder %s189, %s191
      %p195 = scmp.eq.s32.totalorder %s40, 0
      %p196 = por %p194, %p195
      %p197 = scmp.ne.s32.totalorder %s189, %s191
      %p198 = scmp.eq.s32.totalorder %s45, 1
      %p199 = por %p197, %p198
      %p200 = scmp.ne.s32.totalorder %s191, %s192
      %p201 = scmp.eq.s32.totalorder %s45, 0
      %p202 = por %p200, %p201
      %p203 = scmp.ne.s32.totalorder %s191, %s192
      %p204 = scmp.eq.s32.totalorder %s46, 1
      %p205 = por %p203, %p204
      %p207 = scmp.ne.s32.totalorder %s192, %s206
      %p208 = scmp.eq.s32.totalorder %s46, 0
      %p209 = por %p207, %p208
      %s211 = sadd.s32 %s210, 1
      %p214 = scmp.eq.s32.totalorder %s40, 1
      %p215 = scmp.ne.s32.totalorder %s210, %s212
      %p216 = scmp.eq.s32.totalorder %s40, 0
      %p217 = por %p215, %p216
      %p218 = scmp.ne.s32.totalorder %s210, %s212
      %p219 = scmp.eq.s32.totalorder %s45, 1
      %p220 = por %p218, %p219
      %p221 = scmp.ne.s32.totalorder %s212, %s213
      %p222 = scmp.eq.s32.totalorder %s45, 0
      %p223 = por %p221, %p222
      %p224 = scmp.ne.s32.totalorder %s212, %s213
      %p225 = scmp.eq.s32.totalorder %s46, 1
      %p226 = por %p224, %p225
      %p228 = scmp.ne.s32.totalorder %s213, %s227
      %p229 = scmp.eq.s32.totalorder %s46, 0
      %p230 = por %p228, %p229
      %s232 = sadd.s32 %s231, 1
      %p235 = scmp.eq.s32.totalorder %s40, 1
      %p236 = scmp.ne.s32.totalorder %s231, %s233
      %p237 = scmp.eq.s32.totalorder %s40, 0
      %p238 = por %p236, %p237
      %p239 = scmp.ne.s32.totalorder %s231, %s233
      %p240 = scmp.eq.s32.totalorder %s45, 1
      %p241 = por %p239, %p240
      %p242 = scmp.ne.s32.totalorder %s233, %s234
      %p243 = scmp.eq.s32.totalorder %s45, 0
      %p244 = por %p242, %p243
      %p245 = scmp.ne.s32.totalorder %s233, %s234
      %p246 = scmp.eq.s32.totalorder %s46, 1
      %p247 = por %p245, %p246
      %p249 = scmp.ne.s32.totalorder %s234, %s248
      %p250 = scmp.eq.s32.totalorder %s46, 0
      %p251 = por %p249, %p250
      %s253 = sadd.s32 %s252, 1
      %p256 = scmp.eq.s32.totalorder %s40, 1
      %p257 = scmp.ne.s32.totalorder %s252, %s254
      %p258 = scmp.eq.s32.totalorder %s40, 0
      %p259 = por %p257, %p258
      %p260 = scmp.ne.s32.totalorder %s252, %s254
      %p261 = scmp.eq.s32.totalorder %s45, 1
      %p262 = por %p260, %p261
      %p263 = scmp.ne.s32.totalorder %s254, %s255
      %p264 = scmp.eq.s32.totalorder %s45, 0
      %p265 = por %p263, %p264
      %p266 = scmp.ne.s32.totalorder %s254, %s255
      %p267 = scmp.eq.s32.totalorder %s46, 1
      %p268 = por %p266, %p267
      %p270 = scmp.ne.s32.totalorder %s255, %s269
      %p271 = scmp.eq.s32.totalorder %s46, 0
      %p272 = por %p270, %p271
      %s274 = sadd.s32 %s273, 1
      %p277 = scmp.eq.s32.totalorder %s40, 1
      %p278 = scmp.ne.s32.totalorder %s273, %s275
      %p279 = scmp.eq.s32.totalorder %s40, 0
      %p280 = por %p278, %p279
      %p281 = scmp.ne.s32.totalorder %s273, %s275
      %p282 = scmp.eq.s32.totalorder %s45, 1
      %p283 = por %p281, %p282
      %p284 = scmp.ne.s32.totalorder %s275, %s276
      %p285 = scmp.eq.s32.totalorder %s45, 0
      %p286 = por %p284, %p285
      %p287 = scmp.ne.s32.totalorder %s275, %s276
      %p288 = scmp.eq.s32.totalorder %s46, 1
      %p289 = por %p287, %p288
      %p291 = scmp.ne.s32.totalorder %s276, %s290
      %p292 = scmp.eq.s32.totalorder %s46, 0
      %p293 = por %p291, %p292
      %s295 = sadd.s32 %s294, 1
      %p298 = scmp.eq.s32.totalorder %s40, 1
      %p299 = scmp.ne.s32.totalorder %s294, %s296
      %p300 = scmp.eq.s32.totalorder %s40, 0
      %p301 = por %p299, %p300
      %p302 = scmp.ne.s32.totalorder %s294, %s296
      %p303 = scmp.eq.s32.totalorder %s45, 1
      %p304 = por %p302, %p303
      %p305 = scmp.ne.s32.totalorder %s296, %s297
      %p306 = scmp.eq.s32.totalorder %s45, 0
      %p307 = por %p305, %p306
      %p308 = scmp.ne.s32.totalorder %s296, %s297
      %p309 = scmp.eq.s32.totalorder %s46, 1
      %p310 = por %p308, %p309
      %p312 = scmp.ne.s32.totalorder %s297, %s311
      %p313 = scmp.eq.s32.totalorder %s46, 0
      %p314 = por %p312, %p313
      %s316 = sadd.s32 %s315, 1
      %p319 = scmp.eq.s32.totalorder %s40, 1
      %p320 = scmp.ne.s32.totalorder %s315, %s317
      %p321 = scmp.eq.s32.totalorder %s40, 0
      %p322 = por %p320, %p321
      %p323 = scmp.ne.s32.totalorder %s315, %s317
      %p324 = scmp.eq.s32.totalorder %s45, 1
      %p325 = por %p323, %p324
      %p326 = scmp.ne.s32.totalorder %s317, %s318
      %p327 = scmp.eq.s32.totalorder %s45, 0
      %p328 = por %p326, %p327
      %p329 = scmp.ne.s32.totalorder %s317, %s318
      %p330 = scmp.eq.s32.totalorder %s46, 1
      %p331 = por %p329, %p330
      %p333 = scmp.ne.s32.totalorder %s318, %s332
      %p334 = scmp.eq.s32.totalorder %s46, 0
      %p335 = por %p333, %p334
      %s337 = sadd.s32 %s336, 1
      %p340 = scmp.eq.s32.totalorder %s40, 1
      %p341 = scmp.ne.s32.totalorder %s336, %s338
      %p342 = scmp.eq.s32.totalorder %s40, 0
      %p343 = por %p341, %p342
      %p344 = scmp.ne.s32.totalorder %s336, %s338
      %p345 = scmp.eq.s32.totalorder %s45, 1
      %p346 = por %p344, %p345
      %p347 = scmp.ne.s32.totalorder %s338, %s339
      %p348 = scmp.eq.s32.totalorder %s45, 0
      %p349 = por %p347, %p348
      %p350 = scmp.ne.s32.totalorder %s338, %s339
      %p351 = scmp.eq.s32.totalorder %s46, 1
      %p352 = por %p350, %p351
      %p354 = scmp.ne.s32.totalorder %s339, %s353
      %p355 = scmp.eq.s32.totalorder %s46, 0
      %p356 = por %p354, %p355
      %s358 = sadd.s32 %s357, 1
      %p361 = scmp.eq.s32.totalorder %s40, 1
      %p362 = scmp.ne.s32.totalorder %s357, %s359
      %p363 = scmp.eq.s32.totalorder %s40, 0
      %p364 = por %p362, %p363
      %p365 = scmp.ne.s32.totalorder %s357, %s359
      %p366 = scmp.eq.s32.totalorder %s45, 1
      %p367 = por %p365, %p366
      %p368 = scmp.ne.s32.totalorder %s359, %s360
      %p369 = scmp.eq.s32.totalorder %s45, 0
      %p370 = por %p368, %p369
      %p371 = scmp.ne.s32.totalorder %s359, %s360
      %p372 = scmp.eq.s32.totalorder %s46, 1
      %p373 = por %p371, %p372
      %p375 = scmp.ne.s32.totalorder %s360, %s374
      %p376 = scmp.eq.s32.totalorder %s46, 0
      %p377 = por %p375, %p376
      %s379 = sadd.s32 %s378, 1
      %p382 = scmp.eq.s32.totalorder %s40, 1
      %p383 = scmp.ne.s32.totalorder %s378, %s380
      %p384 = scmp.eq.s32.totalorder %s40, 0
      %p385 = por %p383, %p384
      %p386 = scmp.ne.s32.totalorder %s378, %s380
      %p387 = scmp.eq.s32.totalorder %s45, 1
      %p388 = por %p386, %p387
      %p389 = scmp.ne.s32.totalorder %s380, %s381
      %p390 = scmp.eq.s32.totalorder %s45, 0
      %p391 = por %p389, %p390
      %p392 = scmp.ne.s32.totalorder %s380, %s381
      %p393 = scmp.eq.s32.totalorder %s46, 1
      %p394 = por %p392, %p393
      %p396 = scmp.ne.s32.totalorder %s381, %s395
      %p397 = scmp.eq.s32.totalorder %s46, 0
      %p398 = por %p396, %p397
      %s400 = sadd.s32 %s399, 1
      %p403 = scmp.eq.s32.totalorder %s40, 1
      %p404 = scmp.ne.s32.totalorder %s399, %s401
      %p405 = scmp.eq.s32.totalorder %s40, 0
      %p406 = por %p404, %p405
      %p407 = scmp.ne.s32.totalorder %s399, %s401
      %p408 = scmp.eq.s32.totalorder %s45, 1
      %p409 = por %p407, %p408
      %p410 = scmp.ne.s32.totalorder %s401, %s402
      %p411 = scmp.eq.s32.totalorder %s45, 0
      %p412 = por %p410, %p411
      %p413 = scmp.ne.s32.totalorder %s401, %s402
      %p414 = scmp.eq.s32.totalorder %s46, 1
      %p415 = por %p413, %p414
      %p417 = scmp.ne.s32.totalorder %s402, %s416
      %p418 = scmp.eq.s32.totalorder %s46, 0
      %p419 = por %p417, %p418
      %s421 = sadd.s32 %s420, 1
      %p424 = scmp.eq.s32.totalorder %s40, 1
      %p425 = scmp.ne.s32.totalorder %s420, %s422
      %p426 = scmp.eq.s32.totalorder %s40, 0
      %p427 = por %p425, %p426
      %p428 = scmp.ne.s32.totalorder %s420, %s422
      %p429 = scmp.eq.s32.totalorder %s45, 1
      %p430 = por %p428, %p429
      %p431 = scmp.ne.s32.totalorder %s422, %s423
      %p432 = scmp.eq.s32.totalorder %s45, 0
      %p433 = por %p431, %p432
      %p434 = scmp.ne.s32.totalorder %s422, %s423
      %p435 = scmp.eq.s32.totalorder %s46, 1
      %p436 = por %p434, %p435
      %p438 = scmp.ne.s32.totalorder %s423, %s437
      %p439 = scmp.eq.s32.totalorder %s46, 0
      %p440 = por %p438, %p439
      %s442 = sadd.s32 %s441, 1
      %p445 = scmp.eq.s32.totalorder %s40, 1
      %p446 = scmp.ne.s32.totalorder %s441, %s443
      %p447 = scmp.eq.s32.totalorder %s40, 0
      %p448 = por %p446, %p447
      %p449 = scmp.ne.s32.totalorder %s441, %s443
      %p450 = scmp.eq.s32.totalorder %s45, 1
      %p451 = por %p449, %p450
      %p452 = scmp.ne.s32.totalorder %s443, %s444
      %p453 = scmp.eq.s32.totalorder %s45, 0
      %p454 = por %p452, %p453
      %p455 = scmp.ne.s32.totalorder %s443, %s444
      %p456 = scmp.eq.s32.totalorder %s46, 1
      %p457 = por %p455, %p456
      %p459 = scmp.ne.s32.totalorder %s444, %s458
      %p460 = scmp.eq.s32.totalorder %s46, 0
      %p461 = por %p459, %p460
      %s463 = sadd.s32 %s462, 1
      %p466 = scmp.eq.s32.totalorder %s40, 1
      %p467 = scmp.ne.s32.totalorder %s462, %s464
      %p468 = scmp.eq.s32.totalorder %s40, 0
      %p469 = por %p467, %p468
      %p470 = scmp.ne.s32.totalorder %s462, %s464
      %p471 = scmp.eq.s32.totalorder %s45, 1
      %p472 = por %p470, %p471
      %p473 = scmp.ne.s32.totalorder %s464, %s465
      %p474 = scmp.eq.s32.totalorder %s45, 0
      %p475 = por %p473, %p474
      %p476 = scmp.ne.s32.totalorder %s464, %s465
      %p477 = scmp.eq.s32.totalorder %s46, 1
      %p478 = por %p476, %p477
      %p480 = scmp.ne.s32.totalorder %s465, %s479
      %p481 = scmp.eq.s32.totalorder %s46, 0
      %p482 = por %p480, %p481
      %s484 = sadd.s32 %s483, 1
      %p487 = scmp.eq.s32.totalorder %s40, 1
      %p488 = scmp.ne.s32.totalorder %s483, %s485
      %p489 = scmp.eq.s32.totalorder %s40, 0
      %p490 = por %p488, %p489
      %p491 = scmp.ne.s32.totalorder %s483, %s485
      %p492 = scmp.eq.s32.totalorder %s45, 1
      %p493 = por %p491, %p492
      %p494 = scmp.ne.s32.totalorder %s485, %s486
      %p495 = scmp.eq.s32.totalorder %s45, 0
      %p496 = por %p494, %p495
      %p497 = scmp.ne.s32.totalorder %s485, %s486
      %p498 = scmp.eq.s32.totalorder %s46, 1
      %p499 = por %p497, %p498
      %p501 = scmp.ne.s32.totalorder %s486, %s500
      %p502 = scmp.eq.s32.totalorder %s46, 0
      %p503 = por %p501, %p502
      %s504 = ssub.s32 %s40, %s47
      %p505 = scmp.eq.s32.totalorder %s504, 0
      %s507 = sadd.s32 %s506, 1
      %s508 = scalar_select %p505, %s506, %s507
      %p511 = pneg %p505
      %p512 = scmp.eq.s32.totalorder %s40, 1
      %p513 = por %p511, %p512
      %p514 = scmp.ne.s32.totalorder %s506, %s509
      %p515 = scmp.eq.s32.totalorder %s40, 0
      %p516 = por %p514, %p515
      %p517 = scmp.ne.s32.totalorder %s506, %s509
      %p518 = scmp.eq.s32.totalorder %s45, 1
      %p519 = por %p517, %p518
      %p520 = scmp.ne.s32.totalorder %s509, %s510
      %p521 = scmp.eq.s32.totalorder %s45, 0
      %p522 = por %p520, %p521
      %p523 = scmp.ne.s32.totalorder %s509, %s510
      %p524 = scmp.eq.s32.totalorder %s46, 1
      %p525 = por %p523, %p524
      %p527 = scmp.ne.s32.totalorder %s510, %s526
      %p528 = scmp.eq.s32.totalorder %s46, 0
      %p529 = por %p527, %p528
      %p530 = scmp.le.s32.totalorder 1, %s40
      %p531 = scmp.lt.s32.totalorder %s40, 3
      %p532 = pnand %p530, %p531
      %p533 = pneg %p532
      // Predicated region
      $region9: #{tpu_custom_call.1} parent=5 // pred_check
        _
      $region10: #{tpu_custom_call.1} parent=5 // pred_check_branch
        %535 = sbr.rel (%p532) target = $region12
      $region11: #{tpu_custom_call.1} parent=5 // pred_region
        %s536 = ssub.s32 %s40, 1
        // Predicated region
        $region13: #{tpu_custom_call.1} parent=11 // pred_check
          %p537 = pneg %p139
        $region14: #{tpu_custom_call.1} parent=11 // pred_check_branch
          %539 = sbr.rel (%p537) target = $region16
        $region15: #{tpu_custom_call.1} parent=11 // pred_region
          %s541 = ssub.s32 16, 16
          %542 = vsyncadd [#allocation6], %s541
          %s544 = sshll.u32 [#allocation5], 4
          %s545 = int_to_ptr.vmem [resolvable:$true] %s544
          %547 = dma.hbm_to_vmem [thread:$0]  %s3, 16, %s545, [#allocation6]
        $region16: #{tpu_custom_call.1} parent=11 // pred_fallthru
          _
        // Predicated region
        $region17: #{tpu_custom_call.1} parent=11 // pred_check
          %p548 = pneg %p160
        $region18: #{tpu_custom_call.1} parent=11 // pred_check_branch
          %550 = sbr.rel (%p548) target = $region20
        $region19: #{tpu_custom_call.1} parent=11 // pred_region
          %s552 = ssub.s32 16, 16
          %553 = vsyncadd [#allocation6], %s552
          %s555 = sshll.u32 [#allocation7], 4
          %s556 = int_to_ptr.vmem [resolvable:$true] %s555
          %558 = dma.hbm_to_vmem [thread:$0]  %s4, 16, %s556, [#allocation6]
        $region20: #{tpu_custom_call.1} parent=11 // pred_fallthru
          _
        // Predicated region
        $region21: #{tpu_custom_call.1} parent=11 // pred_check
          %p559 = pneg %p181
        $region22: #{tpu_custom_call.1} parent=11 // pred_check_branch
          %561 = sbr.rel (%p559) target = $region24
        $region23: #{tpu_custom_call.1} parent=11 // pred_region
          %s563 = ssub.s32 4096, 4096
          %564 = vsyncadd [#allocation9], %s563
          %s565 = sshll.u32 [#allocation8], 4
          %s566 = int_to_ptr.vmem [resolvable:$true] %s565
          %571 = dma.hbm_to_vmem [thread:$0]  %s5, 4096, %s566, [#allocation9], 256, 256, 16
        $region24: #{tpu_custom_call.1} parent=11 // pred_fallthru
          _
        // Predicated region
        $region25: #{tpu_custom_call.1} parent=11 // pred_check
          %p572 = pneg %p202
        $region26: #{tpu_custom_call.1} parent=11 // pred_check_branch
          %574 = sbr.rel (%p572) target = $region28
        $region27: #{tpu_custom_call.1} parent=11 // pred_region
          %s576 = ssub.s32 64, 64
          %577 = vsyncadd [#allocation9], %s576
          %s579 = sshll.u32 [#allocation10], 4
          %s580 = int_to_ptr.vmem [resolvable:$true] %s579
          %582 = dma.hbm_to_vmem [thread:$0]  %s6, 64, %s580, [#allocation9]
        $region28: #{tpu_custom_call.1} parent=11 // pred_fallthru
          _
        // Predicated region
        $region29: #{tpu_custom_call.1} parent=11 // pred_check
          %p583 = pneg %p223
        $region30: #{tpu_custom_call.1} parent=11 // pred_check_branch
          %585 = sbr.rel (%p583) target = $region32
        $region31: #{tpu_custom_call.1} parent=11 // pred_region
          %s587 = ssub.s32 4096, 4096
          %588 = vsyncadd [#allocation12], %s587
          %s589 = sshll.u32 [#allocation11], 4
          %s590 = int_to_ptr.vmem [resolvable:$true] %s589
          %595 = dma.hbm_to_vmem [thread:$0]  %s7, 4096, %s590, [#allocation12], 64, 64, 4
        $region32: #{tpu_custom_call.1} parent=11 // pred_fallthru
          _
        // Predicated region
        $region33: #{tpu_custom_call.1} parent=11 // pred_check
          %p596 = pneg %p244
        $region34: #{tpu_custom_call.1} parent=11 // pred_check_branch
          %598 = sbr.rel (%p596) target = $region36
        $region35: #{tpu_custom_call.1} parent=11 // pred_region
          %s600 = ssub.s32 16, 16
          %601 = vsyncadd [#allocation12], %s600
          %s603 = sshll.u32 [#allocation13], 4
          %s604 = int_to_ptr.vmem [resolvable:$true] %s603
          %606 = dma.hbm_to_vmem [thread:$0]  %s8, 16, %s604, [#allocation12]
        $region36: #{tpu_custom_call.1} parent=11 // pred_fallthru
          _
        // Predicated region
        $region37: #{tpu_custom_call.1} parent=11 // pred_check
          %p607 = pneg %p265
        $region38: #{tpu_custom_call.1} parent=11 // pred_check_branch
          %609 = sbr.rel (%p607) target = $region40
        $region39: #{tpu_custom_call.1} parent=11 // pred_region
          %s611 = ssub.s32 128, 128
          %612 = vsyncadd [#allocation15], %s611
          %s613 = sshll.u32 [#allocation14], 4
          %s614 = int_to_ptr.vmem [resolvable:$true] %s613
          %619 = dma.hbm_to_vmem [thread:$0]  %s9, 128, %s614, [#allocation15], 64, 64, 4
        $region40: #{tpu_custom_call.1} parent=11 // pred_fallthru
          _
        // Predicated region
        $region41: #{tpu_custom_call.1} parent=11 // pred_check
          %p620 = pneg %p286
        $region42: #{tpu_custom_call.1} parent=11 // pred_check_branch
          %622 = sbr.rel (%p620) target = $region44
        $region43: #{tpu_custom_call.1} parent=11 // pred_region
          %s624 = ssub.s32 16, 16
          %625 = vsyncadd [#allocation15], %s624
          %s627 = sshll.u32 [#allocation16], 4
          %s628 = int_to_ptr.vmem [resolvable:$true] %s627
          %630 = dma.hbm_to_vmem [thread:$0]  %s10, 16, %s628, [#allocation15]
        $region44: #{tpu_custom_call.1} parent=11 // pred_fallthru
          _
        // Predicated region
        $region45: #{tpu_custom_call.1} parent=11 // pred_check
          %p631 = pneg %p307
        $region46: #{tpu_custom_call.1} parent=11 // pred_check_branch
          %633 = sbr.rel (%p631) target = $region48
        $region47: #{tpu_custom_call.1} parent=11 // pred_region
          %s635 = ssub.s32 1024, 1024
          %636 = vsyncadd [#allocation18], %s635
          %s637 = sshll.u32 [#allocation17], 4
          %s638 = int_to_ptr.vmem [resolvable:$true] %s637
          %643 = dma.hbm_to_vmem [thread:$0]  %s11, 1024, %s638, [#allocation18], 64, 64, 4
        $region48: #{tpu_custom_call.1} parent=11 // pred_fallthru
          _
        // Predicated region
        $region49: #{tpu_custom_call.1} parent=11 // pred_check
          %p644 = pneg %p328
        $region50: #{tpu_custom_call.1} parent=11 // pred_check_branch
          %646 = sbr.rel (%p644) target = $region52
        $region51: #{tpu_custom_call.1} parent=11 // pred_region
          %s648 = ssub.s32 16, 16
          %649 = vsyncadd [#allocation18], %s648
          %s651 = sshll.u32 [#allocation19], 4
          %s652 = int_to_ptr.vmem [resolvable:$true] %s651
          %654 = dma.hbm_to_vmem [thread:$0]  %s12, 16, %s652, [#allocation18]
        $region52: #{tpu_custom_call.1} parent=11 // pred_fallthru
          _
        // Predicated region
        $region53: #{tpu_custom_call.1} parent=11 // pred_check
          %p655 = pneg %p349
        $region54: #{tpu_custom_call.1} parent=11 // pred_check_branch
          %657 = sbr.rel (%p655) target = $region56
        $region55: #{tpu_custom_call.1} parent=11 // pred_region
          _
        $region56: #{tpu_custom_call.1} parent=11 // pred_fallthru
          _
        // Predicated region
        $region57: #{tpu_custom_call.1} parent=11 // pred_check
          %p658 = pneg %p370
        $region58: #{tpu_custom_call.1} parent=11 // pred_check_branch
          %660 = sbr.rel (%p658) target = $region60
        $region59: #{tpu_custom_call.1} parent=11 // pred_region
          %s662 = ssub.s32 2048, 2048
          %663 = vsyncadd [#allocation21], %s662
          %s664 = sshll.u32 [#allocation20], 4
          %s665 = int_to_ptr.vmem [resolvable:$true] %s664
          %670 = dma.hbm_to_vmem [thread:$0]  %s14, 2048, %s665, [#allocation21], 128, 128, 8
        $region60: #{tpu_custom_call.1} parent=11 // pred_fallthru
          _
        // Predicated region
        $region61: #{tpu_custom_call.1} parent=11 // pred_check
          %p671 = pneg %p391
        $region62: #{tpu_custom_call.1} parent=11 // pred_check_branch
          %673 = sbr.rel (%p671) target = $region64
        $region63: #{tpu_custom_call.1} parent=11 // pred_region
          %s675 = ssub.s32 2048, 2048
          %676 = vsyncadd [#allocation21], %s675
          %s677 = sshll.u32 [#allocation22], 4
          %s678 = int_to_ptr.vmem [resolvable:$true] %s677
          %683 = dma.hbm_to_vmem [thread:$0]  %s15, 2048, %s678, [#allocation21], 128, 128, 8
        $region64: #{tpu_custom_call.1} parent=11 // pred_fallthru
          _
        // Predicated region
        $region65: #{tpu_custom_call.1} parent=11 // pred_check
          %p684 = pneg %p412
        $region66: #{tpu_custom_call.1} parent=11 // pred_check_branch
          %686 = sbr.rel (%p684) target = $region68
        $region67: #{tpu_custom_call.1} parent=11 // pred_region
          _
        $region68: #{tpu_custom_call.1} parent=11 // pred_fallthru
          _
        // Predicated region
        $region69: #{tpu_custom_call.1} parent=11 // pred_check
          %p687 = pneg %p433
        $region70: #{tpu_custom_call.1} parent=11 // pred_check_branch
          %689 = sbr.rel (%p687) target = $region72
        $region71: #{tpu_custom_call.1} parent=11 // pred_region
          %s691 = ssub.s32 2048, 2048
          %692 = vsyncadd [#allocation24], %s691
          %s693 = sshll.u32 [#allocation23], 4
          %s694 = int_to_ptr.vmem [resolvable:$true] %s693
          %699 = dma.hbm_to_vmem [thread:$0]  %s17, 2048, %s694, [#allocation24], 64, 64, 4
        $region72: #{tpu_custom_call.1} parent=11 // pred_fallthru
          _
        // Predicated region
        $region73: #{tpu_custom_call.1} parent=11 // pred_check
          %p700 = pneg %p454
        $region74: #{tpu_custom_call.1} parent=11 // pred_check_branch
          %702 = sbr.rel (%p700) target = $region76
        $region75: #{tpu_custom_call.1} parent=11 // pred_region
          _
        $region76: #{tpu_custom_call.1} parent=11 // pred_fallthru
          _
        // Predicated region
        $region77: #{tpu_custom_call.1} parent=11 // pred_check
          %p703 = pneg %p475
        $region78: #{tpu_custom_call.1} parent=11 // pred_check_branch
          %705 = sbr.rel (%p703) target = $region80
        $region79: #{tpu_custom_call.1} parent=11 // pred_region
          %s707 = ssub.s32 1024, 1024
          %708 = vsyncadd [#allocation24], %s707
          %s709 = sshll.u32 [#allocation25], 4
          %s710 = int_to_ptr.vmem [resolvable:$true] %s709
          %715 = dma.hbm_to_vmem [thread:$0]  %s19, 1024, %s710, [#allocation24], 64, 64, 4
        $region80: #{tpu_custom_call.1} parent=11 // pred_fallthru
          _
        // Predicated region
        $region81: #{tpu_custom_call.1} parent=11 // pred_check
          %p716 = pneg %p496
        $region82: #{tpu_custom_call.1} parent=11 // pred_check_branch
          %718 = sbr.rel (%p716) target = $region84
        $region83: #{tpu_custom_call.1} parent=11 // pred_region
          _
        $region84: #{tpu_custom_call.1} parent=11 // pred_fallthru
          _
      $region12: #{tpu_custom_call.1} parent=5 // pred_fallthru
        _
      %p719 = scmp.lt.s32.totalorder %s40, 2
      // Predicated region
      $region85: #{tpu_custom_call.1} parent=5 // pred_check
        %p720 = pneg %p719
      $region86: #{tpu_custom_call.1} parent=5 // pred_check_branch
        %722 = sbr.rel (%p720) target = $region88
      $region87: #{tpu_custom_call.1} parent=5 // pred_region
        // Predicated region
        $region89: #{tpu_custom_call.1} parent=87 // pred_check
          %p723 = pneg %p60
        $region90: #{tpu_custom_call.1} parent=87 // pred_check_branch
          %725 = sbr.rel (%p723) target = $region92
        $region91: #{tpu_custom_call.1} parent=87 // pred_region
          %s726 = smul.u32 4, %s40
          %p727 = scmp.lt.s32.totalorder %s726, 7
          %s728 = scalar_select %p727, %s726, 7
          %s729 = smul.addr %s728, 8
          %s730 = scalar_lea.vmem %s0, %s729
          %s731 = smul.u32 4, %s40
        $region92: #{tpu_custom_call.1} parent=87 // pred_fallthru
          _
        // Predicated region
        $region93: #{tpu_custom_call.1} parent=87 // pred_check
          %p732 = pneg %p86
        $region94: #{tpu_custom_call.1} parent=87 // pred_check_branch
          %734 = sbr.rel (%p732) target = $region96
        $region95: #{tpu_custom_call.1} parent=87 // pred_region
          %s735 = smul.u32 4, %s40
          %p736 = scmp.lt.s32.totalorder %s735, 7
          %s737 = scalar_select %p736, %s735, 7
          %s738 = smul.addr %s737, 4
          %s739 = scalar_lea.vmem %s1, %s738
          %s740 = smul.u32 4, %s40
        $region96: #{tpu_custom_call.1} parent=87 // pred_fallthru
          _
        // Predicated region
        $region97: #{tpu_custom_call.1} parent=87 // pred_check
          %p741 = pneg %p112
        $region98: #{tpu_custom_call.1} parent=87 // pred_check_branch
          %743 = sbr.rel (%p741) target = $region100
        $region99: #{tpu_custom_call.1} parent=87 // pred_region
          %s744 = sand.u32 %s102, 1
          %s745 = scalar_lea.sflag [#allocation3], %s744
          %s746 = sand.u32 %s102, 1
          %s747 = smul.addr %s746, 16
          %s748 = scalar_lea.vmem [#allocation2], %s747
          %s749 = smul.u32 4, %s40
          %s751 = ssub.s32 256, 256
          %752 = vsyncadd %s745, %s751
          %s753 = smul.addr %s749, 64
          %s754 = scalar_lea.hbm %s2, %s753
          %s755 = sshll.u32 %s748, 4
          %s756 = int_to_ptr.vmem [resolvable:$true] %s755
          %761 = dma.hbm_to_vmem [thread:$0]  %s754, 256, %s756, %s745, 64, 64, 4
        $region100: #{tpu_custom_call.1} parent=87 // pred_fallthru
          _
      $region88: #{tpu_custom_call.1} parent=5 // pred_fallthru
        _
      %p762 = scmp.le.s32.totalorder 1, %s40
      %p763 = scmp.lt.s32.totalorder %s40, 3
      %p764 = pnand %p762, %p763
      %p765 = pneg %p764
      // Predicated region
      $region101: #{tpu_custom_call.1} parent=5 // pred_check
        _
      $region102: #{tpu_custom_call.1} parent=5 // pred_check_branch
        %767 = sbr.rel (%p764) target = $region104
      $region103: #{tpu_custom_call.1} parent=5 // pred_region
        %s768 = ssub.s32 %s40, 1
        %s769 = sand.u32 %s105, 1
        %s770 = scalar_lea.sflag [#allocation3], %s769
        %s771 = sand.u32 %s105, 1
        %s772 = smul.addr %s771, 16
        %s773 = scalar_lea.vmem [#allocation2], %s772
        // Predicated region
        $region105: #{tpu_custom_call.1} parent=103 // pred_check
          %p774 = pneg %p118
        $region106: #{tpu_custom_call.1} parent=103 // pred_check_branch
          %776 = sbr.rel (%p774) target = $region108
        $region107: #{tpu_custom_call.1} parent=103 // pred_region
          %777 = dma.done %s770, 256
        $region108: #{tpu_custom_call.1} parent=103 // pred_fallthru
          _
        // Predicated region
        $region109: #{tpu_custom_call.1} parent=103 // pred_check
          %p778 = pneg %p139
        $region110: #{tpu_custom_call.1} parent=103 // pred_check_branch
          %780 = sbr.rel (%p778) target = $region112
        $region111: #{tpu_custom_call.1} parent=103 // pred_region
          %781 = dma.done [#allocation6], 16
        $region112: #{tpu_custom_call.1} parent=103 // pred_fallthru
          _
        // Predicated region
        $region113: #{tpu_custom_call.1} parent=103 // pred_check
          %p782 = pneg %p160
        $region114: #{tpu_custom_call.1} parent=103 // pred_check_branch
          %784 = sbr.rel (%p782) target = $region116
        $region115: #{tpu_custom_call.1} parent=103 // pred_region
          %785 = dma.done [#allocation6], 16
        $region116: #{tpu_custom_call.1} parent=103 // pred_fallthru
          _
        // Predicated region
        $region117: #{tpu_custom_call.1} parent=103 // pred_check
          %p786 = pneg %p181
        $region118: #{tpu_custom_call.1} parent=103 // pred_check_branch
          %788 = sbr.rel (%p786) target = $region120
        $region119: #{tpu_custom_call.1} parent=103 // pred_region
          %789 = dma.done [#allocation9], 4096
        $region120: #{tpu_custom_call.1} parent=103 // pred_fallthru
          _
        // Predicated region
        $region121: #{tpu_custom_call.1} parent=103 // pred_check
          %p790 = pneg %p202
        $region122: #{tpu_custom_call.1} parent=103 // pred_check_branch
          %792 = sbr.rel (%p790) target = $region124
        $region123: #{tpu_custom_call.1} parent=103 // pred_region
          %793 = dma.done [#allocation9], 64
        $region124: #{tpu_custom_call.1} parent=103 // pred_fallthru
          _
        // Predicated region
        $region125: #{tpu_custom_call.1} parent=103 // pred_check
          %p794 = pneg %p223
        $region126: #{tpu_custom_call.1} parent=103 // pred_check_branch
          %796 = sbr.rel (%p794) target = $region128
        $region127: #{tpu_custom_call.1} parent=103 // pred_region
          %797 = dma.done [#allocation12], 4096
        $region128: #{tpu_custom_call.1} parent=103 // pred_fallthru
          _
        // Predicated region
        $region129: #{tpu_custom_call.1} parent=103 // pred_check
          %p798 = pneg %p244
        $region130: #{tpu_custom_call.1} parent=103 // pred_check_branch
          %800 = sbr.rel (%p798) target = $region132
        $region131: #{tpu_custom_call.1} parent=103 // pred_region
          %801 = dma.done [#allocation12], 16
        $region132: #{tpu_custom_call.1} parent=103 // pred_fallthru
          _
        // Predicated region
        $region133: #{tpu_custom_call.1} parent=103 // pred_check
          %p802 = pneg %p265
        $region134: #{tpu_custom_call.1} parent=103 // pred_check_branch
          %804 = sbr.rel (%p802) target = $region136
        $region135: #{tpu_custom_call.1} parent=103 // pred_region
          %805 = dma.done [#allocation15], 128
        $region136: #{tpu_custom_call.1} parent=103 // pred_fallthru
          _
        // Predicated region
        $region137: #{tpu_custom_call.1} parent=103 // pred_check
          %p806 = pneg %p286
        $region138: #{tpu_custom_call.1} parent=103 // pred_check_branch
          %808 = sbr.rel (%p806) target = $region140
        $region139: #{tpu_custom_call.1} parent=103 // pred_region
          %809 = dma.done [#allocation15], 16
        $region140: #{tpu_custom_call.1} parent=103 // pred_fallthru
          _
        // Predicated region
        $region141: #{tpu_custom_call.1} parent=103 // pred_check
          %p810 = pneg %p307
        $region142: #{tpu_custom_call.1} parent=103 // pred_check_branch
          %812 = sbr.rel (%p810) target = $region144
        $region143: #{tpu_custom_call.1} parent=103 // pred_region
          %813 = dma.done [#allocation18], 1024
        $region144: #{tpu_custom_call.1} parent=103 // pred_fallthru
          _
        // Predicated region
        $region145: #{tpu_custom_call.1} parent=103 // pred_check
          %p814 = pneg %p328
        $region146: #{tpu_custom_call.1} parent=103 // pred_check_branch
          %816 = sbr.rel (%p814) target = $region148
        $region147: #{tpu_custom_call.1} parent=103 // pred_region
          %817 = dma.done [#allocation18], 16
        $region148: #{tpu_custom_call.1} parent=103 // pred_fallthru
          _
        // Predicated region
        $region149: #{tpu_custom_call.1} parent=103 // pred_check
          %p818 = pneg %p370
        $region150: #{tpu_custom_call.1} parent=103 // pred_check_branch
          %820 = sbr.rel (%p818) target = $region152
        $region151: #{tpu_custom_call.1} parent=103 // pred_region
          %821 = dma.done [#allocation21], 2048
        $region152: #{tpu_custom_call.1} parent=103 // pred_fallthru
          _
        // Predicated region
        $region153: #{tpu_custom_call.1} parent=103 // pred_check
          %p822 = pneg %p391
        $region154: #{tpu_custom_call.1} parent=103 // pred_check_branch
          %824 = sbr.rel (%p822) target = $region156
        $region155: #{tpu_custom_call.1} parent=103 // pred_region
          %825 = dma.done [#allocation21], 2048
        $region156: #{tpu_custom_call.1} parent=103 // pred_fallthru
          _
        // Predicated region
        $region157: #{tpu_custom_call.1} parent=103 // pred_check
          %p826 = pneg %p433
        $region158: #{tpu_custom_call.1} parent=103 // pred_check_branch
          %828 = sbr.rel (%p826) target = $region160
        $region159: #{tpu_custom_call.1} parent=103 // pred_region
          %829 = dma.done [#allocation24], 2048
        $region160: #{tpu_custom_call.1} parent=103 // pred_fallthru
          _
        // Predicated region
        $region161: #{tpu_custom_call.1} parent=103 // pred_check
          %p830 = pneg %p475
        $region162: #{tpu_custom_call.1} parent=103 // pred_check_branch
          %832 = sbr.rel (%p830) target = $region164
        $region163: #{tpu_custom_call.1} parent=103 // pred_region
          %833 = dma.done [#allocation24], 1024
        $region164: #{tpu_custom_call.1} parent=103 // pred_fallthru
          _
        %s834 = smul.u32 4, %s45
        %p835 = scmp.lt.s32.totalorder %s834, 7
        %s836 = scalar_select %p835, %s834, 7
        %s837 = smul.addr %s836, 8
        %s838 = scalar_lea.vmem %s0, %s837
        %p839 = pneg %p66
        %p840 = pneg %p63
        %s841 = smul.u32 4, %s45
        %p842 = scmp.lt.s32.totalorder %s841, 7
        %s843 = scalar_select %p842, %s841, 7
        %s844 = smul.addr %s843, 4
        %s845 = scalar_lea.vmem %s1, %s844
        %p846 = pneg %p92
        %p847 = pneg %p89
        %s848 = sand.u32 %s105, 1
        %s849 = scalar_lea.sflag [#allocation3], %s848
        %s850 = sand.u32 %s105, 1
        %s851 = smul.addr %s850, 16
        %s852 = scalar_lea.vmem [#allocation2], %s851
        %p853 = pneg %p118
        %p854 = pneg %p115
        %p855 = pneg %p139
        %p856 = pneg %p136
        %p857 = pneg %p160
        %p858 = pneg %p157
        %p859 = pneg %p181
        %p860 = pneg %p178
        %p861 = pneg %p202
        %p862 = pneg %p199
        %p863 = pneg %p223
        %p864 = pneg %p220
        %p865 = pneg %p244
        %p866 = pneg %p241
        %p867 = pneg %p265
        %p868 = pneg %p262
        %p869 = pneg %p286
        %p870 = pneg %p283
        %p871 = pneg %p307
        %p872 = pneg %p304
        %p873 = pneg %p328
        %p874 = pneg %p325
        %p875 = pneg %p349
        %p876 = pneg %p346
        %p877 = pneg %p370
        %p878 = pneg %p367
        %p879 = pneg %p391
        %p880 = pneg %p388
        %p881 = pneg %p412
        %p882 = pneg %p409
        %p883 = pneg %p433
        %p884 = pneg %p430
        %p885 = pneg %p454
        %p886 = pneg %p451
        %p887 = pneg %p475
        %p888 = pneg %p472
        %p889 = pneg %p496
        %p890 = pneg %p493
        %p891 = pneg %p522
        %p892 = pneg %p519
        %s893 = sand.u32 %s509, 1
        %s894 = scalar_lea.sflag [#allocation4], %s893
        %s895 = sand.u32 %s509, 1
        %s896 = smul.addr %s895, 16
        %s897 = scalar_lea.vmem [#allocation26], %s896
        %s898 = smul.u32 4, %s45
        %p899 = scmp.lt.s32.totalorder %s898, 7
        %s900 = scalar_select %p899, %s898, 7
        %s901 = smul.addr %s900, 8
        %s902 = scalar_lea.vmem %s0, %s901
        %s903 = smul.u32 4, %s45
        %s904 = smul.u32 4, %s45
        %p905 = scmp.lt.s32.totalorder %s904, 7
        %s906 = scalar_select %p905, %s904, 7
        %s907 = smul.addr %s906, 4
        %s908 = scalar_lea.vmem %s1, %s907
        %s909 = smul.u32 4, %s45
        %s910 = smul.u32 4, %s45
        %s911 = smul.u32 4, %s45
        %v913 = vld [vmem:[%s902] sm:$0xff]
        %v914 = vld [vmem:[%s902 + $0x8] sm:$0xff]
        %v915 = vld [vmem:[%s902 + $0x10] sm:$0xff]
        %v916 = vld [vmem:[%s902 + $0x18] sm:$0xff]
        %v917 = vld [vmem:[#allocation5] sm:$0x1]
        %919 = vset.pattern.permute.xlu0 0
        %920 = vperm.xlu0 %919, %v913
        %v921 = vpop.permute.xlu0 %920
        %924 = vset.pattern.permute.xlu0 0
        %925 = vperm.xlu0 %924, %v914
        %v926 = vpop.permute.xlu0 %925
        %929 = vset.pattern.permute.xlu0 0
        %930 = vperm.xlu0 %929, %v915
        %v931 = vpop.permute.xlu0 %930
        %934 = vset.pattern.permute.xlu0 0
        %935 = vperm.xlu0 %934, %v916
        %v936 = vpop.permute.xlu0 %935
        %v939 = vlaneseq
        %v940 = vshrl.u32 %v939, 7
        %v941 = vsub.s32 0, %v940
        %v942 = vrot.slane %v917, %v941
        %v944 = vmul.f32 %v921, %v942
        %v945 = vmul.f32 %v926, %v942
        %v946 = vmul.f32 %v931, %v942
        %v947 = vmul.f32 %v936, %v942
        %v948 = vld [vmem:[#allocation7] sm:$0x1]
        %v950 = vlaneseq
        %v951 = vshrl.u32 %v950, 7
        %v952 = vsub.s32 0, %v951
        %v953 = vrot.slane %v948, %v952
        %v955 = vadd.f32 %v944, %v953
        %v956 = vadd.f32 %v945, %v953
        %v957 = vadd.f32 %v946, %v953
        %v958 = vadd.f32 %v947, %v953
        %v959 = vand.u32 2147483647, %v955
        %vm960 = vcmp.le.f32.partialorder %v959, 0.7853982
        %vm961 = vcmp.lt.s32.totalorder %v955, 0
        %v962 = vand.u32 %v955, 2139095040
        %v963 = vshrl.u32 %v962, 23
        %v964 = vsub.s32 %v963, 127
        %v965 = vand.u32 2147483647, %v955
        %v966 = vand.u32 %v965, 8388607
        %v967 = vor.u32 %v966, 8388608
        %v968 = vsub.s32 0, %v967
        %v969 = vadd.s32 %v964, 1
        %vm970 = vcmp.gt.s32.totalorder %v969, 0
        %v971 = vsel %vm970, %v969, 0
        %v972 = vshrl.u32 %v971, 5
        %v973 = vand.u32 %v971, 31
        %v974 = vsub.s32 32, %v973
        %v975 = vshrl.u32 683565275, %v974
        %v976 = vshll.u32 683565275, %v973
        %v977 = vshrl.u32 2475754826, %v974
        %v978 = vor.u32 %v976, %v977
        %v979 = vshll.u32 2475754826, %v973
        %v980 = vshrl.u32 2131351028, %v974
        %v981 = vor.u32 %v979, %v980
        %v982 = vshll.u32 2131351028, %v973
        %v983 = vshrl.u32 2102212464, %v974
        %v984 = vor.u32 %v982, %v983
        %v985 = vshll.u32 2102212464, %v973
        %v986 = vshrl.u32 920167782, %v974
        %v987 = vor.u32 %v985, %v986
        %v988 = vshll.u32 920167782, %v973
        %v989 = vshrl.u32 1326507024, %v974
        %v990 = vor.u32 %v988, %v989
        %vm991 = vcmp.lt.s32.totalorder %v972, 1
        %vm992 = vcmp.lt.s32.totalorder %v972, 2
        %vm993 = vcmp.lt.s32.totalorder %v972, 3
        %vm994 = vcmp.lt.s32.totalorder %v972, 4
        %v995 = vsel %vm991, %v975, %v978
        %v996 = vsel %vm994, %v984, 2102212464
        %v997 = vsel %vm993, %v981, %v996
        %v998 = vsel %vm992, %v995, %v997
        %v999 = vsel %vm991, %v978, %v981
        %v1000 = vsel %vm994, %v987, 920167782
        %v1001 = vsel %vm993, %v984, %v1000
        %v1002 = vsel %vm992, %v999, %v1001
        %v1003 = vsel %vm991, %v981, %v984
        %v1004 = vsel %vm994, %v990, 1326507024
        %v1005 = vsel %vm993, %v987, %v1004
        %v1006 = vsel %vm992, %v1003, %v1005
        %v1007 = vshll.u32 %v967, 8
        %v1008 = vmul.u32.u64.compose %v1007, %v1006
        %v1009 = vextract.low.u32 %v1008
        %v1010 = vextract.high.u32 %v1008
        %v1011 = vmul.u32.u64.compose %v1007, %v1002
        %v1012 = vextract.low.u32 %v1011
        %v1013 = vextract.high.u32 %v1011
        %v1014 = vmul.u32 %v1007, %v998
        %v1015 = vadd.s32 %v1010, %v1012
        %vm1016 = vc.u32 %v1010, %v1012
        %v1017 = vadd.s32 %v1013, 1
        %v1018 = vsel %vm1016, %v1017, %v1013
        %v1019 = vadd.s32 %v1014, %v1018
        %v1020 = vadd.s32 %v1019, 536870912
        %v1021 = vshrl.u32 %v1020, 30
        %v1022 = vshll.u32 %v1021, 30
        %v1023 = vsub.s32 %v1019, %v1022
        %vm1024 = vcmp.lt.s32.totalorder %v1023, 0
        %v1025 = vsub.s32 0, %v1023
        %v1026 = vsel %vm1024, %v1025, %v1023
        %v1027 = vclz %v1026
        %v1028 = vsub.s32 %v1027, 2
        %vm1029 = vcmp.gt.s32.totalorder 0, %v1028
        %v1030 = vsel %vm1029, 0, %v1028
        %v1031 = vsub.s32 32, %v1030
        %v1032 = vshll.u32 %v1023, %v1030
        %v1033 = vshrl.u32 %v1015, %v1031
        %v1034 = vor.u32 %v1032, %v1033
        %v1035 = vsub.s32 4294967266, %v1030
        %v1036 = vadd.s32 %v1035, 127
        %v1037 = vshll.u32 %v1036, 23
        %v1038 = vor.u32 4788187, %v1037
        %v1039 = vand.u32 2147483647, %v1038
        %v1041 = vcvt.s32.f32 %v1034
        %v1042 = vmul.f32 %v1041, %v1039
        %v1043 = vxor.u32 %v1042, 2147483648
        %v1044 = vsel %vm961, %v1043, %v1042
        %v1045 = vsub.s32 4, %v1021
        %v1046 = vsel %vm961, %v1045, %v1021
        %v1047 = vsel %vm960, %v955, %v1044
        %v1048 = vsel %vm960, 0, %v1046
        %v1049 = vcosq.f32.pop %v1047
        %v1050 = vsinq.f32.pop %v1047
        %vm1051 = vweird.f32 %v955
        %v1052 = vadd.s32 %v1048, 3
        %v1053 = vand.u32 %v1052, 3
        %vm1054 = vcmp.lt.s32.totalorder %v1053, 2
        %vm1055 = vcmp.eq.s32.totalorder %v1053, 0
        %v1056 = vxor.u32 %v1050, 2147483648
        %v1057 = vsel %vm1055, %v1049, %v1056
        %vm1058 = vcmp.eq.s32.totalorder %v1053, 2
        %v1059 = vxor.u32 %v1049, 2147483648
        %v1060 = vsel %vm1058, %v1059, %v1050
        %v1061 = vsel %vm1054, %v1057, %v1060
        %v1062 = vsel %vm1051, nan, %v1061
        %v1063 = vand.u32 2147483647, %v956
        %vm1064 = vcmp.le.f32.partialorder %v1063, 0.7853982
        %vm1065 = vcmp.lt.s32.totalorder %v956, 0
        %v1066 = vand.u32 %v956, 2139095040
        %v1067 = vshrl.u32 %v1066, 23
        %v1068 = vsub.s32 %v1067, 127
        %v1069 = vand.u32 2147483647, %v956
        %v1070 = vand.u32 %v1069, 8388607
        %v1071 = vor.u32 %v1070, 8388608
        %v1072 = vsub.s32 0, %v1071
        %v1073 = vadd.s32 %v1068, 1
        %vm1074 = vcmp.gt.s32.totalorder %v1073, 0
        %v1075 = vsel %vm1074, %v1073, 0
        %v1076 = vshrl.u32 %v1075, 5
        %v1077 = vand.u32 %v1075, 31
        %v1078 = vsub.s32 32, %v1077
        %v1079 = vshrl.u32 683565275, %v1078
        %v1080 = vshll.u32 683565275, %v1077
        %v1081 = vshrl.u32 2475754826, %v1078
        %v1082 = vor.u32 %v1080, %v1081
        %v1083 = vshll.u32 2475754826, %v1077
        %v1084 = vshrl.u32 2131351028, %v1078
        %v1085 = vor.u32 %v1083, %v1084
        %v1086 = vshll.u32 2131351028, %v1077
        %v1087 = vshrl.u32 2102212464, %v1078
        %v1088 = vor.u32 %v1086, %v1087
        %v1089 = vshll.u32 2102212464, %v1077
        %v1090 = vshrl.u32 920167782, %v1078
        %v1091 = vor.u32 %v1089, %v1090
        %v1092 = vshll.u32 920167782, %v1077
        %v1093 = vshrl.u32 1326507024, %v1078
        %v1094 = vor.u32 %v1092, %v1093
        %vm1095 = vcmp.lt.s32.totalorder %v1076, 1
        %vm1096 = vcmp.lt.s32.totalorder %v1076, 2
        %vm1097 = vcmp.lt.s32.totalorder %v1076, 3
        %vm1098 = vcmp.lt.s32.totalorder %v1076, 4
        %v1099 = vsel %vm1095, %v1079, %v1082
        %v1100 = vsel %vm1098, %v1088, 2102212464
        %v1101 = vsel %vm1097, %v1085, %v1100
        %v1102 = vsel %vm1096, %v1099, %v1101
        %v1103 = vsel %vm1095, %v1082, %v1085
        %v1104 = vsel %vm1098, %v1091, 920167782
        %v1105 = vsel %vm1097, %v1088, %v1104
        %v1106 = vsel %vm1096, %v1103, %v1105
        %v1107 = vsel %vm1095, %v1085, %v1088
        %v1108 = vsel %vm1098, %v1094, 1326507024
        %v1109 = vsel %vm1097, %v1091, %v1108
        %v1110 = vsel %vm1096, %v1107, %v1109
        %v1111 = vshll.u32 %v1071, 8
        %v1112 = vmul.u32.u64.compose %v1111, %v1110
        %v1113 = vextract.low.u32 %v1112
        %v1114 = vextract.high.u32 %v1112
        %v1115 = vmul.u32.u64.compose %v1111, %v1106
        %v1116 = vextract.low.u32 %v1115
        %v1117 = vextract.high.u32 %v1115
        %v1118 = vmul.u32 %v1111, %v1102
        %v1119 = vadd.s32 %v1114, %v1116
        %vm1120 = vc.u32 %v1114, %v1116
        %v1121 = vadd.s32 %v1117, 1
        %v1122 = vsel %vm1120, %v1121, %v1117
        %v1123 = vadd.s32 %v1118, %v1122
        %v1124 = vadd.s32 %v1123, 536870912
        %v1125 = vshrl.u32 %v1124, 30
        %v1126 = vshll.u32 %v1125, 30
        %v1127 = vsub.s32 %v1123, %v1126
        %vm1128 = vcmp.lt.s32.totalorder %v1127, 0
        %v1129 = vsub.s32 0, %v1127
        %v1130 = vsel %vm1128, %v1129, %v1127
        %v1131 = vclz %v1130
        %v1132 = vsub.s32 %v1131, 2
        %vm1133 = vcmp.gt.s32.totalorder 0, %v1132
        %v1134 = vsel %vm1133, 0, %v1132
        %v1135 = vsub.s32 32, %v1134
        %v1136 = vshll.u32 %v1127, %v1134
        %v1137 = vshrl.u32 %v1119, %v1135
        %v1138 = vor.u32 %v1136, %v1137
        %v1139 = vsub.s32 4294967266, %v1134
        %v1140 = vadd.s32 %v1139, 127
        %v1141 = vshll.u32 %v1140, 23
        %v1142 = vor.u32 4788187, %v1141
        %v1143 = vand.u32 2147483647, %v1142
        %v1145 = vcvt.s32.f32 %v1138
        %v1146 = vmul.f32 %v1145, %v1143
        %v1147 = vxor.u32 %v1146, 2147483648
        %v1148 = vsel %vm1065, %v1147, %v1146
        %v1149 = vsub.s32 4, %v1125
        %v1150 = vsel %vm1065, %v1149, %v1125
        %v1151 = vsel %vm1064, %v956, %v1148
        %v1152 = vsel %vm1064, 0, %v1150
        %v1153 = vcosq.f32.pop %v1151
        %v1154 = vsinq.f32.pop %v1151
        %vm1155 = vweird.f32 %v956
        %v1156 = vadd.s32 %v1152, 3
        %v1157 = vand.u32 %v1156, 3
        %vm1158 = vcmp.lt.s32.totalorder %v1157, 2
        %vm1159 = vcmp.eq.s32.totalorder %v1157, 0
        %v1160 = vxor.u32 %v1154, 2147483648
        %v1161 = vsel %vm1159, %v1153, %v1160
        %vm1162 = vcmp.eq.s32.totalorder %v1157, 2
        %v1163 = vxor.u32 %v1153, 2147483648
        %v1164 = vsel %vm1162, %v1163, %v1154
        %v1165 = vsel %vm1158, %v1161, %v1164
        %v1166 = vsel %vm1155, nan, %v1165
        %v1167 = vand.u32 2147483647, %v957
        %vm1168 = vcmp.le.f32.partialorder %v1167, 0.7853982
        %vm1169 = vcmp.lt.s32.totalorder %v957, 0
        %v1170 = vand.u32 %v957, 2139095040
        %v1171 = vshrl.u32 %v1170, 23
        %v1172 = vsub.s32 %v1171, 127
        %v1173 = vand.u32 2147483647, %v957
        %v1174 = vand.u32 %v1173, 8388607
        %v1175 = vor.u32 %v1174, 8388608
        %v1176 = vsub.s32 0, %v1175
        %v1177 = vadd.s32 %v1172, 1
        %vm1178 = vcmp.gt.s32.totalorder %v1177, 0
        %v1179 = vsel %vm1178, %v1177, 0
        %v1180 = vshrl.u32 %v1179, 5
        %v1181 = vand.u32 %v1179, 31
        %v1182 = vsub.s32 32, %v1181
        %v1183 = vshrl.u32 683565275, %v1182
        %v1184 = vshll.u32 683565275, %v1181
        %v1185 = vshrl.u32 2475754826, %v1182
        %v1186 = vor.u32 %v1184, %v1185
        %v1187 = vshll.u32 2475754826, %v1181
        %v1188 = vshrl.u32 2131351028, %v1182
        %v1189 = vor.u32 %v1187, %v1188
        %v1190 = vshll.u32 2131351028, %v1181
        %v1191 = vshrl.u32 2102212464, %v1182
        %v1192 = vor.u32 %v1190, %v1191
        %v1193 = vshll.u32 2102212464, %v1181
        %v1194 = vshrl.u32 920167782, %v1182
        %v1195 = vor.u32 %v1193, %v1194
        %v1196 = vshll.u32 920167782, %v1181
        %v1197 = vshrl.u32 1326507024, %v1182
        %v1198 = vor.u32 %v1196, %v1197
        %vm1199 = vcmp.lt.s32.totalorder %v1180, 1
        %vm1200 = vcmp.lt.s32.totalorder %v1180, 2
        %vm1201 = vcmp.lt.s32.totalorder %v1180, 3
        %vm1202 = vcmp.lt.s32.totalorder %v1180, 4
        %v1203 = vsel %vm1199, %v1183, %v1186
        %v1204 = vsel %vm1202, %v1192, 2102212464
        %v1205 = vsel %vm1201, %v1189, %v1204
        %v1206 = vsel %vm1200, %v1203, %v1205
        %v1207 = vsel %vm1199, %v1186, %v1189
        %v1208 = vsel %vm1202, %v1195, 920167782
        %v1209 = vsel %vm1201, %v1192, %v1208
        %v1210 = vsel %vm1200, %v1207, %v1209
        %v1211 = vsel %vm1199, %v1189, %v1192
        %v1212 = vsel %vm1202, %v1198, 1326507024
        %v1213 = vsel %vm1201, %v1195, %v1212
        %v1214 = vsel %vm1200, %v1211, %v1213
        %v1215 = vshll.u32 %v1175, 8
        %v1216 = vmul.u32.u64.compose %v1215, %v1214
        %v1217 = vextract.low.u32 %v1216
        %v1218 = vextract.high.u32 %v1216
        %v1219 = vmul.u32.u64.compose %v1215, %v1210
        %v1220 = vextract.low.u32 %v1219
        %v1221 = vextract.high.u32 %v1219
        %v1222 = vmul.u32 %v1215, %v1206
        %v1223 = vadd.s32 %v1218, %v1220
        %vm1224 = vc.u32 %v1218, %v1220
        %v1225 = vadd.s32 %v1221, 1
        %v1226 = vsel %vm1224, %v1225, %v1221
        %v1227 = vadd.s32 %v1222, %v1226
        %v1228 = vadd.s32 %v1227, 536870912
        %v1229 = vshrl.u32 %v1228, 30
        %v1230 = vshll.u32 %v1229, 30
        %v1231 = vsub.s32 %v1227, %v1230
        %vm1232 = vcmp.lt.s32.totalorder %v1231, 0
        %v1233 = vsub.s32 0, %v1231
        %v1234 = vsel %vm1232, %v1233, %v1231
        %v1235 = vclz %v1234
        %v1236 = vsub.s32 %v1235, 2
        %vm1237 = vcmp.gt.s32.totalorder 0, %v1236
        %v1238 = vsel %vm1237, 0, %v1236
        %v1239 = vsub.s32 32, %v1238
        %v1240 = vshll.u32 %v1231, %v1238
        %v1241 = vshrl.u32 %v1223, %v1239
        %v1242 = vor.u32 %v1240, %v1241
        %v1243 = vsub.s32 4294967266, %v1238
        %v1244 = vadd.s32 %v1243, 127
        %v1245 = vshll.u32 %v1244, 23
        %v1246 = vor.u32 4788187, %v1245
        %v1247 = vand.u32 2147483647, %v1246
        %v1249 = vcvt.s32.f32 %v1242
        %v1250 = vmul.f32 %v1249, %v1247
        %v1251 = vxor.u32 %v1250, 2147483648
        %v1252 = vsel %vm1169, %v1251, %v1250
        %v1253 = vsub.s32 4, %v1229
        %v1254 = vsel %vm1169, %v1253, %v1229
        %v1255 = vsel %vm1168, %v957, %v1252
        %v1256 = vsel %vm1168, 0, %v1254
        %v1257 = vcosq.f32.pop %v1255
        %v1258 = vsinq.f32.pop %v1255
        %vm1259 = vweird.f32 %v957
        %v1260 = vadd.s32 %v1256, 3
        %v1261 = vand.u32 %v1260, 3
        %vm1262 = vcmp.lt.s32.totalorder %v1261, 2
        %vm1263 = vcmp.eq.s32.totalorder %v1261, 0
        %v1264 = vxor.u32 %v1258, 2147483648
        %v1265 = vsel %vm1263, %v1257, %v1264
        %vm1266 = vcmp.eq.s32.totalorder %v1261, 2
        %v1267 = vxor.u32 %v1257, 2147483648
        %v1268 = vsel %vm1266, %v1267, %v1258
        %v1269 = vsel %vm1262, %v1265, %v1268
        %v1270 = vsel %vm1259, nan, %v1269
        %v1271 = vand.u32 2147483647, %v958
        %vm1272 = vcmp.le.f32.partialorder %v1271, 0.7853982
        %vm1273 = vcmp.lt.s32.totalorder %v958, 0
        %v1274 = vand.u32 %v958, 2139095040
        %v1275 = vshrl.u32 %v1274, 23
        %v1276 = vsub.s32 %v1275, 127
        %v1277 = vand.u32 2147483647, %v958
        %v1278 = vand.u32 %v1277, 8388607
        %v1279 = vor.u32 %v1278, 8388608
        %v1280 = vsub.s32 0, %v1279
        %v1281 = vadd.s32 %v1276, 1
        %vm1282 = vcmp.gt.s32.totalorder %v1281, 0
        %v1283 = vsel %vm1282, %v1281, 0
        %v1284 = vshrl.u32 %v1283, 5
        %v1285 = vand.u32 %v1283, 31
        %v1286 = vsub.s32 32, %v1285
        %v1287 = vshrl.u32 683565275, %v1286
        %v1288 = vshll.u32 683565275, %v1285
        %v1289 = vshrl.u32 2475754826, %v1286
        %v1290 = vor.u32 %v1288, %v1289
        %v1291 = vshll.u32 2475754826, %v1285
        %v1292 = vshrl.u32 2131351028, %v1286
        %v1293 = vor.u32 %v1291, %v1292
        %v1294 = vshll.u32 2131351028, %v1285
        %v1295 = vshrl.u32 2102212464, %v1286
        %v1296 = vor.u32 %v1294, %v1295
        %v1297 = vshll.u32 2102212464, %v1285
        %v1298 = vshrl.u32 920167782, %v1286
        %v1299 = vor.u32 %v1297, %v1298
        %v1300 = vshll.u32 920167782, %v1285
        %v1301 = vshrl.u32 1326507024, %v1286
        %v1302 = vor.u32 %v1300, %v1301
        %vm1303 = vcmp.lt.s32.totalorder %v1284, 1
        %vm1304 = vcmp.lt.s32.totalorder %v1284, 2
        %vm1305 = vcmp.lt.s32.totalorder %v1284, 3
        %vm1306 = vcmp.lt.s32.totalorder %v1284, 4
        %v1307 = vsel %vm1303, %v1287, %v1290
        %v1308 = vsel %vm1306, %v1296, 2102212464
        %v1309 = vsel %vm1305, %v1293, %v1308
        %v1310 = vsel %vm1304, %v1307, %v1309
        %v1311 = vsel %vm1303, %v1290, %v1293
        %v1312 = vsel %vm1306, %v1299, 920167782
        %v1313 = vsel %vm1305, %v1296, %v1312
        %v1314 = vsel %vm1304, %v1311, %v1313
        %v1315 = vsel %vm1303, %v1293, %v1296
        %v1316 = vsel %vm1306, %v1302, 1326507024
        %v1317 = vsel %vm1305, %v1299, %v1316
        %v1318 = vsel %vm1304, %v1315, %v1317
        %v1319 = vshll.u32 %v1279, 8
        %v1320 = vmul.u32.u64.compose %v1319, %v1318
        %v1321 = vextract.low.u32 %v1320
        %v1322 = vextract.high.u32 %v1320
        %v1323 = vmul.u32.u64.compose %v1319, %v1314
        %v1324 = vextract.low.u32 %v1323
        %v1325 = vextract.high.u32 %v1323
        %v1326 = vmul.u32 %v1319, %v1310
        %v1327 = vadd.s32 %v1322, %v1324
        %vm1328 = vc.u32 %v1322, %v1324
        %v1329 = vadd.s32 %v1325, 1
        %v1330 = vsel %vm1328, %v1329, %v1325
        %v1331 = vadd.s32 %v1326, %v1330
        %v1332 = vadd.s32 %v1331, 536870912
        %v1333 = vshrl.u32 %v1332, 30
        %v1334 = vshll.u32 %v1333, 30
        %v1335 = vsub.s32 %v1331, %v1334
        %vm1336 = vcmp.lt.s32.totalorder %v1335, 0
        %v1337 = vsub.s32 0, %v1335
        %v1338 = vsel %vm1336, %v1337, %v1335
        %v1339 = vclz %v1338
        %v1340 = vsub.s32 %v1339, 2
        %vm1341 = vcmp.gt.s32.totalorder 0, %v1340
        %v1342 = vsel %vm1341, 0, %v1340
        %v1343 = vsub.s32 32, %v1342
        %v1344 = vshll.u32 %v1335, %v1342
        %v1345 = vshrl.u32 %v1327, %v1343
        %v1346 = vor.u32 %v1344, %v1345
        %v1347 = vsub.s32 4294967266, %v1342
        %v1348 = vadd.s32 %v1347, 127
        %v1349 = vshll.u32 %v1348, 23
        %v1350 = vor.u32 4788187, %v1349
        %v1351 = vand.u32 2147483647, %v1350
        %v1353 = vcvt.s32.f32 %v1346
        %v1354 = vmul.f32 %v1353, %v1351
        %v1355 = vxor.u32 %v1354, 2147483648
        %v1356 = vsel %vm1273, %v1355, %v1354
        %v1357 = vsub.s32 4, %v1333
        %v1358 = vsel %vm1273, %v1357, %v1333
        %v1359 = vsel %vm1272, %v958, %v1356
        %v1360 = vsel %vm1272, 0, %v1358
        %v1361 = vcosq.f32.pop %v1359
        %v1362 = vsinq.f32.pop %v1359
        %vm1363 = vweird.f32 %v958
        %v1364 = vadd.s32 %v1360, 3
        %v1365 = vand.u32 %v1364, 3
        %vm1366 = vcmp.lt.s32.totalorder %v1365, 2
        %vm1367 = vcmp.eq.s32.totalorder %v1365, 0
        %v1368 = vxor.u32 %v1362, 2147483648
        %v1369 = vsel %vm1367, %v1361, %v1368
        %vm1370 = vcmp.eq.s32.totalorder %v1365, 2
        %v1371 = vxor.u32 %v1361, 2147483648
        %v1372 = vsel %vm1370, %v1371, %v1362
        %v1373 = vsel %vm1366, %v1369, %v1372
        %v1374 = vsel %vm1363, nan, %v1373
        %v1375 = vpack.c.bf16 %v1166, %v1062
        %v1376 = vpack.c.bf16 %v1374, %v1270
        %v1377 = vld [vmem:[#allocation8] sm:$0xf]
        %v1378 = vld [vmem:[#allocation8 + $0x10] sm:$0xf]
        %v1379 = vld [vmem:[#allocation8 + $0x20] sm:$0xf]
        %v1380 = vld [vmem:[#allocation8 + $0x30] sm:$0xf]
        %v1381 = vld [vmem:[#allocation8 + $0x40] sm:$0xf]
        %v1382 = vld [vmem:[#allocation8 + $0x50] sm:$0xf]
        %v1383 = vld [vmem:[#allocation8 + $0x60] sm:$0xf]
        %v1384 = vld [vmem:[#allocation8 + $0x70] sm:$0xf]
        %v1385 = vld [vmem:[#allocation8 + $0x80] sm:$0xf]
        %v1386 = vld [vmem:[#allocation8 + $0x90] sm:$0xf]
        %v1387 = vld [vmem:[#allocation8 + $0xa0] sm:$0xf]
        %v1388 = vld [vmem:[#allocation8 + $0xb0] sm:$0xf]
        %v1389 = vld [vmem:[#allocation8 + $0xc0] sm:$0xf]
        %v1390 = vld [vmem:[#allocation8 + $0xd0] sm:$0xf]
        %v1391 = vld [vmem:[#allocation8 + $0xe0] sm:$0xf]
        %v1392 = vld [vmem:[#allocation8 + $0xf0] sm:$0xf]
        %v1393 = vld [vmem:[#allocation10] sm:$0x1]
        %v1395 = vlaneseq
        %v1396 = vshrl.u32 %v1395, 7
        %v1397 = vsub.s32 0, %v1396
        %v1398 = vrot.slane %v1393, %v1397
        %v1416 = vunpack.c.l.b16 %v1377
        %v1417 = vunpack.c.l.b16 %v1378
        %v1418 = vunpack.c.l.b16 %v1379
        %v1419 = vunpack.c.l.b16 %v1380
        %v1420 = vunpack.c.l.b16 %v1381
        %v1421 = vunpack.c.l.b16 %v1382
        %v1422 = vunpack.c.l.b16 %v1383
        %v1423 = vunpack.c.l.b16 %v1384
        %v1424 = vunpack.c.l.b16 %v1385
        %v1425 = vunpack.c.l.b16 %v1386
        %v1426 = vunpack.c.l.b16 %v1387
        %v1427 = vunpack.c.l.b16 %v1388
        %v1428 = vunpack.c.l.b16 %v1389
        %v1429 = vunpack.c.l.b16 %v1390
        %v1430 = vunpack.c.l.b16 %v1391
        %v1431 = vunpack.c.l.b16 %v1392
        %v1432 = vpack.c.b16 %v1417, %v1416
        %v1433 = vpack.c.b16 %v1419, %v1418
        %v1434 = vpack.c.b16 %v1421, %v1420
        %v1435 = vpack.c.b16 %v1423, %v1422
        %v1436 = vpack.c.b16 %v1425, %v1424
        %v1437 = vpack.c.b16 %v1427, %v1426
        %v1438 = vpack.c.b16 %v1429, %v1428
        %v1439 = vpack.c.b16 %v1431, %v1430
        %1448 = vmatprep.subr.bf16.mxu0 0
        %1449 = vmatpush1.bf16.msra.mxu0 %v1439
        %1450 = vmatprep.subr.bf16.mxu0 0
        %1451 = vmatpush1.bf16.msra.mxu0 %v1438
        %1452 = vmatprep.subr.bf16.mxu0 0
        %1453 = vmatpush1.bf16.msra.mxu0 %v1437
        %1454 = vmatprep.subr.bf16.mxu0 0
        %1455 = vmatpush1.bf16.msra.mxu0 %v1436
        %1456 = vmatprep.subr.bf16.mxu0 0
        %1457 = vmatpush1.bf16.msra.mxu0 %v1435
        %1458 = vmatprep.subr.bf16.mxu0 0
        %1459 = vmatpush1.bf16.msra.mxu0 %v1434
        %1460 = vmatprep.subr.bf16.mxu0 0
        %1461 = vmatpush1.bf16.msra.mxu0 %v1433
        %1462 = vmatprep.subr.bf16.mxu0 0
        %1463 = vmatpush1.bf16.msra.mxu0 %v1432
        %1464 = vmatprep.subr.bf16.mxu0 0
        %1465 = vmatpush2.bf16.msra.mxu0 0
        %1466 = vmatprep.subr.bf16.mxu0 0
        %1467 = vmatpush2.bf16.msra.mxu0 0
        %1468 = vmatprep.subr.bf16.mxu0 0
        %1469 = vmatpush2.bf16.msra.mxu0 0
        %1470 = vmatprep.subr.bf16.mxu0 0
        %1471 = vmatpush2.bf16.msra.mxu0 0
        %1472 = vmatprep.subr.bf16.mxu0 0
        %1473 = vmatpush2.bf16.msra.mxu0 0
        %1474 = vmatprep.subr.bf16.mxu0 0
        %1475 = vmatpush2.bf16.msra.mxu0 0
        %1476 = vmatprep.subr.bf16.mxu0 0
        %1477 = vmatpush2.bf16.msra.mxu0 0
        %1478 = vmatprep.subr.bf16.mxu0 0
        %1479 = vmatpush2.bf16.msra.mxu0 0
        %1480 = vmatprep.mubr.bf16.mxu0 0
        %1481 = vmatmul.mubr.bf16.gmra.mxu0 %v1375
        %v1482 = vpop.f32.mrf.mxu0
        %v1483 = vadd.f32 %v1398, %v1482
        %v1484 = vpop.f32.mrf.mxu0
        %v1485 = vpop.f32.mrf.mxu0
        %v1486 = vadd.f32 %v1398, %v1485
        %v1487 = vpop.f32.mrf.mxu0
        %1488 = vmatprep.mubr.bf16.mxu0 0
        %1489 = vmatmul.mubr.bf16.gmra.mxu0 %v1376
        %v1490 = vpop.f32.mrf.mxu0
        %v1491 = vadd.f32 %v1398, %v1490
        %v1492 = vpop.f32.mrf.mxu0
        %v1493 = vpop.f32.mrf.mxu0
        %v1494 = vadd.f32 %v1398, %v1493
        %v1495 = vpop.f32.mrf.mxu0
        %1496 = vdwg.mxu0
        %v1497 = vmin.f32 %v1483, 20.0
        %v1498 = vmin.f32 %v1486, 20.0
        %v1499 = vmin.f32 %v1491, 20.0
        %v1500 = vmin.f32 %v1494, 20.0
        %v1501 = vmul.f32 %v1497, 1.442695
        %v1502 = vpow.pop %v1501
        %v1503 = vmul.f32 %v1498, 1.442695
        %v1504 = vpow.pop %v1503
        %v1505 = vmul.f32 %v1499, 1.442695
        %v1506 = vpow.pop %v1505
        %v1507 = vmul.f32 %v1500, 1.442695
        %v1508 = vpow.pop %v1507
        %v1509 = vadd.f32 %v1502, 1.0
        %v1510 = vadd.f32 %v1504, 1.0
        %v1511 = vadd.f32 %v1506, 1.0
        %v1512 = vadd.f32 %v1508, 1.0
        %v1513 = vmul.f32 %v1509, %v1509
        %v1514 = vmul.f32 %v1510, %v1510
        %v1515 = vmul.f32 %v1511, %v1511
        %v1516 = vmul.f32 %v1512, %v1512
        %v1517 = vsub.f32 %v1513, 1.0
        %v1518 = vsub.f32 %v1514, 1.0
        %v1519 = vsub.f32 %v1515, 1.0
        %v1520 = vsub.f32 %v1516, 1.0
        %v1521 = vmul.f32 %v1483, %v1517
        %v1522 = vmul.f32 %v1486, %v1518
        %v1523 = vmul.f32 %v1491, %v1519
        %v1524 = vmul.f32 %v1494, %v1520
        %v1525 = vadd.f32 %v1513, 1.0
        %v1526 = vadd.f32 %v1514, 1.0
        %v1527 = vadd.f32 %v1515, 1.0
        %v1528 = vadd.f32 %v1516, 1.0
        %v1529 = vrcp.pop %v1525
        %v1530 = vrcp.pop %v1526
        %v1531 = vrcp.pop %v1527
        %v1532 = vrcp.pop %v1528
        %v1533 = vmul.f32 %v1521, %v1529
        %v1534 = vmul.f32 %v1522, %v1530
        %v1535 = vmul.f32 %v1523, %v1531
        %v1536 = vmul.f32 %v1524, %v1532
        %v1537 = vpack.c.bf16 %v1534, %v1533
        %v1538 = vpack.c.bf16 %v1536, %v1535
        %v1539 = vld [vmem:[#allocation11] sm:$0xf]
        %v1540 = vld [vmem:[#allocation11 + $0x4] sm:$0xf]
        %v1541 = vld [vmem:[#allocation11 + $0x8] sm:$0xf]
        %v1542 = vld [vmem:[#allocation11 + $0xc] sm:$0xf]
        %v1543 = vld [vmem:[#allocation11 + $0x10] sm:$0xf]
        %v1544 = vld [vmem:[#allocation11 + $0x14] sm:$0xf]
        %v1545 = vld [vmem:[#allocation11 + $0x18] sm:$0xf]
        %v1546 = vld [vmem:[#allocation11 + $0x1c] sm:$0xf]
        %v1547 = vld [vmem:[#allocation11 + $0x20] sm:$0xf]
        %v1548 = vld [vmem:[#allocation11 + $0x24] sm:$0xf]
        %v1549 = vld [vmem:[#allocation11 + $0x28] sm:$0xf]
        %v1550 = vld [vmem:[#allocation11 + $0x2c] sm:$0xf]
        %v1551 = vld [vmem:[#allocation11 + $0x30] sm:$0xf]
        %v1552 = vld [vmem:[#allocation11 + $0x34] sm:$0xf]
        %v1553 = vld [vmem:[#allocation11 + $0x38] sm:$0xf]
        %v1554 = vld [vmem:[#allocation11 + $0x3c] sm:$0xf]
        %v1555 = vld [vmem:[#allocation8 + $0x4] sm:$0xf]
        %v1556 = vld [vmem:[#allocation8 + $0x14] sm:$0xf]
        %v1557 = vld [vmem:[#allocation8 + $0x24] sm:$0xf]
        %v1558 = vld [vmem:[#allocation8 + $0x34] sm:$0xf]
        %v1559 = vld [vmem:[#allocation8 + $0x44] sm:$0xf]
        %v1560 = vld [vmem:[#allocation8 + $0x54] sm:$0xf]
        %v1561 = vld [vmem:[#allocation8 + $0x64] sm:$0xf]
        %v1562 = vld [vmem:[#allocation8 + $0x74] sm:$0xf]
        %v1563 = vld [vmem:[#allocation8 + $0x84] sm:$0xf]
        %v1564 = vld [vmem:[#allocation8 + $0x94] sm:$0xf]
        %v1565 = vld [vmem:[#allocation8 + $0xa4] sm:$0xf]
        %v1566 = vld [vmem:[#allocation8 + $0xb4] sm:$0xf]
        %v1567 = vld [vmem:[#allocation8 + $0xc4] sm:$0xf]
        %v1568 = vld [vmem:[#allocation8 + $0xd4] sm:$0xf]
        %v1569 = vld [vmem:[#allocation8 + $0xe4] sm:$0xf]
        %v1570 = vld [vmem:[#allocation8 + $0xf4] sm:$0xf]
        %v1571 = vld [vmem:[#allocation10 + $0x1] sm:$0x1]
        %v1573 = vlaneseq
        %v1574 = vshrl.u32 %v1573, 7
        %v1575 = vsub.s32 0, %v1574
        %v1576 = vrot.slane %v1571, %v1575
        %v1594 = vunpack.c.l.b16 %v1555
        %v1595 = vunpack.c.l.b16 %v1556
        %v1596 = vunpack.c.l.b16 %v1557
        %v1597 = vunpack.c.l.b16 %v1558
        %v1598 = vunpack.c.l.b16 %v1559
        %v1599 = vunpack.c.l.b16 %v1560
        %v1600 = vunpack.c.l.b16 %v1561
        %v1601 = vunpack.c.l.b16 %v1562
        %v1602 = vunpack.c.l.b16 %v1563
        %v1603 = vunpack.c.l.b16 %v1564
        %v1604 = vunpack.c.l.b16 %v1565
        %v1605 = vunpack.c.l.b16 %v1566
        %v1606 = vunpack.c.l.b16 %v1567
        %v1607 = vunpack.c.l.b16 %v1568
        %v1608 = vunpack.c.l.b16 %v1569
        %v1609 = vunpack.c.l.b16 %v1570
        %v1610 = vpack.c.b16 %v1595, %v1594
        %v1611 = vpack.c.b16 %v1597, %v1596
        %v1612 = vpack.c.b16 %v1599, %v1598
        %v1613 = vpack.c.b16 %v1601, %v1600
        %v1614 = vpack.c.b16 %v1603, %v1602
        %v1615 = vpack.c.b16 %v1605, %v1604
        %v1616 = vpack.c.b16 %v1607, %v1606
        %v1617 = vpack.c.b16 %v1609, %v1608
        %1626 = vmatprep.subr.bf16.mxu0 0
        %1627 = vmatpush1.bf16.msra.mxu0 %v1617
        %1628 = vmatprep.subr.bf16.mxu0 0
        %1629 = vmatpush1.bf16.msra.mxu0 %v1616
        %1630 = vmatprep.subr.bf16.mxu0 0
        %1631 = vmatpush1.bf16.msra.mxu0 %v1615
        %1632 = vmatprep.subr.bf16.mxu0 0
        %1633 = vmatpush1.bf16.msra.mxu0 %v1614
        %1634 = vmatprep.subr.bf16.mxu0 0
        %1635 = vmatpush1.bf16.msra.mxu0 %v1613
        %1636 = vmatprep.subr.bf16.mxu0 0
        %1637 = vmatpush1.bf16.msra.mxu0 %v1612
        %1638 = vmatprep.subr.bf16.mxu0 0
        %1639 = vmatpush1.bf16.msra.mxu0 %v1611
        %1640 = vmatprep.subr.bf16.mxu0 0
        %1641 = vmatpush1.bf16.msra.mxu0 %v1610
        %1642 = vmatprep.subr.bf16.mxu0 0
        %1643 = vmatpush2.bf16.msra.mxu0 0
        %1644 = vmatprep.subr.bf16.mxu0 0
        %1645 = vmatpush2.bf16.msra.mxu0 0
        %1646 = vmatprep.subr.bf16.mxu0 0
        %1647 = vmatpush2.bf16.msra.mxu0 0
        %1648 = vmatprep.subr.bf16.mxu0 0
        %1649 = vmatpush2.bf16.msra.mxu0 0
        %1650 = vmatprep.subr.bf16.mxu0 0
        %1651 = vmatpush2.bf16.msra.mxu0 0
        %1652 = vmatprep.subr.bf16.mxu0 0
        %1653 = vmatpush2.bf16.msra.mxu0 0
        %1654 = vmatprep.subr.bf16.mxu0 0
        %1655 = vmatpush2.bf16.msra.mxu0 0
        %1656 = vmatprep.subr.bf16.mxu0 0
        %1657 = vmatpush2.bf16.msra.mxu0 0
        %1658 = vmatprep.mubr.bf16.mxu0 0
        %1659 = vmatmul.mubr.bf16.gmra.mxu0 %v1375
        %v1660 = vpop.f32.mrf.mxu0
        %v1661 = vadd.f32 %v1576, %v1660
        %v1662 = vpop.f32.mrf.mxu0
        %v1663 = vpop.f32.mrf.mxu0
        %v1664 = vadd.f32 %v1576, %v1663
        %v1665 = vpop.f32.mrf.mxu0
        %1666 = vmatprep.mubr.bf16.mxu0 0
        %1667 = vmatmul.mubr.bf16.gmra.mxu0 %v1376
        %v1668 = vpop.f32.mrf.mxu0
        %v1669 = vadd.f32 %v1576, %v1668
        %v1670 = vpop.f32.mrf.mxu0
        %v1671 = vpop.f32.mrf.mxu0
        %v1672 = vadd.f32 %v1576, %v1671
        %v1673 = vpop.f32.mrf.mxu0
        %1674 = vdwg.mxu0
        %v1675 = vmin.f32 %v1661, 20.0
        %v1676 = vmin.f32 %v1664, 20.0
        %v1677 = vmin.f32 %v1669, 20.0
        %v1678 = vmin.f32 %v1672, 20.0
        %v1679 = vmul.f32 %v1675, 1.442695
        %v1680 = vpow.pop %v1679
        %v1681 = vmul.f32 %v1676, 1.442695
        %v1682 = vpow.pop %v1681
        %v1683 = vmul.f32 %v1677, 1.442695
        %v1684 = vpow.pop %v1683
        %v1685 = vmul.f32 %v1678, 1.442695
        %v1686 = vpow.pop %v1685
        %v1687 = vadd.f32 %v1680, 1.0
        %v1688 = vadd.f32 %v1682, 1.0
        %v1689 = vadd.f32 %v1684, 1.0
        %v1690 = vadd.f32 %v1686, 1.0
        %v1691 = vmul.f32 %v1687, %v1687
        %v1692 = vmul.f32 %v1688, %v1688
        %v1693 = vmul.f32 %v1689, %v1689
        %v1694 = vmul.f32 %v1690, %v1690
        %v1695 = vsub.f32 %v1691, 1.0
        %v1696 = vsub.f32 %v1692, 1.0
        %v1697 = vsub.f32 %v1693, 1.0
        %v1698 = vsub.f32 %v1694, 1.0
        %v1699 = vmul.f32 %v1661, %v1695
        %v1700 = vmul.f32 %v1664, %v1696
        %v1701 = vmul.f32 %v1669, %v1697
        %v1702 = vmul.f32 %v1672, %v1698
        %v1703 = vadd.f32 %v1691, 1.0
        %v1704 = vadd.f32 %v1692, 1.0
        %v1705 = vadd.f32 %v1693, 1.0
        %v1706 = vadd.f32 %v1694, 1.0
        %v1707 = vrcp.pop %v1703
        %v1708 = vrcp.pop %v1704
        %v1709 = vrcp.pop %v1705
        %v1710 = vrcp.pop %v1706
        %v1711 = vmul.f32 %v1699, %v1707
        %v1712 = vmul.f32 %v1700, %v1708
        %v1713 = vmul.f32 %v1701, %v1709
        %v1714 = vmul.f32 %v1702, %v1710
        %v1715 = vpack.c.bf16 %v1712, %v1711
        %v1716 = vpack.c.bf16 %v1714, %v1713
        %v1717 = vld [vmem:[#allocation11 + $0x40] sm:$0xf]
        %v1718 = vld [vmem:[#allocation11 + $0x44] sm:$0xf]
        %v1719 = vld [vmem:[#allocation11 + $0x48] sm:$0xf]
        %v1720 = vld [vmem:[#allocation11 + $0x4c] sm:$0xf]
        %v1721 = vld [vmem:[#allocation11 + $0x50] sm:$0xf]
        %v1722 = vld [vmem:[#allocation11 + $0x54] sm:$0xf]
        %v1723 = vld [vmem:[#allocation11 + $0x58] sm:$0xf]
        %v1724 = vld [vmem:[#allocation11 + $0x5c] sm:$0xf]
        %v1725 = vld [vmem:[#allocation11 + $0x60] sm:$0xf]
        %v1726 = vld [vmem:[#allocation11 + $0x64] sm:$0xf]
        %v1727 = vld [vmem:[#allocation11 + $0x68] sm:$0xf]
        %v1728 = vld [vmem:[#allocation11 + $0x6c] sm:$0xf]
        %v1729 = vld [vmem:[#allocation11 + $0x70] sm:$0xf]
        %v1730 = vld [vmem:[#allocation11 + $0x74] sm:$0xf]
        %v1731 = vld [vmem:[#allocation11 + $0x78] sm:$0xf]
        %v1732 = vld [vmem:[#allocation11 + $0x7c] sm:$0xf]
        %v1749 = vunpack.c.l.b16 %v1717
        %v1750 = vunpack.c.l.b16 %v1718
        %v1751 = vunpack.c.l.b16 %v1719
        %v1752 = vunpack.c.l.b16 %v1720
        %v1753 = vunpack.c.l.b16 %v1721
        %v1754 = vunpack.c.l.b16 %v1722
        %v1755 = vunpack.c.l.b16 %v1723
        %v1756 = vunpack.c.l.b16 %v1724
        %v1757 = vunpack.c.l.b16 %v1725
        %v1758 = vunpack.c.l.b16 %v1726
        %v1759 = vunpack.c.l.b16 %v1727
        %v1760 = vunpack.c.l.b16 %v1728
        %v1761 = vunpack.c.l.b16 %v1729
        %v1762 = vunpack.c.l.b16 %v1730
        %v1763 = vunpack.c.l.b16 %v1731
        %v1764 = vunpack.c.l.b16 %v1732
        %v1765 = vpack.c.b16 %v1750, %v1749
        %v1766 = vpack.c.b16 %v1752, %v1751
        %v1767 = vpack.c.b16 %v1754, %v1753
        %v1768 = vpack.c.b16 %v1756, %v1755
        %v1769 = vpack.c.b16 %v1758, %v1757
        %v1770 = vpack.c.b16 %v1760, %v1759
        %v1771 = vpack.c.b16 %v1762, %v1761
        %v1772 = vpack.c.b16 %v1764, %v1763
        %1781 = vmatprep.subr.bf16.mxu0 0
        %1782 = vmatpush1.bf16.msra.mxu0 %v1772
        %1783 = vmatprep.subr.bf16.mxu0 0
        %1784 = vmatpush1.bf16.msra.mxu0 %v1771
        %1785 = vmatprep.subr.bf16.mxu0 0
        %1786 = vmatpush1.bf16.msra.mxu0 %v1770
        %1787 = vmatprep.subr.bf16.mxu0 0
        %1788 = vmatpush1.bf16.msra.mxu0 %v1769
        %1789 = vmatprep.subr.bf16.mxu0 0
        %1790 = vmatpush1.bf16.msra.mxu0 %v1768
        %1791 = vmatprep.subr.bf16.mxu0 0
        %1792 = vmatpush1.bf16.msra.mxu0 %v1767
        %1793 = vmatprep.subr.bf16.mxu0 0
        %1794 = vmatpush1.bf16.msra.mxu0 %v1766
        %1795 = vmatprep.subr.bf16.mxu0 0
        %1796 = vmatpush1.bf16.msra.mxu0 %v1765
        %1797 = vmatprep.subr.bf16.mxu0 0
        %1798 = vmatpush2.bf16.msra.mxu0 0
        %1799 = vmatprep.subr.bf16.mxu0 0
        %1800 = vmatpush2.bf16.msra.mxu0 0
        %1801 = vmatprep.subr.bf16.mxu0 0
        %1802 = vmatpush2.bf16.msra.mxu0 0
        %1803 = vmatprep.subr.bf16.mxu0 0
        %1804 = vmatpush2.bf16.msra.mxu0 0
        %1805 = vmatprep.subr.bf16.mxu0 0
        %1806 = vmatpush2.bf16.msra.mxu0 0
        %1807 = vmatprep.subr.bf16.mxu0 0
        %1808 = vmatpush2.bf16.msra.mxu0 0
        %1809 = vmatprep.subr.bf16.mxu0 0
        %1810 = vmatpush2.bf16.msra.mxu0 0
        %1811 = vmatprep.subr.bf16.mxu0 0
        %1812 = vmatpush2.bf16.msra.mxu0 0
        %1813 = vmatprep.mubr.bf16.mxu0 0
        %1814 = vmatmul.mubr.bf16.gmra.mxu0 %v1715
        %v1815 = vpop.f32.mrf.mxu0
        %v1816 = vadd.f32 0.0, %v1815
        %v1817 = vpop.f32.mrf.mxu0
        %v1818 = vpop.f32.mrf.mxu0
        %v1819 = vadd.f32 0.0, %v1818
        %v1820 = vpop.f32.mrf.mxu0
        %1821 = vmatprep.mubr.bf16.mxu0 0
        %1822 = vmatmul.mubr.bf16.gmra.mxu0 %v1716
        %v1823 = vpop.f32.mrf.mxu0
        %v1824 = vadd.f32 0.0, %v1823
        %v1825 = vpop.f32.mrf.mxu0
        %v1826 = vpop.f32.mrf.mxu0
        %v1827 = vadd.f32 0.0, %v1826
        %v1828 = vpop.f32.mrf.mxu0
        %1829 = vdwg.mxu0
        %v1846 = vunpack.c.l.b16 %v1539
        %v1847 = vunpack.c.l.b16 %v1540
        %v1848 = vunpack.c.l.b16 %v1541
        %v1849 = vunpack.c.l.b16 %v1542
        %v1850 = vunpack.c.l.b16 %v1543
        %v1851 = vunpack.c.l.b16 %v1544
        %v1852 = vunpack.c.l.b16 %v1545
        %v1853 = vunpack.c.l.b16 %v1546
        %v1854 = vunpack.c.l.b16 %v1547
        %v1855 = vunpack.c.l.b16 %v1548
        %v1856 = vunpack.c.l.b16 %v1549
        %v1857 = vunpack.c.l.b16 %v1550
        %v1858 = vunpack.c.l.b16 %v1551
        %v1859 = vunpack.c.l.b16 %v1552
        %v1860 = vunpack.c.l.b16 %v1553
        %v1861 = vunpack.c.l.b16 %v1554
        %v1862 = vpack.c.b16 %v1847, %v1846
        %v1863 = vpack.c.b16 %v1849, %v1848
        %v1864 = vpack.c.b16 %v1851, %v1850
        %v1865 = vpack.c.b16 %v1853, %v1852
        %v1866 = vpack.c.b16 %v1855, %v1854
        %v1867 = vpack.c.b16 %v1857, %v1856
        %v1868 = vpack.c.b16 %v1859, %v1858
        %v1869 = vpack.c.b16 %v1861, %v1860
        %1878 = vmatprep.subr.bf16.mxu0 0
        %1879 = vmatpush1.bf16.msra.mxu0 %v1869
        %1880 = vmatprep.subr.bf16.mxu0 0
        %1881 = vmatpush1.bf16.msra.mxu0 %v1868
        %1882 = vmatprep.subr.bf16.mxu0 0
        %1883 = vmatpush1.bf16.msra.mxu0 %v1867
        %1884 = vmatprep.subr.bf16.mxu0 0
        %1885 = vmatpush1.bf16.msra.mxu0 %v1866
        %1886 = vmatprep.subr.bf16.mxu0 0
        %1887 = vmatpush1.bf16.msra.mxu0 %v1865
        %1888 = vmatprep.subr.bf16.mxu0 0
        %1889 = vmatpush1.bf16.msra.mxu0 %v1864
        %1890 = vmatprep.subr.bf16.mxu0 0
        %1891 = vmatpush1.bf16.msra.mxu0 %v1863
        %1892 = vmatprep.subr.bf16.mxu0 0
        %1893 = vmatpush1.bf16.msra.mxu0 %v1862
        %1894 = vmatprep.subr.bf16.mxu0 0
        %1895 = vmatpush2.bf16.msra.mxu0 0
        %1896 = vmatprep.subr.bf16.mxu0 0
        %1897 = vmatpush2.bf16.msra.mxu0 0
        %1898 = vmatprep.subr.bf16.mxu0 0
        %1899 = vmatpush2.bf16.msra.mxu0 0
        %1900 = vmatprep.subr.bf16.mxu0 0
        %1901 = vmatpush2.bf16.msra.mxu0 0
        %1902 = vmatprep.subr.bf16.mxu0 0
        %1903 = vmatpush2.bf16.msra.mxu0 0
        %1904 = vmatprep.subr.bf16.mxu0 0
        %1905 = vmatpush2.bf16.msra.mxu0 0
        %1906 = vmatprep.subr.bf16.mxu0 0
        %1907 = vmatpush2.bf16.msra.mxu0 0
        %1908 = vmatprep.subr.bf16.mxu0 0
        %1909 = vmatpush2.bf16.msra.mxu0 0
        %1910 = vmatprep.mubr.bf16.mxu0 0
        %1911 = vmatmul.mubr.bf16.gmra.mxu0 %v1537
        %v1912 = vpop.f32.mrf.mxu0
        %v1913 = vadd.f32 %v1816, %v1912
        %v1914 = vpop.f32.mrf.mxu0
        %v1915 = vpop.f32.mrf.mxu0
        %v1916 = vadd.f32 %v1819, %v1915
        %v1917 = vpop.f32.mrf.mxu0
        %1918 = vmatprep.mubr.bf16.mxu0 0
        %1919 = vmatmul.mubr.bf16.gmra.mxu0 %v1538
        %v1920 = vpop.f32.mrf.mxu0
        %v1921 = vadd.f32 %v1824, %v1920
        %v1922 = vpop.f32.mrf.mxu0
        %v1923 = vpop.f32.mrf.mxu0
        %v1924 = vadd.f32 %v1827, %v1923
        %v1925 = vpop.f32.mrf.mxu0
        %1926 = vdwg.mxu0
        %v1927 = vld [vmem:[#allocation8 + $0x8] sm:$0xf]
        %v1928 = vld [vmem:[#allocation8 + $0x18] sm:$0xf]
        %v1929 = vld [vmem:[#allocation8 + $0x28] sm:$0xf]
        %v1930 = vld [vmem:[#allocation8 + $0x38] sm:$0xf]
        %v1931 = vld [vmem:[#allocation8 + $0x48] sm:$0xf]
        %v1932 = vld [vmem:[#allocation8 + $0x58] sm:$0xf]
        %v1933 = vld [vmem:[#allocation8 + $0x68] sm:$0xf]
        %v1934 = vld [vmem:[#allocation8 + $0x78] sm:$0xf]
        %v1935 = vld [vmem:[#allocation8 + $0x88] sm:$0xf]
        %v1936 = vld [vmem:[#allocation8 + $0x98] sm:$0xf]
        %v1937 = vld [vmem:[#allocation8 + $0xa8] sm:$0xf]
        %v1938 = vld [vmem:[#allocation8 + $0xb8] sm:$0xf]
        %v1939 = vld [vmem:[#allocation8 + $0xc8] sm:$0xf]
        %v1940 = vld [vmem:[#allocation8 + $0xd8] sm:$0xf]
        %v1941 = vld [vmem:[#allocation8 + $0xe8] sm:$0xf]
        %v1942 = vld [vmem:[#allocation8 + $0xf8] sm:$0xf]
        %v1943 = vld [vmem:[#allocation10 + $0x2] sm:$0x1]
        %v1945 = vlaneseq
        %v1946 = vshrl.u32 %v1945, 7
        %v1947 = vsub.s32 0, %v1946
        %v1948 = vrot.slane %v1943, %v1947
        %v1966 = vunpack.c.l.b16 %v1927
        %v1967 = vunpack.c.l.b16 %v1928
        %v1968 = vunpack.c.l.b16 %v1929
        %v1969 = vunpack.c.l.b16 %v1930
        %v1970 = vunpack.c.l.b16 %v1931
        %v1971 = vunpack.c.l.b16 %v1932
        %v1972 = vunpack.c.l.b16 %v1933
        %v1973 = vunpack.c.l.b16 %v1934
        %v1974 = vunpack.c.l.b16 %v1935
        %v1975 = vunpack.c.l.b16 %v1936
        %v1976 = vunpack.c.l.b16 %v1937
        %v1977 = vunpack.c.l.b16 %v1938
        %v1978 = vunpack.c.l.b16 %v1939
        %v1979 = vunpack.c.l.b16 %v1940
        %v1980 = vunpack.c.l.b16 %v1941
        %v1981 = vunpack.c.l.b16 %v1942
        %v1982 = vpack.c.b16 %v1967, %v1966
        %v1983 = vpack.c.b16 %v1969, %v1968
        %v1984 = vpack.c.b16 %v1971, %v1970
        %v1985 = vpack.c.b16 %v1973, %v1972
        %v1986 = vpack.c.b16 %v1975, %v1974
        %v1987 = vpack.c.b16 %v1977, %v1976
        %v1988 = vpack.c.b16 %v1979, %v1978
        %v1989 = vpack.c.b16 %v1981, %v1980
        %1998 = vmatprep.subr.bf16.mxu0 0
        %1999 = vmatpush1.bf16.msra.mxu0 %v1989
        %2000 = vmatprep.subr.bf16.mxu0 0
        %2001 = vmatpush1.bf16.msra.mxu0 %v1988
        %2002 = vmatprep.subr.bf16.mxu0 0
        %2003 = vmatpush1.bf16.msra.mxu0 %v1987
        %2004 = vmatprep.subr.bf16.mxu0 0
        %2005 = vmatpush1.bf16.msra.mxu0 %v1986
        %2006 = vmatprep.subr.bf16.mxu0 0
        %2007 = vmatpush1.bf16.msra.mxu0 %v1985
        %2008 = vmatprep.subr.bf16.mxu0 0
        %2009 = vmatpush1.bf16.msra.mxu0 %v1984
        %2010 = vmatprep.subr.bf16.mxu0 0
        %2011 = vmatpush1.bf16.msra.mxu0 %v1983
        %2012 = vmatprep.subr.bf16.mxu0 0
        %2013 = vmatpush1.bf16.msra.mxu0 %v1982
        %2014 = vmatprep.subr.bf16.mxu0 0
        %2015 = vmatpush2.bf16.msra.mxu0 0
        %2016 = vmatprep.subr.bf16.mxu0 0
        %2017 = vmatpush2.bf16.msra.mxu0 0
        %2018 = vmatprep.subr.bf16.mxu0 0
        %2019 = vmatpush2.bf16.msra.mxu0 0
        %2020 = vmatprep.subr.bf16.mxu0 0
        %2021 = vmatpush2.bf16.msra.mxu0 0
        %2022 = vmatprep.subr.bf16.mxu0 0
        %2023 = vmatpush2.bf16.msra.mxu0 0
        %2024 = vmatprep.subr.bf16.mxu0 0
        %2025 = vmatpush2.bf16.msra.mxu0 0
        %2026 = vmatprep.subr.bf16.mxu0 0
        %2027 = vmatpush2.bf16.msra.mxu0 0
        %2028 = vmatprep.subr.bf16.mxu0 0
        %2029 = vmatpush2.bf16.msra.mxu0 0
        %2030 = vmatprep.mubr.bf16.mxu0 0
        %2031 = vmatmul.mubr.bf16.gmra.mxu0 %v1375
        %v2032 = vpop.f32.mrf.mxu0
        %v2033 = vadd.f32 %v1948, %v2032
        %v2034 = vpop.f32.mrf.mxu0
        %v2035 = vpop.f32.mrf.mxu0
        %v2036 = vadd.f32 %v1948, %v2035
        %v2037 = vpop.f32.mrf.mxu0
        %2038 = vmatprep.mubr.bf16.mxu0 0
        %2039 = vmatmul.mubr.bf16.gmra.mxu0 %v1376
        %v2040 = vpop.f32.mrf.mxu0
        %v2041 = vadd.f32 %v1948, %v2040
        %v2042 = vpop.f32.mrf.mxu0
        %v2043 = vpop.f32.mrf.mxu0
        %v2044 = vadd.f32 %v1948, %v2043
        %v2045 = vpop.f32.mrf.mxu0
        %2046 = vdwg.mxu0
        %v2047 = vmin.f32 %v2033, 20.0
        %v2048 = vmin.f32 %v2036, 20.0
        %v2049 = vmin.f32 %v2041, 20.0
        %v2050 = vmin.f32 %v2044, 20.0
        %v2051 = vmul.f32 %v2047, 1.442695
        %v2052 = vpow.pop %v2051
        %v2053 = vmul.f32 %v2048, 1.442695
        %v2054 = vpow.pop %v2053
        %v2055 = vmul.f32 %v2049, 1.442695
        %v2056 = vpow.pop %v2055
        %v2057 = vmul.f32 %v2050, 1.442695
        %v2058 = vpow.pop %v2057
        %v2059 = vadd.f32 %v2052, 1.0
        %v2060 = vadd.f32 %v2054, 1.0
        %v2061 = vadd.f32 %v2056, 1.0
        %v2062 = vadd.f32 %v2058, 1.0
        %v2063 = vmul.f32 %v2059, %v2059
        %v2064 = vmul.f32 %v2060, %v2060
        %v2065 = vmul.f32 %v2061, %v2061
        %v2066 = vmul.f32 %v2062, %v2062
        %v2067 = vsub.f32 %v2063, 1.0
        %v2068 = vsub.f32 %v2064, 1.0
        %v2069 = vsub.f32 %v2065, 1.0
        %v2070 = vsub.f32 %v2066, 1.0
        %v2071 = vmul.f32 %v2033, %v2067
        %v2072 = vmul.f32 %v2036, %v2068
        %v2073 = vmul.f32 %v2041, %v2069
        %v2074 = vmul.f32 %v2044, %v2070
        %v2075 = vadd.f32 %v2063, 1.0
        %v2076 = vadd.f32 %v2064, 1.0
        %v2077 = vadd.f32 %v2065, 1.0
        %v2078 = vadd.f32 %v2066, 1.0
        %v2079 = vrcp.pop %v2075
        %v2080 = vrcp.pop %v2076
        %v2081 = vrcp.pop %v2077
        %v2082 = vrcp.pop %v2078
        %v2083 = vmul.f32 %v2071, %v2079
        %v2084 = vmul.f32 %v2072, %v2080
        %v2085 = vmul.f32 %v2073, %v2081
        %v2086 = vmul.f32 %v2074, %v2082
        %v2087 = vpack.c.bf16 %v2084, %v2083
        %v2088 = vpack.c.bf16 %v2086, %v2085
        %v2089 = vld [vmem:[#allocation11 + $0x80] sm:$0xf]
        %v2090 = vld [vmem:[#allocation11 + $0x84] sm:$0xf]
        %v2091 = vld [vmem:[#allocation11 + $0x88] sm:$0xf]
        %v2092 = vld [vmem:[#allocation11 + $0x8c] sm:$0xf]
        %v2093 = vld [vmem:[#allocation11 + $0x90] sm:$0xf]
        %v2094 = vld [vmem:[#allocation11 + $0x94] sm:$0xf]
        %v2095 = vld [vmem:[#allocation11 + $0x98] sm:$0xf]
        %v2096 = vld [vmem:[#allocation11 + $0x9c] sm:$0xf]
        %v2097 = vld [vmem:[#allocation11 + $0xa0] sm:$0xf]
        %v2098 = vld [vmem:[#allocation11 + $0xa4] sm:$0xf]
        %v2099 = vld [vmem:[#allocation11 + $0xa8] sm:$0xf]
        %v2100 = vld [vmem:[#allocation11 + $0xac] sm:$0xf]
        %v2101 = vld [vmem:[#allocation11 + $0xb0] sm:$0xf]
        %v2102 = vld [vmem:[#allocation11 + $0xb4] sm:$0xf]
        %v2103 = vld [vmem:[#allocation11 + $0xb8] sm:$0xf]
        %v2104 = vld [vmem:[#allocation11 + $0xbc] sm:$0xf]
        %v2121 = vunpack.c.l.b16 %v2089
        %v2122 = vunpack.c.l.b16 %v2090
        %v2123 = vunpack.c.l.b16 %v2091
        %v2124 = vunpack.c.l.b16 %v2092
        %v2125 = vunpack.c.l.b16 %v2093
        %v2126 = vunpack.c.l.b16 %v2094
        %v2127 = vunpack.c.l.b16 %v2095
        %v2128 = vunpack.c.l.b16 %v2096
        %v2129 = vunpack.c.l.b16 %v2097
        %v2130 = vunpack.c.l.b16 %v2098
        %v2131 = vunpack.c.l.b16 %v2099
        %v2132 = vunpack.c.l.b16 %v2100
        %v2133 = vunpack.c.l.b16 %v2101
        %v2134 = vunpack.c.l.b16 %v2102
        %v2135 = vunpack.c.l.b16 %v2103
        %v2136 = vunpack.c.l.b16 %v2104
        %v2137 = vpack.c.b16 %v2122, %v2121
        %v2138 = vpack.c.b16 %v2124, %v2123
        %v2139 = vpack.c.b16 %v2126, %v2125
        %v2140 = vpack.c.b16 %v2128, %v2127
        %v2141 = vpack.c.b16 %v2130, %v2129
        %v2142 = vpack.c.b16 %v2132, %v2131
        %v2143 = vpack.c.b16 %v2134, %v2133
        %v2144 = vpack.c.b16 %v2136, %v2135
        %2153 = vmatprep.subr.bf16.mxu0 0
        %2154 = vmatpush1.bf16.msra.mxu0 %v2144
        %2155 = vmatprep.subr.bf16.mxu0 0
        %2156 = vmatpush1.bf16.msra.mxu0 %v2143
        %2157 = vmatprep.subr.bf16.mxu0 0
        %2158 = vmatpush1.bf16.msra.mxu0 %v2142
        %2159 = vmatprep.subr.bf16.mxu0 0
        %2160 = vmatpush1.bf16.msra.mxu0 %v2141
        %2161 = vmatprep.subr.bf16.mxu0 0
        %2162 = vmatpush1.bf16.msra.mxu0 %v2140
        %2163 = vmatprep.subr.bf16.mxu0 0
        %2164 = vmatpush1.bf16.msra.mxu0 %v2139
        %2165 = vmatprep.subr.bf16.mxu0 0
        %2166 = vmatpush1.bf16.msra.mxu0 %v2138
        %2167 = vmatprep.subr.bf16.mxu0 0
        %2168 = vmatpush1.bf16.msra.mxu0 %v2137
        %2169 = vmatprep.subr.bf16.mxu0 0
        %2170 = vmatpush2.bf16.msra.mxu0 0
        %2171 = vmatprep.subr.bf16.mxu0 0
        %2172 = vmatpush2.bf16.msra.mxu0 0
        %2173 = vmatprep.subr.bf16.mxu0 0
        %2174 = vmatpush2.bf16.msra.mxu0 0
        %2175 = vmatprep.subr.bf16.mxu0 0
        %2176 = vmatpush2.bf16.msra.mxu0 0
        %2177 = vmatprep.subr.bf16.mxu0 0
        %2178 = vmatpush2.bf16.msra.mxu0 0
        %2179 = vmatprep.subr.bf16.mxu0 0
        %2180 = vmatpush2.bf16.msra.mxu0 0
        %2181 = vmatprep.subr.bf16.mxu0 0
        %2182 = vmatpush2.bf16.msra.mxu0 0
        %2183 = vmatprep.subr.bf16.mxu0 0
        %2184 = vmatpush2.bf16.msra.mxu0 0
        %2185 = vmatprep.mubr.bf16.mxu0 0
        %2186 = vmatmul.mubr.bf16.gmra.mxu0 %v2087
        %v2187 = vpop.f32.mrf.mxu0
        %v2188 = vadd.f32 0.0, %v2187
        %v2189 = vpop.f32.mrf.mxu0
        %v2190 = vpop.f32.mrf.mxu0
        %v2191 = vadd.f32 0.0, %v2190
        %v2192 = vpop.f32.mrf.mxu0
        %2193 = vmatprep.mubr.bf16.mxu0 0
        %2194 = vmatmul.mubr.bf16.gmra.mxu0 %v2088
        %v2195 = vpop.f32.mrf.mxu0
        %v2196 = vadd.f32 0.0, %v2195
        %v2197 = vpop.f32.mrf.mxu0
        %v2198 = vpop.f32.mrf.mxu0
        %v2199 = vadd.f32 0.0, %v2198
        %v2200 = vpop.f32.mrf.mxu0
        %2201 = vdwg.mxu0
        %v2202 = vadd.f32 %v1913, %v2188
        %v2203 = vadd.f32 %v1916, %v2191
        %v2204 = vadd.f32 %v1921, %v2196
        %v2205 = vadd.f32 %v1924, %v2199
        %v2206 = vld [vmem:[#allocation8 + $0xc] sm:$0xf]
        %v2207 = vld [vmem:[#allocation8 + $0x1c] sm:$0xf]
        %v2208 = vld [vmem:[#allocation8 + $0x2c] sm:$0xf]
        %v2209 = vld [vmem:[#allocation8 + $0x3c] sm:$0xf]
        %v2210 = vld [vmem:[#allocation8 + $0x4c] sm:$0xf]
        %v2211 = vld [vmem:[#allocation8 + $0x5c] sm:$0xf]
        %v2212 = vld [vmem:[#allocation8 + $0x6c] sm:$0xf]
        %v2213 = vld [vmem:[#allocation8 + $0x7c] sm:$0xf]
        %v2214 = vld [vmem:[#allocation8 + $0x8c] sm:$0xf]
        %v2215 = vld [vmem:[#allocation8 + $0x9c] sm:$0xf]
        %v2216 = vld [vmem:[#allocation8 + $0xac] sm:$0xf]
        %v2217 = vld [vmem:[#allocation8 + $0xbc] sm:$0xf]
        %v2218 = vld [vmem:[#allocation8 + $0xcc] sm:$0xf]
        %v2219 = vld [vmem:[#allocation8 + $0xdc] sm:$0xf]
        %v2220 = vld [vmem:[#allocation8 + $0xec] sm:$0xf]
        %v2221 = vld [vmem:[#allocation8 + $0xfc] sm:$0xf]
        %v2222 = vld [vmem:[#allocation10 + $0x3] sm:$0x1]
        %v2224 = vlaneseq
        %v2225 = vshrl.u32 %v2224, 7
        %v2226 = vsub.s32 0, %v2225
        %v2227 = vrot.slane %v2222, %v2226
        %v2245 = vunpack.c.l.b16 %v2206
        %v2246 = vunpack.c.l.b16 %v2207
        %v2247 = vunpack.c.l.b16 %v2208
        %v2248 = vunpack.c.l.b16 %v2209
        %v2249 = vunpack.c.l.b16 %v2210
        %v2250 = vunpack.c.l.b16 %v2211
        %v2251 = vunpack.c.l.b16 %v2212
        %v2252 = vunpack.c.l.b16 %v2213
        %v2253 = vunpack.c.l.b16 %v2214
        %v2254 = vunpack.c.l.b16 %v2215
        %v2255 = vunpack.c.l.b16 %v2216
        %v2256 = vunpack.c.l.b16 %v2217
        %v2257 = vunpack.c.l.b16 %v2218
        %v2258 = vunpack.c.l.b16 %v2219
        %v2259 = vunpack.c.l.b16 %v2220
        %v2260 = vunpack.c.l.b16 %v2221
        %v2261 = vpack.c.b16 %v2246, %v2245
        %v2262 = vpack.c.b16 %v2248, %v2247
        %v2263 = vpack.c.b16 %v2250, %v2249
        %v2264 = vpack.c.b16 %v2252, %v2251
        %v2265 = vpack.c.b16 %v2254, %v2253
        %v2266 = vpack.c.b16 %v2256, %v2255
        %v2267 = vpack.c.b16 %v2258, %v2257
        %v2268 = vpack.c.b16 %v2260, %v2259
        %2277 = vmatprep.subr.bf16.mxu0 0
        %2278 = vmatpush1.bf16.msra.mxu0 %v2268
        %2279 = vmatprep.subr.bf16.mxu0 0
        %2280 = vmatpush1.bf16.msra.mxu0 %v2267
        %2281 = vmatprep.subr.bf16.mxu0 0
        %2282 = vmatpush1.bf16.msra.mxu0 %v2266
        %2283 = vmatprep.subr.bf16.mxu0 0
        %2284 = vmatpush1.bf16.msra.mxu0 %v2265
        %2285 = vmatprep.subr.bf16.mxu0 0
        %2286 = vmatpush1.bf16.msra.mxu0 %v2264
        %2287 = vmatprep.subr.bf16.mxu0 0
        %2288 = vmatpush1.bf16.msra.mxu0 %v2263
        %2289 = vmatprep.subr.bf16.mxu0 0
        %2290 = vmatpush1.bf16.msra.mxu0 %v2262
        %2291 = vmatprep.subr.bf16.mxu0 0
        %2292 = vmatpush1.bf16.msra.mxu0 %v2261
        %2293 = vmatprep.subr.bf16.mxu0 0
        %2294 = vmatpush2.bf16.msra.mxu0 0
        %2295 = vmatprep.subr.bf16.mxu0 0
        %2296 = vmatpush2.bf16.msra.mxu0 0
        %2297 = vmatprep.subr.bf16.mxu0 0
        %2298 = vmatpush2.bf16.msra.mxu0 0
        %2299 = vmatprep.subr.bf16.mxu0 0
        %2300 = vmatpush2.bf16.msra.mxu0 0
        %2301 = vmatprep.subr.bf16.mxu0 0
        %2302 = vmatpush2.bf16.msra.mxu0 0
        %2303 = vmatprep.subr.bf16.mxu0 0
        %2304 = vmatpush2.bf16.msra.mxu0 0
        %2305 = vmatprep.subr.bf16.mxu0 0
        %2306 = vmatpush2.bf16.msra.mxu0 0
        %2307 = vmatprep.subr.bf16.mxu0 0
        %2308 = vmatpush2.bf16.msra.mxu0 0
        %2309 = vmatprep.mubr.bf16.mxu0 0
        %2310 = vmatmul.mubr.bf16.gmra.mxu0 %v1375
        %v2311 = vpop.f32.mrf.mxu0
        %v2312 = vadd.f32 %v2227, %v2311
        %v2313 = vpop.f32.mrf.mxu0
        %v2314 = vpop.f32.mrf.mxu0
        %v2315 = vadd.f32 %v2227, %v2314
        %v2316 = vpop.f32.mrf.mxu0
        %2317 = vmatprep.mubr.bf16.mxu0 0
        %2318 = vmatmul.mubr.bf16.gmra.mxu0 %v1376
        %v2319 = vpop.f32.mrf.mxu0
        %v2320 = vadd.f32 %v2227, %v2319
        %v2321 = vpop.f32.mrf.mxu0
        %v2322 = vpop.f32.mrf.mxu0
        %v2323 = vadd.f32 %v2227, %v2322
        %v2324 = vpop.f32.mrf.mxu0
        %2325 = vdwg.mxu0
        %v2326 = vmin.f32 %v2312, 20.0
        %v2327 = vmin.f32 %v2315, 20.0
        %v2328 = vmin.f32 %v2320, 20.0
        %v2329 = vmin.f32 %v2323, 20.0
        %v2330 = vmul.f32 %v2326, 1.442695
        %v2331 = vpow.pop %v2330
        %v2332 = vmul.f32 %v2327, 1.442695
        %v2333 = vpow.pop %v2332
        %v2334 = vmul.f32 %v2328, 1.442695
        %v2335 = vpow.pop %v2334
        %v2336 = vmul.f32 %v2329, 1.442695
        %v2337 = vpow.pop %v2336
        %v2338 = vadd.f32 %v2331, 1.0
        %v2339 = vadd.f32 %v2333, 1.0
        %v2340 = vadd.f32 %v2335, 1.0
        %v2341 = vadd.f32 %v2337, 1.0
        %v2342 = vmul.f32 %v2338, %v2338
        %v2343 = vmul.f32 %v2339, %v2339
        %v2344 = vmul.f32 %v2340, %v2340
        %v2345 = vmul.f32 %v2341, %v2341
        %v2346 = vsub.f32 %v2342, 1.0
        %v2347 = vsub.f32 %v2343, 1.0
        %v2348 = vsub.f32 %v2344, 1.0
        %v2349 = vsub.f32 %v2345, 1.0
        %v2350 = vmul.f32 %v2312, %v2346
        %v2351 = vmul.f32 %v2315, %v2347
        %v2352 = vmul.f32 %v2320, %v2348
        %v2353 = vmul.f32 %v2323, %v2349
        %v2354 = vadd.f32 %v2342, 1.0
        %v2355 = vadd.f32 %v2343, 1.0
        %v2356 = vadd.f32 %v2344, 1.0
        %v2357 = vadd.f32 %v2345, 1.0
        %v2358 = vrcp.pop %v2354
        %v2359 = vrcp.pop %v2355
        %v2360 = vrcp.pop %v2356
        %v2361 = vrcp.pop %v2357
        %v2362 = vmul.f32 %v2350, %v2358
        %v2363 = vmul.f32 %v2351, %v2359
        %v2364 = vmul.f32 %v2352, %v2360
        %v2365 = vmul.f32 %v2353, %v2361
        %v2366 = vpack.c.bf16 %v2363, %v2362
        %v2367 = vpack.c.bf16 %v2365, %v2364
        %v2368 = vld [vmem:[#allocation11 + $0xc0] sm:$0xf]
        %v2369 = vld [vmem:[#allocation11 + $0xc4] sm:$0xf]
        %v2370 = vld [vmem:[#allocation11 + $0xc8] sm:$0xf]
        %v2371 = vld [vmem:[#allocation11 + $0xcc] sm:$0xf]
        %v2372 = vld [vmem:[#allocation11 + $0xd0] sm:$0xf]
        %v2373 = vld [vmem:[#allocation11 + $0xd4] sm:$0xf]
        %v2374 = vld [vmem:[#allocation11 + $0xd8] sm:$0xf]
        %v2375 = vld [vmem:[#allocation11 + $0xdc] sm:$0xf]
        %v2376 = vld [vmem:[#allocation11 + $0xe0] sm:$0xf]
        %v2377 = vld [vmem:[#allocation11 + $0xe4] sm:$0xf]
        %v2378 = vld [vmem:[#allocation11 + $0xe8] sm:$0xf]
        %v2379 = vld [vmem:[#allocation11 + $0xec] sm:$0xf]
        %v2380 = vld [vmem:[#allocation11 + $0xf0] sm:$0xf]
        %v2381 = vld [vmem:[#allocation11 + $0xf4] sm:$0xf]
        %v2382 = vld [vmem:[#allocation11 + $0xf8] sm:$0xf]
        %v2383 = vld [vmem:[#allocation11 + $0xfc] sm:$0xf]
        %v2400 = vunpack.c.l.b16 %v2368
        %v2401 = vunpack.c.l.b16 %v2369
        %v2402 = vunpack.c.l.b16 %v2370
        %v2403 = vunpack.c.l.b16 %v2371
        %v2404 = vunpack.c.l.b16 %v2372
        %v2405 = vunpack.c.l.b16 %v2373
        %v2406 = vunpack.c.l.b16 %v2374
        %v2407 = vunpack.c.l.b16 %v2375
        %v2408 = vunpack.c.l.b16 %v2376
        %v2409 = vunpack.c.l.b16 %v2377
        %v2410 = vunpack.c.l.b16 %v2378
        %v2411 = vunpack.c.l.b16 %v2379
        %v2412 = vunpack.c.l.b16 %v2380
        %v2413 = vunpack.c.l.b16 %v2381
        %v2414 = vunpack.c.l.b16 %v2382
        %v2415 = vunpack.c.l.b16 %v2383
        %v2416 = vpack.c.b16 %v2401, %v2400
        %v2417 = vpack.c.b16 %v2403, %v2402
        %v2418 = vpack.c.b16 %v2405, %v2404
        %v2419 = vpack.c.b16 %v2407, %v2406
        %v2420 = vpack.c.b16 %v2409, %v2408
        %v2421 = vpack.c.b16 %v2411, %v2410
        %v2422 = vpack.c.b16 %v2413, %v2412
        %v2423 = vpack.c.b16 %v2415, %v2414
        %2432 = vmatprep.subr.bf16.mxu0 0
        %2433 = vmatpush1.bf16.msra.mxu0 %v2423
        %2434 = vmatprep.subr.bf16.mxu0 0
        %2435 = vmatpush1.bf16.msra.mxu0 %v2422
        %2436 = vmatprep.subr.bf16.mxu0 0
        %2437 = vmatpush1.bf16.msra.mxu0 %v2421
        %2438 = vmatprep.subr.bf16.mxu0 0
        %2439 = vmatpush1.bf16.msra.mxu0 %v2420
        %2440 = vmatprep.subr.bf16.mxu0 0
        %2441 = vmatpush1.bf16.msra.mxu0 %v2419
        %2442 = vmatprep.subr.bf16.mxu0 0
        %2443 = vmatpush1.bf16.msra.mxu0 %v2418
        %2444 = vmatprep.subr.bf16.mxu0 0
        %2445 = vmatpush1.bf16.msra.mxu0 %v2417
        %2446 = vmatprep.subr.bf16.mxu0 0
        %2447 = vmatpush1.bf16.msra.mxu0 %v2416
        %2448 = vmatprep.subr.bf16.mxu0 0
        %2449 = vmatpush2.bf16.msra.mxu0 0
        %2450 = vmatprep.subr.bf16.mxu0 0
        %2451 = vmatpush2.bf16.msra.mxu0 0
        %2452 = vmatprep.subr.bf16.mxu0 0
        %2453 = vmatpush2.bf16.msra.mxu0 0
        %2454 = vmatprep.subr.bf16.mxu0 0
        %2455 = vmatpush2.bf16.msra.mxu0 0
        %2456 = vmatprep.subr.bf16.mxu0 0
        %2457 = vmatpush2.bf16.msra.mxu0 0
        %2458 = vmatprep.subr.bf16.mxu0 0
        %2459 = vmatpush2.bf16.msra.mxu0 0
        %2460 = vmatprep.subr.bf16.mxu0 0
        %2461 = vmatpush2.bf16.msra.mxu0 0
        %2462 = vmatprep.subr.bf16.mxu0 0
        %2463 = vmatpush2.bf16.msra.mxu0 0
        %2464 = vmatprep.mubr.bf16.mxu0 0
        %2465 = vmatmul.mubr.bf16.gmra.mxu0 %v2366
        %v2466 = vpop.f32.mrf.mxu0
        %v2467 = vadd.f32 0.0, %v2466
        %v2468 = vpop.f32.mrf.mxu0
        %v2469 = vpop.f32.mrf.mxu0
        %v2470 = vadd.f32 0.0, %v2469
        %v2471 = vpop.f32.mrf.mxu0
        %2472 = vmatprep.mubr.bf16.mxu0 0
        %2473 = vmatmul.mubr.bf16.gmra.mxu0 %v2367
        %v2474 = vpop.f32.mrf.mxu0
        %v2475 = vadd.f32 0.0, %v2474
        %v2476 = vpop.f32.mrf.mxu0
        %v2477 = vpop.f32.mrf.mxu0
        %v2478 = vadd.f32 0.0, %v2477
        %v2479 = vpop.f32.mrf.mxu0
        %2480 = vdwg.mxu0
        %v2481 = vadd.f32 %v2202, %v2467
        %v2482 = vadd.f32 %v2203, %v2470
        %v2483 = vadd.f32 %v2204, %v2475
        %v2484 = vadd.f32 %v2205, %v2478
        %v2485 = vld [vmem:[#allocation13] sm:$0x1]
        %v2487 = vlaneseq
        %v2488 = vshrl.u32 %v2487, 7
        %v2489 = vsub.s32 0, %v2488
        %v2490 = vrot.slane %v2485, %v2489
        %v2492 = vadd.f32 %v2481, %v2490
        %v2493 = vadd.f32 %v2482, %v2490
        %v2494 = vadd.f32 %v2483, %v2490
        %v2495 = vadd.f32 %v2484, %v2490
        %v2496 = vld [vmem:[%s908] sm:$0xf]
        %v2497 = vld [vmem:[%s908 + $0x4] sm:$0xf]
        %v2498 = vld [vmem:[%s908 + $0x8] sm:$0xf]
        %v2499 = vld [vmem:[%s908 + $0xc] sm:$0xf]
        %v2500 = vld [vmem:[#allocation14] sm:$0xf]
        %v2501 = vld [vmem:[#allocation14 + $0x4] sm:$0xf]
        %v2502 = vld [vmem:[#allocation16] sm:$0x1]
        %v2504 = vlaneseq
        %v2505 = vshrl.u32 %v2504, 7
        %v2506 = vsub.s32 0, %v2505
        %v2507 = vrot.slane %v2502, %v2506
        %v2513 = vunpack.c.l.b16 %v2496
        %v2514 = vunpack.c.l.b16 %v2497
        %v2515 = vunpack.c.l.b16 %v2498
        %v2516 = vunpack.c.l.b16 %v2499
        %v2517 = vpack.c.b16 %v2514, %v2513
        %v2518 = vpack.c.b16 %v2516, %v2515
        %v2521 = vunpack.c.l.b16 %v2500
        %v2522 = vunpack.c.l.b16 %v2501
        %v2523 = vpack.c.b16 %v2522, %v2521
        %vm2525 = vcmask 130048
        %v2527 = vsel %vm2525, %v2517, 0
        %v2530 = vsel %vm2525, %v2518, 0
        %2532 = vmatprep.subr.bf16.mxu0 0
        %2533 = vmatpush1.bf16.msra.mxu0 0
        %2534 = vmatprep.subr.bf16.mxu0 0
        %2535 = vmatpush1.bf16.msra.mxu0 0
        %2536 = vmatprep.subr.bf16.mxu0 0
        %2537 = vmatpush1.bf16.msra.mxu0 0
        %2538 = vmatprep.subr.bf16.mxu0 0
        %2539 = vmatpush1.bf16.msra.mxu0 0
        %2540 = vmatprep.subr.bf16.mxu0 0
        %2541 = vmatpush1.bf16.msra.mxu0 0
        %2542 = vmatprep.subr.bf16.mxu0 0
        %2543 = vmatpush1.bf16.msra.mxu0 0
        %2544 = vmatprep.subr.bf16.mxu0 0
        %2545 = vmatpush1.bf16.msra.mxu0 0
        %2546 = vmatprep.subr.bf16.mxu0 0
        %2547 = vmatpush1.bf16.msra.mxu0 %v2523
        %2548 = vmatprep.subr.bf16.mxu0 0
        %2549 = vmatpush2.bf16.msra.mxu0 0
        %2550 = vmatprep.subr.bf16.mxu0 0
        %2551 = vmatpush2.bf16.msra.mxu0 0
        %2552 = vmatprep.subr.bf16.mxu0 0
        %2553 = vmatpush2.bf16.msra.mxu0 0
        %2554 = vmatprep.subr.bf16.mxu0 0
        %2555 = vmatpush2.bf16.msra.mxu0 0
        %2556 = vmatprep.subr.bf16.mxu0 0
        %2557 = vmatpush2.bf16.msra.mxu0 0
        %2558 = vmatprep.subr.bf16.mxu0 0
        %2559 = vmatpush2.bf16.msra.mxu0 0
        %2560 = vmatprep.subr.bf16.mxu0 0
        %2561 = vmatpush2.bf16.msra.mxu0 0
        %2562 = vmatprep.subr.bf16.mxu0 0
        %2563 = vmatpush2.bf16.msra.mxu0 0
        %2564 = vmatprep.mubr.bf16.mxu0 0
        %2565 = vmatmul.mubr.bf16.gmra.mxu0 %v2527
        %v2566 = vpop.f32.mrf.mxu0
        %v2567 = vadd.f32 %v2507, %v2566
        %v2568 = vpop.f32.mrf.mxu0
        %v2569 = vpop.f32.mrf.mxu0
        %v2570 = vadd.f32 %v2507, %v2569
        %v2571 = vpop.f32.mrf.mxu0
        %2572 = vmatprep.mubr.bf16.mxu0 0
        %2573 = vmatmul.mubr.bf16.gmra.mxu0 %v2530
        %v2574 = vpop.f32.mrf.mxu0
        %v2575 = vadd.f32 %v2507, %v2574
        %v2576 = vpop.f32.mrf.mxu0
        %v2577 = vpop.f32.mrf.mxu0
        %v2578 = vadd.f32 %v2507, %v2577
        %v2579 = vpop.f32.mrf.mxu0
        %2580 = vdwg.mxu0
        %v2581 = vmax.f32 %v2567, 0.0
        %v2582 = vmax.f32 %v2570, 0.0
        %v2583 = vmax.f32 %v2575, 0.0
        %v2584 = vmax.f32 %v2578, 0.0
        %v2585 = vpack.c.bf16 %v2582, %v2581
        %v2586 = vpack.c.bf16 %v2584, %v2583
        %v2587 = vld [vmem:[#allocation17] sm:$0xf]
        %v2588 = vld [vmem:[#allocation17 + $0x4] sm:$0xf]
        %v2589 = vld [vmem:[#allocation17 + $0x8] sm:$0xf]
        %v2590 = vld [vmem:[#allocation17 + $0xc] sm:$0xf]
        %v2591 = vld [vmem:[#allocation17 + $0x10] sm:$0xf]
        %v2592 = vld [vmem:[#allocation17 + $0x14] sm:$0xf]
        %v2593 = vld [vmem:[#allocation17 + $0x18] sm:$0xf]
        %v2594 = vld [vmem:[#allocation17 + $0x1c] sm:$0xf]
        %v2595 = vld [vmem:[#allocation17 + $0x20] sm:$0xf]
        %v2596 = vld [vmem:[#allocation17 + $0x24] sm:$0xf]
        %v2597 = vld [vmem:[#allocation17 + $0x28] sm:$0xf]
        %v2598 = vld [vmem:[#allocation17 + $0x2c] sm:$0xf]
        %v2599 = vld [vmem:[#allocation17 + $0x30] sm:$0xf]
        %v2600 = vld [vmem:[#allocation17 + $0x34] sm:$0xf]
        %v2601 = vld [vmem:[#allocation17 + $0x38] sm:$0xf]
        %v2602 = vld [vmem:[#allocation17 + $0x3c] sm:$0xf]
        %v2603 = vld [vmem:[#allocation19] sm:$0x1]
        %v2605 = vlaneseq
        %v2606 = vshrl.u32 %v2605, 7
        %v2607 = vsub.s32 0, %v2606
        %v2608 = vrot.slane %v2603, %v2607
        %v2626 = vunpack.c.l.b16 %v2587
        %v2627 = vunpack.c.l.b16 %v2588
        %v2628 = vunpack.c.l.b16 %v2589
        %v2629 = vunpack.c.l.b16 %v2590
        %v2630 = vunpack.c.l.b16 %v2591
        %v2631 = vunpack.c.l.b16 %v2592
        %v2632 = vunpack.c.l.b16 %v2593
        %v2633 = vunpack.c.l.b16 %v2594
        %v2634 = vunpack.c.l.b16 %v2595
        %v2635 = vunpack.c.l.b16 %v2596
        %v2636 = vunpack.c.l.b16 %v2597
        %v2637 = vunpack.c.l.b16 %v2598
        %v2638 = vunpack.c.l.b16 %v2599
        %v2639 = vunpack.c.l.b16 %v2600
        %v2640 = vunpack.c.l.b16 %v2601
        %v2641 = vunpack.c.l.b16 %v2602
        %v2642 = vpack.c.b16 %v2627, %v2626
        %v2643 = vpack.c.b16 %v2629, %v2628
        %v2644 = vpack.c.b16 %v2631, %v2630
        %v2645 = vpack.c.b16 %v2633, %v2632
        %v2646 = vpack.c.b16 %v2635, %v2634
        %v2647 = vpack.c.b16 %v2637, %v2636
        %v2648 = vpack.c.b16 %v2639, %v2638
        %v2649 = vpack.c.b16 %v2641, %v2640
        %2658 = vmatprep.subr.bf16.mxu0 0
        %2659 = vmatpush1.bf16.msra.mxu0 %v2649
        %2660 = vmatprep.subr.bf16.mxu0 0
        %2661 = vmatpush1.bf16.msra.mxu0 %v2648
        %2662 = vmatprep.subr.bf16.mxu0 0
        %2663 = vmatpush1.bf16.msra.mxu0 %v2647
        %2664 = vmatprep.subr.bf16.mxu0 0
        %2665 = vmatpush1.bf16.msra.mxu0 %v2646
        %2666 = vmatprep.subr.bf16.mxu0 0
        %2667 = vmatpush1.bf16.msra.mxu0 %v2645
        %2668 = vmatprep.subr.bf16.mxu0 0
        %2669 = vmatpush1.bf16.msra.mxu0 %v2644
        %2670 = vmatprep.subr.bf16.mxu0 0
        %2671 = vmatpush1.bf16.msra.mxu0 %v2643
        %2672 = vmatprep.subr.bf16.mxu0 0
        %2673 = vmatpush1.bf16.msra.mxu0 %v2642
        %2674 = vmatprep.subr.bf16.mxu0 0
        %2675 = vmatpush2.bf16.msra.mxu0 0
        %2676 = vmatprep.subr.bf16.mxu0 0
        %2677 = vmatpush2.bf16.msra.mxu0 0
        %2678 = vmatprep.subr.bf16.mxu0 0
        %2679 = vmatpush2.bf16.msra.mxu0 0
        %2680 = vmatprep.subr.bf16.mxu0 0
        %2681 = vmatpush2.bf16.msra.mxu0 0
        %2682 = vmatprep.subr.bf16.mxu0 0
        %2683 = vmatpush2.bf16.msra.mxu0 0
        %2684 = vmatprep.subr.bf16.mxu0 0
        %2685 = vmatpush2.bf16.msra.mxu0 0
        %2686 = vmatprep.subr.bf16.mxu0 0
        %2687 = vmatpush2.bf16.msra.mxu0 0
        %2688 = vmatprep.subr.bf16.mxu0 0
        %2689 = vmatpush2.bf16.msra.mxu0 0
        %2690 = vmatprep.mubr.bf16.mxu0 0
        %2691 = vmatmul.mubr.bf16.gmra.mxu0 %v2585
        %v2692 = vpop.f32.mrf.mxu0
        %v2693 = vadd.f32 %v2608, %v2692
        %v2694 = vpop.f32.mrf.mxu0
        %v2695 = vpop.f32.mrf.mxu0
        %v2696 = vadd.f32 %v2608, %v2695
        %v2697 = vpop.f32.mrf.mxu0
        %2698 = vmatprep.mubr.bf16.mxu0 0
        %2699 = vmatmul.mubr.bf16.gmra.mxu0 %v2586
        %v2700 = vpop.f32.mrf.mxu0
        %v2701 = vadd.f32 %v2608, %v2700
        %v2702 = vpop.f32.mrf.mxu0
        %v2703 = vpop.f32.mrf.mxu0
        %v2704 = vadd.f32 %v2608, %v2703
        %v2705 = vpop.f32.mrf.mxu0
        %2706 = vdwg.mxu0
        %v2707 = vpack.c.bf16 %v2696, %v2693
        %v2708 = vpack.c.bf16 %v2704, %v2701
        %v2709 = vld [vmem:[%s13] sm:$0xff]
        %v2710 = vld [vmem:[%s13 + $0x8] sm:$0xff]
        %v2711 = vld [vmem:[%s13 + $0x10] sm:$0xff]
        %v2712 = vld [vmem:[%s13 + $0x18] sm:$0xff]
        %v2713 = vld [vmem:[%s13 + $0x20] sm:$0xff]
        %v2714 = vld [vmem:[%s13 + $0x28] sm:$0xff]
        %v2715 = vld [vmem:[%s13 + $0x30] sm:$0xff]
        %v2716 = vld [vmem:[%s13 + $0x38] sm:$0xff]
        %v2717 = vld [vmem:[%s13 + $0x40] sm:$0xff]
        %v2718 = vld [vmem:[%s13 + $0x48] sm:$0xff]
        %v2719 = vld [vmem:[%s13 + $0x50] sm:$0xff]
        %v2720 = vld [vmem:[%s13 + $0x58] sm:$0xff]
        %v2721 = vld [vmem:[%s13 + $0x60] sm:$0xff]
        %v2722 = vld [vmem:[%s13 + $0x68] sm:$0xff]
        %v2723 = vld [vmem:[%s13 + $0x70] sm:$0xff]
        %v2724 = vld [vmem:[%s13 + $0x78] sm:$0xff]
        %v2725 = vpack.c.bf16 %v2493, %v2492
        %v2726 = vpack.c.bf16 %v2495, %v2494
        %v2727 = vld [vmem:[#allocation20] sm:$0xff]
        %v2728 = vld [vmem:[#allocation20 + $0x8] sm:$0xff]
        %v2729 = vld [vmem:[#allocation20 + $0x10] sm:$0xff]
        %v2730 = vld [vmem:[#allocation20 + $0x18] sm:$0xff]
        %v2731 = vld [vmem:[#allocation20 + $0x20] sm:$0xff]
        %v2732 = vld [vmem:[#allocation20 + $0x28] sm:$0xff]
        %v2733 = vld [vmem:[#allocation20 + $0x30] sm:$0xff]
        %v2734 = vld [vmem:[#allocation20 + $0x38] sm:$0xff]
        %v2735 = vld [vmem:[#allocation20 + $0x40] sm:$0xff]
        %v2736 = vld [vmem:[#allocation20 + $0x48] sm:$0xff]
        %v2737 = vld [vmem:[#allocation20 + $0x50] sm:$0xff]
        %v2738 = vld [vmem:[#allocation20 + $0x58] sm:$0xff]
        %v2739 = vld [vmem:[#allocation20 + $0x60] sm:$0xff]
        %v2740 = vld [vmem:[#allocation20 + $0x68] sm:$0xff]
        %v2741 = vld [vmem:[#allocation20 + $0x70] sm:$0xff]
        %v2742 = vld [vmem:[#allocation20 + $0x78] sm:$0xff]
        %v2759 = vunpack.c.l.b16 %v2727
        %v2760 = vunpack.c.h.b16 %v2727
        %v2761 = vunpack.c.l.b16 %v2728
        %v2762 = vunpack.c.h.b16 %v2728
        %v2763 = vunpack.c.l.b16 %v2729
        %v2764 = vunpack.c.h.b16 %v2729
        %v2765 = vunpack.c.l.b16 %v2730
        %v2766 = vunpack.c.h.b16 %v2730
        %v2767 = vunpack.c.l.b16 %v2731
        %v2768 = vunpack.c.h.b16 %v2731
        %v2769 = vunpack.c.l.b16 %v2732
        %v2770 = vunpack.c.h.b16 %v2732
        %v2771 = vunpack.c.l.b16 %v2733
        %v2772 = vunpack.c.h.b16 %v2733
        %v2773 = vunpack.c.l.b16 %v2734
        %v2774 = vunpack.c.h.b16 %v2734
        %v2775 = vunpack.c.l.b16 %v2735
        %v2776 = vunpack.c.h.b16 %v2735
        %v2777 = vunpack.c.l.b16 %v2736
        %v2778 = vunpack.c.h.b16 %v2736
        %v2779 = vunpack.c.l.b16 %v2737
        %v2780 = vunpack.c.h.b16 %v2737
        %v2781 = vunpack.c.l.b16 %v2738
        %v2782 = vunpack.c.h.b16 %v2738
        %v2783 = vunpack.c.l.b16 %v2739
        %v2784 = vunpack.c.h.b16 %v2739
        %v2785 = vunpack.c.l.b16 %v2740
        %v2786 = vunpack.c.h.b16 %v2740
        %v2787 = vunpack.c.l.b16 %v2741
        %v2788 = vunpack.c.h.b16 %v2741
        %v2789 = vunpack.c.l.b16 %v2742
        %v2790 = vunpack.c.h.b16 %v2742
        %v2791 = vpack.c.b16 %v2761, %v2759
        %v2792 = vpack.c.b16 %v2762, %v2760
        %v2793 = vpack.c.b16 %v2765, %v2763
        %v2794 = vpack.c.b16 %v2766, %v2764
        %v2795 = vpack.c.b16 %v2769, %v2767
        %v2796 = vpack.c.b16 %v2770, %v2768
        %v2797 = vpack.c.b16 %v2773, %v2771
        %v2798 = vpack.c.b16 %v2774, %v2772
        %v2799 = vpack.c.b16 %v2777, %v2775
        %v2800 = vpack.c.b16 %v2778, %v2776
        %v2801 = vpack.c.b16 %v2781, %v2779
        %v2802 = vpack.c.b16 %v2782, %v2780
        %v2803 = vpack.c.b16 %v2785, %v2783
        %v2804 = vpack.c.b16 %v2786, %v2784
        %v2805 = vpack.c.b16 %v2789, %v2787
        %v2806 = vpack.c.b16 %v2790, %v2788
        %2823 = vmatprep.subr.bf16.mxu0 %v2806
        %2824 = vmatpush1.bf16.msra.mxu0 %v2805
        %2825 = vmatprep.subr.bf16.mxu0 %v2804
        %2826 = vmatpush1.bf16.msra.mxu0 %v2803
        %2827 = vmatprep.subr.bf16.mxu0 %v2802
        %2828 = vmatpush1.bf16.msra.mxu0 %v2801
        %2829 = vmatprep.subr.bf16.mxu0 %v2800
        %2830 = vmatpush1.bf16.msra.mxu0 %v2799
        %2831 = vmatprep.subr.bf16.mxu0 %v2798
        %2832 = vmatpush1.bf16.msra.mxu0 %v2797
        %2833 = vmatprep.subr.bf16.mxu0 %v2796
        %2834 = vmatpush1.bf16.msra.mxu0 %v2795
        %2835 = vmatprep.subr.bf16.mxu0 %v2794
        %2836 = vmatpush1.bf16.msra.mxu0 %v2793
        %2837 = vmatprep.subr.bf16.mxu0 %v2792
        %2838 = vmatpush1.bf16.msra.mxu0 %v2791
        %2839 = vmatprep.subr.bf16.mxu0 0
        %2840 = vmatpush2.bf16.msra.mxu0 0
        %2841 = vmatprep.subr.bf16.mxu0 0
        %2842 = vmatpush2.bf16.msra.mxu0 0
        %2843 = vmatprep.subr.bf16.mxu0 0
        %2844 = vmatpush2.bf16.msra.mxu0 0
        %2845 = vmatprep.subr.bf16.mxu0 0
        %2846 = vmatpush2.bf16.msra.mxu0 0
        %2847 = vmatprep.subr.bf16.mxu0 0
        %2848 = vmatpush2.bf16.msra.mxu0 0
        %2849 = vmatprep.subr.bf16.mxu0 0
        %2850 = vmatpush2.bf16.msra.mxu0 0
        %2851 = vmatprep.subr.bf16.mxu0 0
        %2852 = vmatpush2.bf16.msra.mxu0 0
        %2853 = vmatprep.subr.bf16.mxu0 0
        %2854 = vmatpush2.bf16.msra.mxu0 0
        %2855 = vmatprep.mubr.bf16.mxu0 0
        %2856 = vmatmul.mubr.bf16.gmra.mxu0 %v2725
        %v2857 = vpop.f32.mrf.mxu0
        %v2858 = vadd.f32 0.0, %v2857
        %v2859 = vpop.f32.mrf.mxu0
        %v2860 = vadd.f32 0.0, %v2859
        %v2861 = vpop.f32.mrf.mxu0
        %v2862 = vadd.f32 0.0, %v2861
        %v2863 = vpop.f32.mrf.mxu0
        %v2864 = vadd.f32 0.0, %v2863
        %2865 = vmatprep.mubr.bf16.mxu0 0
        %2866 = vmatmul.mubr.bf16.gmra.mxu0 %v2726
        %v2867 = vpop.f32.mrf.mxu0
        %v2868 = vadd.f32 0.0, %v2867
        %v2869 = vpop.f32.mrf.mxu0
        %v2870 = vadd.f32 0.0, %v2869
        %v2871 = vpop.f32.mrf.mxu0
        %v2872 = vadd.f32 0.0, %v2871
        %v2873 = vpop.f32.mrf.mxu0
        %v2874 = vadd.f32 0.0, %v2873
        %2875 = vdwg.mxu0
        %v2892 = vunpack.c.l.b16 %v2709
        %v2893 = vunpack.c.h.b16 %v2709
        %v2894 = vunpack.c.l.b16 %v2710
        %v2895 = vunpack.c.h.b16 %v2710
        %v2896 = vunpack.c.l.b16 %v2711
        %v2897 = vunpack.c.h.b16 %v2711
        %v2898 = vunpack.c.l.b16 %v2712
        %v2899 = vunpack.c.h.b16 %v2712
        %v2900 = vunpack.c.l.b16 %v2713
        %v2901 = vunpack.c.h.b16 %v2713
        %v2902 = vunpack.c.l.b16 %v2714
        %v2903 = vunpack.c.h.b16 %v2714
        %v2904 = vunpack.c.l.b16 %v2715
        %v2905 = vunpack.c.h.b16 %v2715
        %v2906 = vunpack.c.l.b16 %v2716
        %v2907 = vunpack.c.h.b16 %v2716
        %v2908 = vunpack.c.l.b16 %v2717
        %v2909 = vunpack.c.h.b16 %v2717
        %v2910 = vunpack.c.l.b16 %v2718
        %v2911 = vunpack.c.h.b16 %v2718
        %v2912 = vunpack.c.l.b16 %v2719
        %v2913 = vunpack.c.h.b16 %v2719
        %v2914 = vunpack.c.l.b16 %v2720
        %v2915 = vunpack.c.h.b16 %v2720
        %v2916 = vunpack.c.l.b16 %v2721
        %v2917 = vunpack.c.h.b16 %v2721
        %v2918 = vunpack.c.l.b16 %v2722
        %v2919 = vunpack.c.h.b16 %v2722
        %v2920 = vunpack.c.l.b16 %v2723
        %v2921 = vunpack.c.h.b16 %v2723
        %v2922 = vunpack.c.l.b16 %v2724
        %v2923 = vunpack.c.h.b16 %v2724
        %v2924 = vpack.c.b16 %v2894, %v2892
        %v2925 = vpack.c.b16 %v2895, %v2893
        %v2926 = vpack.c.b16 %v2898, %v2896
        %v2927 = vpack.c.b16 %v2899, %v2897
        %v2928 = vpack.c.b16 %v2902, %v2900
        %v2929 = vpack.c.b16 %v2903, %v2901
        %v2930 = vpack.c.b16 %v2906, %v2904
        %v2931 = vpack.c.b16 %v2907, %v2905
        %v2932 = vpack.c.b16 %v2910, %v2908
        %v2933 = vpack.c.b16 %v2911, %v2909
        %v2934 = vpack.c.b16 %v2914, %v2912
        %v2935 = vpack.c.b16 %v2915, %v2913
        %v2936 = vpack.c.b16 %v2918, %v2916
        %v2937 = vpack.c.b16 %v2919, %v2917
        %v2938 = vpack.c.b16 %v2922, %v2920
        %v2939 = vpack.c.b16 %v2923, %v2921
        %2956 = vmatprep.subr.bf16.mxu0 %v2939
        %2957 = vmatpush1.bf16.msra.mxu0 %v2938
        %2958 = vmatprep.subr.bf16.mxu0 %v2937
        %2959 = vmatpush1.bf16.msra.mxu0 %v2936
        %2960 = vmatprep.subr.bf16.mxu0 %v2935
        %2961 = vmatpush1.bf16.msra.mxu0 %v2934
        %2962 = vmatprep.subr.bf16.mxu0 %v2933
        %2963 = vmatpush1.bf16.msra.mxu0 %v2932
        %2964 = vmatprep.subr.bf16.mxu0 %v2931
        %2965 = vmatpush1.bf16.msra.mxu0 %v2930
        %2966 = vmatprep.subr.bf16.mxu0 %v2929
        %2967 = vmatpush1.bf16.msra.mxu0 %v2928
        %2968 = vmatprep.subr.bf16.mxu0 %v2927
        %2969 = vmatpush1.bf16.msra.mxu0 %v2926
        %2970 = vmatprep.subr.bf16.mxu0 %v2925
        %2971 = vmatpush1.bf16.msra.mxu0 %v2924
        %2972 = vmatprep.subr.bf16.mxu0 0
        %2973 = vmatpush2.bf16.msra.mxu0 0
        %2974 = vmatprep.subr.bf16.mxu0 0
        %2975 = vmatpush2.bf16.msra.mxu0 0
        %2976 = vmatprep.subr.bf16.mxu0 0
        %2977 = vmatpush2.bf16.msra.mxu0 0
        %2978 = vmatprep.subr.bf16.mxu0 0
        %2979 = vmatpush2.bf16.msra.mxu0 0
        %2980 = vmatprep.subr.bf16.mxu0 0
        %2981 = vmatpush2.bf16.msra.mxu0 0
        %2982 = vmatprep.subr.bf16.mxu0 0
        %2983 = vmatpush2.bf16.msra.mxu0 0
        %2984 = vmatprep.subr.bf16.mxu0 0
        %2985 = vmatpush2.bf16.msra.mxu0 0
        %2986 = vmatprep.subr.bf16.mxu0 0
        %2987 = vmatpush2.bf16.msra.mxu0 0
        %2988 = vmatprep.mubr.bf16.mxu0 0
        %2989 = vmatmul.mubr.bf16.gmra.mxu0 %v2707
        %v2990 = vpop.f32.mrf.mxu0
        %v2991 = vadd.f32 %v2858, %v2990
        %v2992 = vpop.f32.mrf.mxu0
        %v2993 = vadd.f32 %v2860, %v2992
        %v2994 = vpop.f32.mrf.mxu0
        %v2995 = vadd.f32 %v2862, %v2994
        %v2996 = vpop.f32.mrf.mxu0
        %v2997 = vadd.f32 %v2864, %v2996
        %2998 = vmatprep.mubr.bf16.mxu0 0
        %2999 = vmatmul.mubr.bf16.gmra.mxu0 %v2708
        %v3000 = vpop.f32.mrf.mxu0
        %v3001 = vadd.f32 %v2868, %v3000
        %v3002 = vpop.f32.mrf.mxu0
        %v3003 = vadd.f32 %v2870, %v3002
        %v3004 = vpop.f32.mrf.mxu0
        %v3005 = vadd.f32 %v2872, %v3004
        %v3006 = vpop.f32.mrf.mxu0
        %v3007 = vadd.f32 %v2874, %v3006
        %3008 = vdwg.mxu0
        %v3009 = vld [vmem:[%s773] sm:$0xf]
        %v3010 = vld [vmem:[%s773 + $0x4] sm:$0xf]
        %v3011 = vld [vmem:[%s773 + $0x8] sm:$0xf]
        %v3012 = vld [vmem:[%s773 + $0xc] sm:$0xf]
        %v3013 = vld [vmem:[#allocation22] sm:$0xff]
        %v3014 = vld [vmem:[#allocation22 + $0x8] sm:$0xff]
        %v3015 = vld [vmem:[#allocation22 + $0x10] sm:$0xff]
        %v3016 = vld [vmem:[#allocation22 + $0x18] sm:$0xff]
        %v3017 = vld [vmem:[#allocation22 + $0x20] sm:$0xff]
        %v3018 = vld [vmem:[#allocation22 + $0x28] sm:$0xff]
        %v3019 = vld [vmem:[#allocation22 + $0x30] sm:$0xff]
        %v3020 = vld [vmem:[#allocation22 + $0x38] sm:$0xff]
        %v3021 = vld [vmem:[#allocation22 + $0x40] sm:$0xff]
        %v3022 = vld [vmem:[#allocation22 + $0x48] sm:$0xff]
        %v3023 = vld [vmem:[#allocation22 + $0x50] sm:$0xff]
        %v3024 = vld [vmem:[#allocation22 + $0x58] sm:$0xff]
        %v3025 = vld [vmem:[#allocation22 + $0x60] sm:$0xff]
        %v3026 = vld [vmem:[#allocation22 + $0x68] sm:$0xff]
        %v3027 = vld [vmem:[#allocation22 + $0x70] sm:$0xff]
        %v3028 = vld [vmem:[#allocation22 + $0x78] sm:$0xff]
        %v3033 = vunpack.c.l.b16 %v3009
        %v3034 = vunpack.c.l.b16 %v3010
        %v3035 = vunpack.c.l.b16 %v3011
        %v3036 = vunpack.c.l.b16 %v3012
        %v3037 = vpack.c.b16 %v3034, %v3033
        %v3038 = vpack.c.b16 %v3036, %v3035
        %v3057 = vunpack.c.l.b16 %v3013
        %v3058 = vunpack.c.h.b16 %v3013
        %v3059 = vunpack.c.l.b16 %v3014
        %v3060 = vunpack.c.h.b16 %v3014
        %v3061 = vunpack.c.l.b16 %v3015
        %v3062 = vunpack.c.h.b16 %v3015
        %v3063 = vunpack.c.l.b16 %v3016
        %v3064 = vunpack.c.h.b16 %v3016
        %v3065 = vunpack.c.l.b16 %v3017
        %v3066 = vunpack.c.h.b16 %v3017
        %v3067 = vunpack.c.l.b16 %v3018
        %v3068 = vunpack.c.h.b16 %v3018
        %v3069 = vunpack.c.l.b16 %v3019
        %v3070 = vunpack.c.h.b16 %v3019
        %v3071 = vunpack.c.l.b16 %v3020
        %v3072 = vunpack.c.h.b16 %v3020
        %v3073 = vunpack.c.l.b16 %v3021
        %v3074 = vunpack.c.h.b16 %v3021
        %v3075 = vunpack.c.l.b16 %v3022
        %v3076 = vunpack.c.h.b16 %v3022
        %v3077 = vunpack.c.l.b16 %v3023
        %v3078 = vunpack.c.h.b16 %v3023
        %v3079 = vunpack.c.l.b16 %v3024
        %v3080 = vunpack.c.h.b16 %v3024
        %v3081 = vunpack.c.l.b16 %v3025
        %v3082 = vunpack.c.h.b16 %v3025
        %v3083 = vunpack.c.l.b16 %v3026
        %v3084 = vunpack.c.h.b16 %v3026
        %v3085 = vunpack.c.l.b16 %v3027
        %v3086 = vunpack.c.h.b16 %v3027
        %v3087 = vunpack.c.l.b16 %v3028
        %v3088 = vunpack.c.h.b16 %v3028
        %v3089 = vpack.c.b16 %v3059, %v3057
        %v3090 = vpack.c.b16 %v3060, %v3058
        %v3091 = vpack.c.b16 %v3063, %v3061
        %v3092 = vpack.c.b16 %v3064, %v3062
        %v3093 = vpack.c.b16 %v3067, %v3065
        %v3094 = vpack.c.b16 %v3068, %v3066
        %v3095 = vpack.c.b16 %v3071, %v3069
        %v3096 = vpack.c.b16 %v3072, %v3070
        %v3097 = vpack.c.b16 %v3075, %v3073
        %v3098 = vpack.c.b16 %v3076, %v3074
        %v3099 = vpack.c.b16 %v3079, %v3077
        %v3100 = vpack.c.b16 %v3080, %v3078
        %v3101 = vpack.c.b16 %v3083, %v3081
        %v3102 = vpack.c.b16 %v3084, %v3082
        %v3103 = vpack.c.b16 %v3087, %v3085
        %v3104 = vpack.c.b16 %v3088, %v3086
        %3121 = vmatprep.subr.bf16.mxu0 %v3104
        %3122 = vmatpush1.bf16.msra.mxu0 %v3103
        %3123 = vmatprep.subr.bf16.mxu0 %v3102
        %3124 = vmatpush1.bf16.msra.mxu0 %v3101
        %3125 = vmatprep.subr.bf16.mxu0 %v3100
        %3126 = vmatpush1.bf16.msra.mxu0 %v3099
        %3127 = vmatprep.subr.bf16.mxu0 %v3098
        %3128 = vmatpush1.bf16.msra.mxu0 %v3097
        %3129 = vmatprep.subr.bf16.mxu0 %v3096
        %3130 = vmatpush1.bf16.msra.mxu0 %v3095
        %3131 = vmatprep.subr.bf16.mxu0 %v3094
        %3132 = vmatpush1.bf16.msra.mxu0 %v3093
        %3133 = vmatprep.subr.bf16.mxu0 %v3092
        %3134 = vmatpush1.bf16.msra.mxu0 %v3091
        %3135 = vmatprep.subr.bf16.mxu0 %v3090
        %3136 = vmatpush1.bf16.msra.mxu0 %v3089
        %3137 = vmatprep.subr.bf16.mxu0 0
        %3138 = vmatpush2.bf16.msra.mxu0 0
        %3139 = vmatprep.subr.bf16.mxu0 0
        %3140 = vmatpush2.bf16.msra.mxu0 0
        %3141 = vmatprep.subr.bf16.mxu0 0
        %3142 = vmatpush2.bf16.msra.mxu0 0
        %3143 = vmatprep.subr.bf16.mxu0 0
        %3144 = vmatpush2.bf16.msra.mxu0 0
        %3145 = vmatprep.subr.bf16.mxu0 0
        %3146 = vmatpush2.bf16.msra.mxu0 0
        %3147 = vmatprep.subr.bf16.mxu0 0
        %3148 = vmatpush2.bf16.msra.mxu0 0
        %3149 = vmatprep.subr.bf16.mxu0 0
        %3150 = vmatpush2.bf16.msra.mxu0 0
        %3151 = vmatprep.subr.bf16.mxu0 0
        %3152 = vmatpush2.bf16.msra.mxu0 0
        %3153 = vmatprep.mubr.bf16.mxu0 0
        %3154 = vmatmul.mubr.bf16.gmra.mxu0 %v3037
        %v3155 = vpop.f32.mrf.mxu0
        %v3156 = vadd.f32 0.0, %v3155
        %v3157 = vpop.f32.mrf.mxu0
        %v3158 = vadd.f32 0.0, %v3157
        %v3159 = vpop.f32.mrf.mxu0
        %v3160 = vadd.f32 0.0, %v3159
        %v3161 = vpop.f32.mrf.mxu0
        %v3162 = vadd.f32 0.0, %v3161
        %3163 = vmatprep.mubr.bf16.mxu0 0
        %3164 = vmatmul.mubr.bf16.gmra.mxu0 %v3038
        %v3165 = vpop.f32.mrf.mxu0
        %v3166 = vadd.f32 0.0, %v3165
        %v3167 = vpop.f32.mrf.mxu0
        %v3168 = vadd.f32 0.0, %v3167
        %v3169 = vpop.f32.mrf.mxu0
        %v3170 = vadd.f32 0.0, %v3169
        %v3171 = vpop.f32.mrf.mxu0
        %v3172 = vadd.f32 0.0, %v3171
        %3173 = vdwg.mxu0
        %v3174 = vadd.f32 %v2991, %v3156
        %v3175 = vadd.f32 %v2993, %v3158
        %v3176 = vadd.f32 %v2995, %v3160
        %v3177 = vadd.f32 %v2997, %v3162
        %v3178 = vadd.f32 %v3001, %v3166
        %v3179 = vadd.f32 %v3003, %v3168
        %v3180 = vadd.f32 %v3005, %v3170
        %v3181 = vadd.f32 %v3007, %v3172
        %v3182 = vld [vmem:[%s16] sm:$0x3]
        %v3184 = vlaneseq
        %v3185 = vshrl.u32 %v3184, 7
        %v3186 = vsub.s32 0, %v3185
        %v3187 = vrot.slane %v3182, %v3186
        %v3188 = vlaneseq
        %v3189 = vshrl.u32 %v3188, 7
        %v3190 = vsub.s32 1, %v3189
        %v3191 = vrot.slane %v3182, %v3190
        %v3194 = vadd.f32 %v3174, %v3187
        %v3195 = vadd.f32 %v3175, %v3191
        %v3196 = vadd.f32 %v3176, %v3187
        %v3197 = vadd.f32 %v3177, %v3191
        %v3198 = vadd.f32 %v3178, %v3187
        %v3199 = vadd.f32 %v3179, %v3191
        %v3200 = vadd.f32 %v3180, %v3187
        %v3201 = vadd.f32 %v3181, %v3191
        %v3202 = vmax.f32 %v3194, 0.0
        %v3203 = vmax.f32 %v3195, 0.0
        %v3204 = vmax.f32 %v3196, 0.0
        %v3205 = vmax.f32 %v3197, 0.0
        %v3206 = vmax.f32 %v3198, 0.0
        %v3207 = vmax.f32 %v3199, 0.0
        %v3208 = vmax.f32 %v3200, 0.0
        %v3209 = vmax.f32 %v3201, 0.0
        %v3210 = vpack.c.bf16 %v3204, %v3202
        %v3211 = vpack.c.bf16 %v3205, %v3203
        %v3212 = vpack.c.bf16 %v3208, %v3206
        %v3213 = vpack.c.bf16 %v3209, %v3207
        %v3214 = vld [vmem:[#allocation23] sm:$0xf]
        %v3215 = vld [vmem:[#allocation23 + $0x4] sm:$0xf]
        %v3216 = vld [vmem:[#allocation23 + $0x8] sm:$0xf]
        %v3217 = vld [vmem:[#allocation23 + $0xc] sm:$0xf]
        %v3218 = vld [vmem:[#allocation23 + $0x10] sm:$0xf]
        %v3219 = vld [vmem:[#allocation23 + $0x14] sm:$0xf]
        %v3220 = vld [vmem:[#allocation23 + $0x18] sm:$0xf]
        %v3221 = vld [vmem:[#allocation23 + $0x1c] sm:$0xf]
        %v3222 = vld [vmem:[#allocation23 + $0x20] sm:$0xf]
        %v3223 = vld [vmem:[#allocation23 + $0x24] sm:$0xf]
        %v3224 = vld [vmem:[#allocation23 + $0x28] sm:$0xf]
        %v3225 = vld [vmem:[#allocation23 + $0x2c] sm:$0xf]
        %v3226 = vld [vmem:[#allocation23 + $0x30] sm:$0xf]
        %v3227 = vld [vmem:[#allocation23 + $0x34] sm:$0xf]
        %v3228 = vld [vmem:[#allocation23 + $0x38] sm:$0xf]
        %v3229 = vld [vmem:[#allocation23 + $0x3c] sm:$0xf]
        %v3230 = vld [vmem:[#allocation23 + $0x40] sm:$0xf]
        %v3231 = vld [vmem:[#allocation23 + $0x44] sm:$0xf]
        %v3232 = vld [vmem:[#allocation23 + $0x48] sm:$0xf]
        %v3233 = vld [vmem:[#allocation23 + $0x4c] sm:$0xf]
        %v3234 = vld [vmem:[#allocation23 + $0x50] sm:$0xf]
        %v3235 = vld [vmem:[#allocation23 + $0x54] sm:$0xf]
        %v3236 = vld [vmem:[#allocation23 + $0x58] sm:$0xf]
        %v3237 = vld [vmem:[#allocation23 + $0x5c] sm:$0xf]
        %v3238 = vld [vmem:[#allocation23 + $0x60] sm:$0xf]
        %v3239 = vld [vmem:[#allocation23 + $0x64] sm:$0xf]
        %v3240 = vld [vmem:[#allocation23 + $0x68] sm:$0xf]
        %v3241 = vld [vmem:[#allocation23 + $0x6c] sm:$0xf]
        %v3242 = vld [vmem:[#allocation23 + $0x70] sm:$0xf]
        %v3243 = vld [vmem:[#allocation23 + $0x74] sm:$0xf]
        %v3244 = vld [vmem:[#allocation23 + $0x78] sm:$0xf]
        %v3245 = vld [vmem:[#allocation23 + $0x7c] sm:$0xf]
        %v3246 = vld [vmem:[%s18] sm:$0x1]
        %v3248 = vlaneseq
        %v3249 = vshrl.u32 %v3248, 7
        %v3250 = vsub.s32 0, %v3249
        %v3251 = vrot.slane %v3246, %v3250
        %v3285 = vunpack.c.l.b16 %v3214
        %v3286 = vunpack.c.l.b16 %v3215
        %v3287 = vunpack.c.l.b16 %v3216
        %v3288 = vunpack.c.l.b16 %v3217
        %v3289 = vunpack.c.l.b16 %v3218
        %v3290 = vunpack.c.l.b16 %v3219
        %v3291 = vunpack.c.l.b16 %v3220
        %v3292 = vunpack.c.l.b16 %v3221
        %v3293 = vunpack.c.l.b16 %v3222
        %v3294 = vunpack.c.l.b16 %v3223
        %v3295 = vunpack.c.l.b16 %v3224
        %v3296 = vunpack.c.l.b16 %v3225
        %v3297 = vunpack.c.l.b16 %v3226
        %v3298 = vunpack.c.l.b16 %v3227
        %v3299 = vunpack.c.l.b16 %v3228
        %v3300 = vunpack.c.l.b16 %v3229
        %v3301 = vunpack.c.l.b16 %v3230
        %v3302 = vunpack.c.l.b16 %v3231
        %v3303 = vunpack.c.l.b16 %v3232
        %v3304 = vunpack.c.l.b16 %v3233
        %v3305 = vunpack.c.l.b16 %v3234
        %v3306 = vunpack.c.l.b16 %v3235
        %v3307 = vunpack.c.l.b16 %v3236
        %v3308 = vunpack.c.l.b16 %v3237
        %v3309 = vunpack.c.l.b16 %v3238
        %v3310 = vunpack.c.l.b16 %v3239
        %v3311 = vunpack.c.l.b16 %v3240
        %v3312 = vunpack.c.l.b16 %v3241
        %v3313 = vunpack.c.l.b16 %v3242
        %v3314 = vunpack.c.l.b16 %v3243
        %v3315 = vunpack.c.l.b16 %v3244
        %v3316 = vunpack.c.l.b16 %v3245
        %v3317 = vpack.c.b16 %v3286, %v3285
        %v3318 = vpack.c.b16 %v3288, %v3287
        %v3319 = vpack.c.b16 %v3290, %v3289
        %v3320 = vpack.c.b16 %v3292, %v3291
        %v3321 = vpack.c.b16 %v3294, %v3293
        %v3322 = vpack.c.b16 %v3296, %v3295
        %v3323 = vpack.c.b16 %v3298, %v3297
        %v3324 = vpack.c.b16 %v3300, %v3299
        %v3325 = vpack.c.b16 %v3302, %v3301
        %v3326 = vpack.c.b16 %v3304, %v3303
        %v3327 = vpack.c.b16 %v3306, %v3305
        %v3328 = vpack.c.b16 %v3308, %v3307
        %v3329 = vpack.c.b16 %v3310, %v3309
        %v3330 = vpack.c.b16 %v3312, %v3311
        %v3331 = vpack.c.b16 %v3314, %v3313
        %v3332 = vpack.c.b16 %v3316, %v3315
        %3349 = vmatprep.subr.bf16.mxu0 0
        %3350 = vmatpush1.bf16.msra.mxu0 %v3324
        %3351 = vmatprep.subr.bf16.mxu0 0
        %3352 = vmatpush1.bf16.msra.mxu0 %v3323
        %3353 = vmatprep.subr.bf16.mxu0 0
        %3354 = vmatpush1.bf16.msra.mxu0 %v3322
        %3355 = vmatprep.subr.bf16.mxu0 0
        %3356 = vmatpush1.bf16.msra.mxu0 %v3321
        %3357 = vmatprep.subr.bf16.mxu0 0
        %3358 = vmatpush1.bf16.msra.mxu0 %v3320
        %3359 = vmatprep.subr.bf16.mxu0 0
        %3360 = vmatpush1.bf16.msra.mxu0 %v3319
        %3361 = vmatprep.subr.bf16.mxu0 0
        %3362 = vmatpush1.bf16.msra.mxu0 %v3318
        %3363 = vmatprep.subr.bf16.mxu0 0
        %3364 = vmatpush1.bf16.msra.mxu0 %v3317
        %3365 = vmatprep.subr.bf16.mxu0 0
        %3366 = vmatpush2.bf16.msra.mxu0 %v3332
        %3367 = vmatprep.subr.bf16.mxu0 0
        %3368 = vmatpush2.bf16.msra.mxu0 %v3331
        %3369 = vmatprep.subr.bf16.mxu0 0
        %3370 = vmatpush2.bf16.msra.mxu0 %v3330
        %3371 = vmatprep.subr.bf16.mxu0 0
        %3372 = vmatpush2.bf16.msra.mxu0 %v3329
        %3373 = vmatprep.subr.bf16.mxu0 0
        %3374 = vmatpush2.bf16.msra.mxu0 %v3328
        %3375 = vmatprep.subr.bf16.mxu0 0
        %3376 = vmatpush2.bf16.msra.mxu0 %v3327
        %3377 = vmatprep.subr.bf16.mxu0 0
        %3378 = vmatpush2.bf16.msra.mxu0 %v3326
        %3379 = vmatprep.subr.bf16.mxu0 0
        %3380 = vmatpush2.bf16.msra.mxu0 %v3325
        %3381 = vmatprep.mubr.bf16.mxu0 %v3211
        %3382 = vmatmul.mubr.bf16.gmra.mxu0 %v3210
        %v3383 = vpop.f32.mrf.mxu0
        %v3384 = vadd.f32 %v3251, %v3383
        %v3385 = vpop.f32.mrf.mxu0
        %v3386 = vpop.f32.mrf.mxu0
        %v3387 = vadd.f32 %v3251, %v3386
        %v3388 = vpop.f32.mrf.mxu0
        %3389 = vmatprep.mubr.bf16.mxu0 %v3213
        %3390 = vmatmul.mubr.bf16.gmra.mxu0 %v3212
        %v3391 = vpop.f32.mrf.mxu0
        %v3392 = vadd.f32 %v3251, %v3391
        %v3393 = vpop.f32.mrf.mxu0
        %v3394 = vpop.f32.mrf.mxu0
        %v3395 = vadd.f32 %v3251, %v3394
        %v3396 = vpop.f32.mrf.mxu0
        %3397 = vdwg.mxu0
        %v3398 = vmax.f32 %v3384, 0.0
        %v3399 = vmax.f32 %v3387, 0.0
        %v3400 = vmax.f32 %v3392, 0.0
        %v3401 = vmax.f32 %v3395, 0.0
        %v3402 = vpack.c.bf16 %v3399, %v3398
        %v3403 = vpack.c.bf16 %v3401, %v3400
        %v3404 = vld [vmem:[#allocation25] sm:$0xf]
        %v3405 = vld [vmem:[#allocation25 + $0x4] sm:$0xf]
        %v3406 = vld [vmem:[#allocation25 + $0x8] sm:$0xf]
        %v3407 = vld [vmem:[#allocation25 + $0xc] sm:$0xf]
        %v3408 = vld [vmem:[#allocation25 + $0x10] sm:$0xf]
        %v3409 = vld [vmem:[#allocation25 + $0x14] sm:$0xf]
        %v3410 = vld [vmem:[#allocation25 + $0x18] sm:$0xf]
        %v3411 = vld [vmem:[#allocation25 + $0x1c] sm:$0xf]
        %v3412 = vld [vmem:[#allocation25 + $0x20] sm:$0xf]
        %v3413 = vld [vmem:[#allocation25 + $0x24] sm:$0xf]
        %v3414 = vld [vmem:[#allocation25 + $0x28] sm:$0xf]
        %v3415 = vld [vmem:[#allocation25 + $0x2c] sm:$0xf]
        %v3416 = vld [vmem:[#allocation25 + $0x30] sm:$0xf]
        %v3417 = vld [vmem:[#allocation25 + $0x34] sm:$0xf]
        %v3418 = vld [vmem:[#allocation25 + $0x38] sm:$0xf]
        %v3419 = vld [vmem:[#allocation25 + $0x3c] sm:$0xf]
        %v3420 = vld [vmem:[%s20] sm:$0x1]
        %v3422 = vlaneseq
        %v3423 = vshrl.u32 %v3422, 7
        %v3424 = vsub.s32 0, %v3423
        %v3425 = vrot.slane %v3420, %v3424
        %v3443 = vunpack.c.l.b16 %v3404
        %v3444 = vunpack.c.l.b16 %v3405
        %v3445 = vunpack.c.l.b16 %v3406
        %v3446 = vunpack.c.l.b16 %v3407
        %v3447 = vunpack.c.l.b16 %v3408
        %v3448 = vunpack.c.l.b16 %v3409
        %v3449 = vunpack.c.l.b16 %v3410
        %v3450 = vunpack.c.l.b16 %v3411
        %v3451 = vunpack.c.l.b16 %v3412
        %v3452 = vunpack.c.l.b16 %v3413
        %v3453 = vunpack.c.l.b16 %v3414
        %v3454 = vunpack.c.l.b16 %v3415
        %v3455 = vunpack.c.l.b16 %v3416
        %v3456 = vunpack.c.l.b16 %v3417
        %v3457 = vunpack.c.l.b16 %v3418
        %v3458 = vunpack.c.l.b16 %v3419
        %v3459 = vpack.c.b16 %v3444, %v3443
        %v3460 = vpack.c.b16 %v3446, %v3445
        %v3461 = vpack.c.b16 %v3448, %v3447
        %v3462 = vpack.c.b16 %v3450, %v3449
        %v3463 = vpack.c.b16 %v3452, %v3451
        %v3464 = vpack.c.b16 %v3454, %v3453
        %v3465 = vpack.c.b16 %v3456, %v3455
        %v3466 = vpack.c.b16 %v3458, %v3457
        %3475 = vmatprep.subr.bf16.mxu0 0
        %3476 = vmatpush1.bf16.msra.mxu0 %v3466
        %3477 = vmatprep.subr.bf16.mxu0 0
        %3478 = vmatpush1.bf16.msra.mxu0 %v3465
        %3479 = vmatprep.subr.bf16.mxu0 0
        %3480 = vmatpush1.bf16.msra.mxu0 %v3464
        %3481 = vmatprep.subr.bf16.mxu0 0
        %3482 = vmatpush1.bf16.msra.mxu0 %v3463
        %3483 = vmatprep.subr.bf16.mxu0 0
        %3484 = vmatpush1.bf16.msra.mxu0 %v3462
        %3485 = vmatprep.subr.bf16.mxu0 0
        %3486 = vmatpush1.bf16.msra.mxu0 %v3461
        %3487 = vmatprep.subr.bf16.mxu0 0
        %3488 = vmatpush1.bf16.msra.mxu0 %v3460
        %3489 = vmatprep.subr.bf16.mxu0 0
        %3490 = vmatpush1.bf16.msra.mxu0 %v3459
        %3491 = vmatprep.subr.bf16.mxu0 0
        %3492 = vmatpush2.bf16.msra.mxu0 0
        %3493 = vmatprep.subr.bf16.mxu0 0
        %3494 = vmatpush2.bf16.msra.mxu0 0
        %3495 = vmatprep.subr.bf16.mxu0 0
        %3496 = vmatpush2.bf16.msra.mxu0 0
        %3497 = vmatprep.subr.bf16.mxu0 0
        %3498 = vmatpush2.bf16.msra.mxu0 0
        %3499 = vmatprep.subr.bf16.mxu0 0
        %3500 = vmatpush2.bf16.msra.mxu0 0
        %3501 = vmatprep.subr.bf16.mxu0 0
        %3502 = vmatpush2.bf16.msra.mxu0 0
        %3503 = vmatprep.subr.bf16.mxu0 0
        %3504 = vmatpush2.bf16.msra.mxu0 0
        %3505 = vmatprep.subr.bf16.mxu0 0
        %3506 = vmatpush2.bf16.msra.mxu0 0
        %3507 = vmatprep.mubr.bf16.mxu0 0
        %3508 = vmatmul.mubr.bf16.gmra.mxu0 %v3402
        %v3509 = vpop.f32.mrf.mxu0
        %v3510 = vadd.f32 %v3425, %v3509
        %v3511 = vpop.f32.mrf.mxu0
        %v3512 = vpop.f32.mrf.mxu0
        %v3513 = vadd.f32 %v3425, %v3512
        %v3514 = vpop.f32.mrf.mxu0
        %3515 = vmatprep.mubr.bf16.mxu0 0
        %3516 = vmatmul.mubr.bf16.gmra.mxu0 %v3403
        %v3517 = vpop.f32.mrf.mxu0
        %v3518 = vadd.f32 %v3425, %v3517
        %v3519 = vpop.f32.mrf.mxu0
        %v3520 = vpop.f32.mrf.mxu0
        %v3521 = vadd.f32 %v3425, %v3520
        %v3522 = vpop.f32.mrf.mxu0
        %3523 = vdwg.mxu0
        %v3524 = vpack.c.bf16 %v3513, %v3510
        %v3525 = vpack.c.bf16 %v3521, %v3518
        %v3528 = vunpack.c.l.b16 %v3524
        %v3529 = vunpack.c.h.b16 %v3524
        %v3530 = vunpack.c.l.b16 %v3525
        %v3531 = vunpack.c.h.b16 %v3525
        %v3532 = vpack.c.b16 %v3528, %v3528
        %v3533 = vpack.c.b16 %v3529, %v3529
        %v3534 = vpack.c.b16 %v3530, %v3530
        %v3535 = vpack.c.b16 %v3531, %v3531
        %3540 = vst [vmem:[%s897] sm:$0xf] %v3532
        %3541 = vst [vmem:[%s897 + $0x4] sm:$0xf] %v3533
        %3542 = vst [vmem:[%s897 + $0x8] sm:$0xf] %v3534
        %3543 = vst [vmem:[%s897 + $0xc] sm:$0xf] %v3535
        %s3544 = sand.u32 %s509, 1
        %s3545 = scalar_lea.sflag [#allocation4], %s3544
        %s3546 = sand.u32 %s509, 1
        %s3547 = smul.addr %s3546, 16
        %s3548 = scalar_lea.vmem [#allocation26], %s3547
        // Predicated region
        $region165: #{tpu_custom_call.1} parent=103 // pred_check
          %p3549 = pneg %p519
        $region166: #{tpu_custom_call.1} parent=103 // pred_check_branch
          %3551 = sbr.rel (%p3549) target = $region168
        $region167: #{tpu_custom_call.1} parent=103 // pred_region
          %s3552 = smul.u32 4, %s45
          %s3554 = ssub.s32 256, 256
          %3555 = vsyncadd %s3545, %s3554
          %s3556 = smul.addr %s3552, 64
          %s3557 = scalar_lea.hbm %s21, %s3556
          %s3558 = sshll.u32 %s3548, 4
          %s3559 = int_to_ptr.vmem [resolvable:$true] %s3558
          %3564 = dma.vmem_to_hbm [thread:$0]  %s3559, 256, %s3557, %s3545, 64, 64, 4
        $region168: #{tpu_custom_call.1} parent=103 // pred_fallthru
          _
      $region104: #{tpu_custom_call.1} parent=5 // pred_fallthru
        _
      %p3565 = scmp.le.s32.totalorder 2, %s40
      // Predicated region
      $region169: #{tpu_custom_call.1} parent=5 // pred_check
        %p3566 = pneg %p3565
      $region170: #{tpu_custom_call.1} parent=5 // pred_check_branch
        %3568 = sbr.rel (%p3566) target = $region172
      $region171: #{tpu_custom_call.1} parent=5 // pred_region
        %s3569 = ssub.s32 %s40, 2
        // Predicated region
        $region173: #{tpu_custom_call.1} parent=171 // pred_check
          %p3570 = pneg %p525
        $region174: #{tpu_custom_call.1} parent=171 // pred_check_branch
          %3572 = sbr.rel (%p3570) target = $region176
        $region175: #{tpu_custom_call.1} parent=171 // pred_region
          %s3573 = sand.u32 %s510, 1
          %s3574 = scalar_lea.sflag [#allocation4], %s3573
          %s3575 = sand.u32 %s510, 1
          %s3576 = smul.addr %s3575, 16
          %s3577 = scalar_lea.vmem [#allocation26], %s3576
          %3578 = dma.done %s3574, 256
        $region176: #{tpu_custom_call.1} parent=171 // pred_fallthru
          _
      $region172: #{tpu_custom_call.1} parent=5 // pred_fallthru
        _
    $region6: #{tpu_custom_call.1} parent=1 // loop_footer
      %s44 = sadd.s32 1, %s40
    $region7: #{tpu_custom_call.1} parent=1 // loop_footer_branch
      %39 = sbr.rel target = $region3
    $region8: #{tpu_custom_call.1} parent=1 // loop_exit
      _
    %3579 = vsyncpa [#allocation3], 1
    %s3580 = scalar_lea.sflag [#allocation3], 1
    %3581 = vsyncpa %s3580, 1
    %3582 = vsyncpa [#allocation6], 1
    %3583 = vsyncpa [#allocation9], 1
    %3584 = vsyncpa [#allocation12], 1
    %3585 = vsyncpa [#allocation15], 1
    %3586 = vsyncpa [#allocation18], 1
    %3587 = vsyncpa [#allocation21], 1
    %3588 = vsyncpa [#allocation24], 1
    %3589 = vsyncpa [#allocation4], 1
    %s3590 = scalar_lea.sflag [#allocation4], 1
    %3591 = vsyncpa %s3590, 1

</llo_original>
